<compile_context>
chip_gen: v7x
topology: tpu7x:2x2x1
jax: 0.10.0
libtpu: 0.0.40
codegen_flags: <defaults>
</compile_context>

<pallas_src>
import functools

import jax
import jax.numpy as jnp
import numpy as np
from jax.experimental import pallas as pl
from jax.experimental.pallas import tpu as pltpu  # noqa: F401  (kept for TPU-specific tuning hooks)

BN_EPS = 1e-5


# -----------------------------------------------------------------------------
# Fused kernel: all GRU layers (time loop in-kernel) + MLP head, single invocation.
# Gate math matches torch.nn.GRU:
#   r = sigmoid(x W_ir + b_ir + h W_hr + b_hr)
#   z = sigmoid(x W_iz + b_iz + h W_hz + b_hz)
#   n = tanh   (x W_in + b_in + r * (h W_hn + b_hn))
#   h' = (1 - z) * n + z * h
# b_ir+b_hr and b_iz+b_hz are pre-folded into the input-gate bias; b_hn must stay
# inside r * (h W_hn + b_hn) and is kept separate.
# TODO(synk): nn.GRU inter-layer dropout and head nn.Dropout are train-mode only;
#             they are identity at inference and therefore omitted here.
# -----------------------------------------------------------------------------
def make_fused_model_kernel(num_layers, hidden_size):
    H = hidden_size

    def kernel(*args):
        # args layout:
        #   gx0_ref (T, B, 3H)                      precomputed layer-0 input gates
        #   whh0 (H, 3H), bhn0 (1, H)               layer-0 recurrent weight / b_hn
        #   for each layer l = 1..L-1:
        #     wih_l (H, 3H), bi_l (1, 3H), whh_l (H, 3H), bhn_l (1, H)
        #   w1 (H, U2), b1 (1, U2), w2 (U2, U), b2 (1, U), w3 (U, C), b3 (1, C)
        #   out_ref (B, C)
        gx0_ref = args[0]
        out_ref = args[-1]

        idx = 1
        whh0 = args[idx][...]
        bhn0 = args[idx + 1][...]
        idx += 2
        upper = []
        for _ in range(num_layers - 1):
            wih = args[idx][...]
            bi = args[idx + 1][...]
            whh = args[idx + 2][...]
            bhn = args[idx + 3][...]
            idx += 4
            upper.append((wih, bi, whh, bhn))
        w1 = args[idx][...]
        b1 = args[idx + 1][...]
        w2 = args[idx + 2][...]
        b2 = args[idx + 3][...]
        w3 = args[idx + 4][...]
        b3 = args[idx + 5][...]

        T, B, _ = gx0_ref.shape

        def gru_cell(gx, h, whh, bhn):
            # gx already contains x@W_ih + (b_ir+b_hr | b_iz+b_hz | b_in).
            gh = jnp.dot(h, whh, preferred_element_type=jnp.float32)  # (B, 3H), one MXU issue
            r = jax.nn.sigmoid(gx[:, 0:H] + gh[:, 0:H])
            z = jax.nn.sigmoid(gx[:, H:2 * H] + gh[:, H:2 * H])
            n = jnp.tanh(gx[:, 2 * H:] + r * (gh[:, 2 * H:] + bhn))
            return (1.0 - z) * n + z * h

        def step(t, hs):
            h = gru_cell(gx0_ref[t], hs[0], whh0, bhn0)
            new_hs = [h]
            for l, (wih, bi, whh, bhn) in enumerate(upper):
                # Upper-layer input projection is fused to one (B,H)@(H,3H) matmul;
                # it feeds layer l's cell but is off layer (l-1)'s serial chain.
                gx = jnp.dot(h, wih, preferred_element_type=jnp.float32) + bi
                h = gru_cell(gx, hs[l + 1], whh, bhn)
                new_hs.append(h)
            return tuple(new_hs)

        init = tuple(jnp.zeros((B, H), jnp.float32) for _ in range(num_layers))
        hs = jax.lax.fori_loop(0, T, step, init, unroll=True)
        h_last = hs[-1]  # == out[:, -1, :] of the top GRU layer

        # Head: Linear -> ReLU -> (Dropout=id) -> BN(eval; folded into next Linear)
        #       -> Linear -> ReLU -> (Dropout=id) -> BN(folded) -> Linear -> Softmax(dim=1)
        y = jnp.maximum(jnp.dot(h_last, w1, preferred_element_type=jnp.float32) + b1, 0.0)
        y = jnp.maximum(jnp.dot(y, w2, preferred_element_type=jnp.float32) + b2, 0.0)
        logits = jnp.dot(y, w3, preferred_element_type=jnp.float32) + b3
        m = jnp.max(logits, axis=1, keepdims=True)
        e = jnp.exp(logits - m)
        out_ref[...] = e / jnp.sum(e, axis=1, keepdims=True)

    return kernel


# -----------------------------------------------------------------------------
# Parameter fusion / constant folding (PyTorch-style params -> kernel layout)
# -----------------------------------------------------------------------------
def fuse_params(params):
    gru = params["gru_layers"]

    def fuse_layer(wih, whh, bih, bhh):
        wih_f = jnp.concatenate([wih[0], wih[1], wih[2]], axis=1)                     # (D, 3H)
        whh_f = jnp.concatenate([whh[0], whh[1], whh[2]], axis=1)                     # (H, 3H)
        bi_f = jnp.concatenate([bih[0] + bhh[0], bih[1] + bhh[1], bih[2]], axis=1)    # (1, 3H)
        bhn = bhh[2]                                                                  # (1, H)
        return wih_f, bi_f, whh_f, bhn

    wih0_f, bi0_f, whh0_f, bhn0 = fuse_layer(*gru[0])
    flat = [whh0_f, bhn0]
    for layer in gru[1:]:
        wih_f, bi_f, whh_f, bhn = fuse_layer(*layer)
        flat += [wih_f, bi_f, whh_f, bhn]

    (w1, b1, g1, be1, m1, v1, w2, b2, g2, be2, m2, v2, w3, b3) = params["head"]
    # Eval-mode BatchNorm is affine (y*scale + shift); fold it into the next Linear.
    s1 = g1 * jax.lax.rsqrt(v1 + BN_EPS)
    sh1 = be1 - m1 * s1
    w2f = s1.reshape(-1, 1) * w2
    b2f = sh1 @ w2 + b2
    s2 = g2 * jax.lax.rsqrt(v2 + BN_EPS)
    sh2 = be2 - m2 * s2
    w3f = s2.reshape(-1, 1) * w3
    b3f = sh2 @ w3 + b3
    flat += [w1, b1, w2f, b2f, w3f, b3f]
    return wih0_f, bi0_f, flat


# -----------------------------------------------------------------------------
# Full model forward (mirrors GRU.forward; x: (B, input_size, seq_len))
# -----------------------------------------------------------------------------
@functools.partial(jax.jit, static_argnames=("num_layers", "hidden_size", "num_classes"))
def gru_model_forward(x, params, num_layers, hidden_size, num_classes):
    x = x.astype(jnp.float32)
    x_tbd = jnp.transpose(x, (2, 0, 1))          # time-major (T, B, input_size)
    T, B, D = x_tbd.shape
    wih0_f, bi0_f, flat = fuse_params(params)
    # Hoisted layer-0 input projection: one well-shaped (T*B, D) @ (D, 3H) matmul
    # off the serial recurrence chain (fused with the pallas_call under jit).
    gx0 = (x_tbd.reshape(T * B, D) @ wih0_f + bi0_f).reshape(T, B, 3 * hidden_size)
    kernel = make_fused_model_kernel(num_layers, hidden_size)
    return pl.pallas_call(
        kernel,
        out_shape=jax.ShapeDtypeStruct((B, num_classes), jnp.float32),
    )(gx0, *flat)


# -----------------------------------------------------------------------------
# Pure-JAX reference (same inference semantics, unfused params) for correctness
# -----------------------------------------------------------------------------
def model_ref(x, params):
    x = x.astype(jnp.float32)
    xt = jnp.transpose(x, (2, 0, 1))
    for (wih, whh, bih, bhh) in params["gru_layers"]:
        T, B, _ = xt.shape
        H = whh.shape[1]
        h = jnp.zeros((B, H), jnp.float32)
        outs = []
        for t in range(T):
            xi = xt[t]
            i_r = xi @ wih[0] + bih[0]
            i_z = xi @ wih[1] + bih[1]
            i_n = xi @ wih[2] + bih[2]
            h_r = h @ whh[0] + bhh[0]
            h_z = h @ whh[1] + bhh[1]
            h_n = h @ whh[2] + bhh[2]
            r = jax.nn.sigmoid(i_r + h_r)
            z = jax.nn.sigmoid(i_z + h_z)
            n = jnp.tanh(i_n + r * h_n)
            h = (1.0 - z) * n + z * h
            outs.append(h)
        xt = jnp.stack(outs, axis=0)
    hl = xt[-1]
    (w1, b1, g1, be1, m1, v1, w2, b2, g2, be2, m2, v2, w3, b3) = params["head"]
    y = jnp.maximum(hl @ w1 + b1, 0.0)
    y = (y - m1) / jnp.sqrt(v1 + BN_EPS) * g1 + be1
    y = jnp.maximum(y @ w2 + b2, 0.0)
    y = (y - m2) / jnp.sqrt(v2 + BN_EPS) * g2 + be2
    logits = y @ w3 + b3
    return jax.nn.softmax(logits, axis=1)


# -----------------------------------------------------------------------------
# Deterministic parameter init (PyTorch-style uniform bounds; BN at defaults)
# -----------------------------------------------------------------------------
def init_params(key, input_size, hidden_size, num_layers, num_classes, hidden_units):
    keys = iter(jax.random.split(key, 64))

    def u(shape, bound):
        return jax.random.uniform(next(keys), shape, jnp.float32, -bound, bound)

    gru_layers = []
    gb = 1.0 / (hidden_size ** 0.5)
    for l in range(num_layers):
        D = input_size if l == 0 else hidden_size
        wih = u((3, D, hidden_size), gb)            # per-gate (r,z,n), pre-transposed
        whh = u((3, hidden_size, hidden_size), gb)
        bih = u((3, 1, hidden_size), gb)
        bhh = u((3, 1, hidden_size), gb)
        gru_layers.append((wih, whh, bih, bhh))

    U2 = hidden_units * 2
    b1b = 1.0 / (hidden_size ** 0.5)
    w1, b1 = u((hidden_size, U2), b1b), u((1, U2), b1b)
    g1, be1 = jnp.ones((1, U2), jnp.float32), jnp.zeros((1, U2), jnp.float32)
    m1, v1 = jnp.zeros((1, U2), jnp.float32), jnp.ones((1, U2), jnp.float32)

    b2b = 1.0 / (U2 ** 0.5)
    w2, b2 = u((U2, hidden_units), b2b), u((1, hidden_units), b2b)
    g2, be2 = jnp.ones((1, hidden_units), jnp.float32), jnp.zeros((1, hidden_units), jnp.float32)
    m2, v2 = jnp.zeros((1, hidden_units), jnp.float32), jnp.ones((1, hidden_units), jnp.float32)

    b3b = 1.0 / (hidden_units ** 0.5)
    w3, b3 = u((hidden_units, num_classes), b3b), u((1, num_classes), b3b)

    head = (w1, b1, g1, be1, m1, v1, w2, b2, g2, be2, m2, v2, w3, b3)
    return {"gru_layers": gru_layers, "head": head}


if __name__ == "__main__":
    # Model hyper-params
    input_size, hidden_size, num_layers = 4, 32, 2
    num_classes, hidden_units = 5, 16
    # Input: (B, input_size, seq_len) — forward transposes dims 1,2 itself.
    B, T = 2, 8

    root = jax.random.PRNGKey(0)
    k_param, k_x = jax.random.split(root)
    params = init_params(k_param, input_size, hidden_size, num_layers,
                         num_classes, hidden_units)
    x = jax.random.normal(k_x, (B, input_size, T), dtype=jnp.float32)

    out = gru_model_forward(x, params, num_layers, hidden_size, num_classes)
    out = jax.block_until_ready(out)

    ref = jax.block_until_ready(model_ref(x, params))
    assert out.shape == (B, num_classes), out.shape
    # Tolerance tightened vs. previous version (fp32 throughout, math-equivalent folding).
    np.testing.assert_allclose(np.asarray(out), np.asarray(ref), rtol=5e-3, atol=5e-4)
    # rows are softmax distributions
    np.testing.assert_allclose(np.asarray(out).sum(axis=1), np.ones(B), atol=1e-4)

    print("KERNEL_OK")
</pallas_src>

<mosaic_0001>
module attributes {stable_mosaic.version = 11 : i64} {
  func.func @kernel(%arg0: memref<8x2x96xf32, #tpu.memory_space<vmem>>, %arg1: memref<32x96xf32, #tpu.memory_space<vmem>>, %arg2: memref<1x32xf32, #tpu.memory_space<vmem>>, %arg3: memref<32x96xf32, #tpu.memory_space<vmem>>, %arg4: memref<1x96xf32, #tpu.memory_space<vmem>>, %arg5: memref<32x96xf32, #tpu.memory_space<vmem>>, %arg6: memref<1x32xf32, #tpu.memory_space<vmem>>, %arg7: memref<32x32xf32, #tpu.memory_space<vmem>>, %arg8: memref<1x32xf32, #tpu.memory_space<vmem>>, %arg9: memref<32x16xf32, #tpu.memory_space<vmem>>, %arg10: memref<1x16xf32, #tpu.memory_space<vmem>>, %arg11: memref<16x5xf32, #tpu.memory_space<vmem>>, %arg12: memref<1x5xf32, #tpu.memory_space<vmem>>, %arg13: memref<2x5xf32, #tpu.memory_space<vmem>>) attributes {dimension_semantics = [], scalar_prefetch = 0 : i64, scratch_operands = 0 : i64, tpu.core_type = #tpu.core_type<tc>} {
    %c0 = arith.constant 0 : index
    %c0_0 = arith.constant 0 : index
    %0 = vector.load %arg1[%c0, %c0_0] : memref<32x96xf32, #tpu.memory_space<vmem>>, vector<32x96xf32>
    %c0_1 = arith.constant 0 : index
    %c0_2 = arith.constant 0 : index
    %1 = vector.load %arg2[%c0_1, %c0_2] : memref<1x32xf32, #tpu.memory_space<vmem>>, vector<1x32xf32>
    %c0_3 = arith.constant 0 : index
    %c0_4 = arith.constant 0 : index
    %2 = vector.load %arg3[%c0_3, %c0_4] : memref<32x96xf32, #tpu.memory_space<vmem>>, vector<32x96xf32>
    %c0_5 = arith.constant 0 : index
    %c0_6 = arith.constant 0 : index
    %3 = vector.load %arg4[%c0_5, %c0_6] : memref<1x96xf32, #tpu.memory_space<vmem>>, vector<1x96xf32>
    %c0_7 = arith.constant 0 : index
    %c0_8 = arith.constant 0 : index
    %4 = vector.load %arg5[%c0_7, %c0_8] : memref<32x96xf32, #tpu.memory_space<vmem>>, vector<32x96xf32>
    %c0_9 = arith.constant 0 : index
    %c0_10 = arith.constant 0 : index
    %5 = vector.load %arg6[%c0_9, %c0_10] : memref<1x32xf32, #tpu.memory_space<vmem>>, vector<1x32xf32>
    %c0_11 = arith.constant 0 : index
    %c0_12 = arith.constant 0 : index
    %6 = vector.load %arg7[%c0_11, %c0_12] : memref<32x32xf32, #tpu.memory_space<vmem>>, vector<32x32xf32>
    %c0_13 = arith.constant 0 : index
    %c0_14 = arith.constant 0 : index
    %7 = vector.load %arg8[%c0_13, %c0_14] : memref<1x32xf32, #tpu.memory_space<vmem>>, vector<1x32xf32>
    %c0_15 = arith.constant 0 : index
    %c0_16 = arith.constant 0 : index
    %8 = vector.load %arg9[%c0_15, %c0_16] : memref<32x16xf32, #tpu.memory_space<vmem>>, vector<32x16xf32>
    %c0_17 = arith.constant 0 : index
    %c0_18 = arith.constant 0 : index
    %9 = vector.load %arg10[%c0_17, %c0_18] : memref<1x16xf32, #tpu.memory_space<vmem>>, vector<1x16xf32>
    %c0_19 = arith.constant 0 : index
    %c0_20 = arith.constant 0 : index
    %10 = vector.load %arg11[%c0_19, %c0_20] : memref<16x5xf32, #tpu.memory_space<vmem>>, vector<16x5xf32>
    %c0_21 = arith.constant 0 : index
    %c0_22 = arith.constant 0 : index
    %11 = vector.load %arg12[%c0_21, %c0_22] : memref<1x5xf32, #tpu.memory_space<vmem>>, vector<1x5xf32>
    %cst = arith.constant 0.000000e+00 : f32
    %12 = vector.broadcast %cst : f32 to vector<2x32xf32>
    %cst_23 = arith.constant 0.000000e+00 : f32
    %13 = vector.broadcast %cst_23 : f32 to vector<2x32xf32>
    %c0_i32 = arith.constant 0 : i32
    %14 = arith.index_cast %c0_i32 : i32 to index
    %c0_24 = arith.constant 0 : index
    %c0_25 = arith.constant 0 : index
    %15 = vector.load %arg0[%14, %c0_24, %c0_25] : memref<8x2x96xf32, #tpu.memory_space<vmem>>, vector<1x2x96xf32>
    %16 = vector.shape_cast %15 : vector<1x2x96xf32> to vector<2x96xf32>
    %cst_26 = arith.constant dense<0.000000e+00> : vector<2x96xf32>
    %17 = tpu.matmul %12, %0, %cst_26 {dimension_numbers = #tpu.dot_dimension_numbers<[1], [0], [0], [1], [0, 0, 1, 1], [], []>} : vector<2x32xf32>, vector<32x96xf32>, vector<2x96xf32> -> vector<2x96xf32>
    %18 = vector.extract_strided_slice %16 {offsets = [0, 0], sizes = [2, 32], strides = [1, 1]} : vector<2x96xf32> to vector<2x32xf32>
    %19 = vector.extract_strided_slice %17 {offsets = [0, 0], sizes = [2, 32], strides = [1, 1]} : vector<2x96xf32> to vector<2x32xf32>
    %20 = arith.addf %18, %19 : vector<2x32xf32>
    %21 = arith.negf %20 : vector<2x32xf32>
    %22 = math.exp %21 : vector<2x32xf32>
    %cst_27 = arith.constant 1.000000e+00 : f32
    %23 = vector.broadcast %cst_27 : f32 to vector<2x32xf32>
    %24 = arith.addf %23, %22 : vector<2x32xf32>
    %25 = arith.divf %23, %24 : vector<2x32xf32>
    %26 = vector.extract_strided_slice %16 {offsets = [0, 32], sizes = [2, 32], strides = [1, 1]} : vector<2x96xf32> to vector<2x32xf32>
    %27 = vector.extract_strided_slice %17 {offsets = [0, 32], sizes = [2, 32], strides = [1, 1]} : vector<2x96xf32> to vector<2x32xf32>
    %28 = arith.addf %26, %27 : vector<2x32xf32>
    %29 = arith.negf %28 : vector<2x32xf32>
    %30 = math.exp %29 : vector<2x32xf32>
    %cst_28 = arith.constant 1.000000e+00 : f32
    %31 = vector.broadcast %cst_28 : f32 to vector<2x32xf32>
    %32 = arith.addf %31, %30 : vector<2x32xf32>
    %33 = arith.divf %31, %32 : vector<2x32xf32>
    %34 = vector.extract_strided_slice %16 {offsets = [0, 64], sizes = [2, 32], strides = [1, 1]} : vector<2x96xf32> to vector<2x32xf32>
    %35 = vector.extract_strided_slice %17 {offsets = [0, 64], sizes = [2, 32], strides = [1, 1]} : vector<2x96xf32> to vector<2x32xf32>
    %36 = vector.broadcast %1 : vector<1x32xf32> to vector<2x32xf32>
    %37 = arith.addf %35, %36 : vector<2x32xf32>
    %38 = arith.mulf %25, %37 : vector<2x32xf32>
    %39 = arith.addf %34, %38 : vector<2x32xf32>
    %40 = math.tanh %39 : vector<2x32xf32>
    %cst_29 = arith.constant 1.000000e+00 : f32
    %41 = vector.broadcast %cst_29 : f32 to vector<2x32xf32>
    %42 = arith.subf %41, %33 : vector<2x32xf32>
    %43 = arith.mulf %42, %40 : vector<2x32xf32>
    %44 = arith.mulf %33, %12 : vector<2x32xf32>
    %45 = arith.addf %43, %44 : vector<2x32xf32>
    %cst_30 = arith.constant dense<0.000000e+00> : vector<2x96xf32>
    %46 = tpu.matmul %45, %2, %cst_30 {dimension_numbers = #tpu.dot_dimension_numbers<[1], [0], [0], [1], [0, 0, 1, 1], [], []>} : vector<2x32xf32>, vector<32x96xf32>, vector<2x96xf32> -> vector<2x96xf32>
    %47 = vector.broadcast %3 : vector<1x96xf32> to vector<2x96xf32>
    %48 = arith.addf %46, %47 : vector<2x96xf32>
    %cst_31 = arith.constant dense<0.000000e+00> : vector<2x96xf32>
    %49 = tpu.matmul %13, %4, %cst_31 {dimension_numbers = #tpu.dot_dimension_numbers<[1], [0], [0], [1], [0, 0, 1, 1], [], []>} : vector<2x32xf32>, vector<32x96xf32>, vector<2x96xf32> -> vector<2x96xf32>
    %50 = vector.extract_strided_slice %48 {offsets = [0, 0], sizes = [2, 32], strides = [1, 1]} : vector<2x96xf32> to vector<2x32xf32>
    %51 = vector.extract_strided_slice %49 {offsets = [0, 0], sizes = [2, 32], strides = [1, 1]} : vector<2x96xf32> to vector<2x32xf32>
    %52 = arith.addf %50, %51 : vector<2x32xf32>
    %53 = arith.negf %52 : vector<2x32xf32>
    %54 = math.exp %53 : vector<2x32xf32>
    %cst_32 = arith.constant 1.000000e+00 : f32
    %55 = vector.broadcast %cst_32 : f32 to vector<2x32xf32>
    %56 = arith.addf %55, %54 : vector<2x32xf32>
    %57 = arith.divf %55, %56 : vector<2x32xf32>
    %58 = vector.extract_strided_slice %48 {offsets = [0, 32], sizes = [2, 32], strides = [1, 1]} : vector<2x96xf32> to vector<2x32xf32>
    %59 = vector.extract_strided_slice %49 {offsets = [0, 32], sizes = [2, 32], strides = [1, 1]} : vector<2x96xf32> to vector<2x32xf32>
    %60 = arith.addf %58, %59 : vector<2x32xf32>
    %61 = arith.negf %60 : vector<2x32xf32>
    %62 = math.exp %61 : vector<2x32xf32>
    %cst_33 = arith.constant 1.000000e+00 : f32
    %63 = vector.broadcast %cst_33 : f32 to vector<2x32xf32>
    %64 = arith.addf %63, %62 : vector<2x32xf32>
    %65 = arith.divf %63, %64 : vector<2x32xf32>
    %66 = vector.extract_strided_slice %48 {offsets = [0, 64], sizes = [2, 32], strides = [1, 1]} : vector<2x96xf32> to vector<2x32xf32>
    %67 = vector.extract_strided_slice %49 {offsets = [0, 64], sizes = [2, 32], strides = [1, 1]} : vector<2x96xf32> to vector<2x32xf32>
    %68 = vector.broadcast %5 : vector<1x32xf32> to vector<2x32xf32>
    %69 = arith.addf %67, %68 : vector<2x32xf32>
    %70 = arith.mulf %57, %69 : vector<2x32xf32>
    %71 = arith.addf %66, %70 : vector<2x32xf32>
    %72 = math.tanh %71 : vector<2x32xf32>
    %cst_34 = arith.constant 1.000000e+00 : f32
    %73 = vector.broadcast %cst_34 : f32 to vector<2x32xf32>
    %74 = arith.subf %73, %65 : vector<2x32xf32>
    %75 = arith.mulf %74, %72 : vector<2x32xf32>
    %76 = arith.mulf %65, %13 : vector<2x32xf32>
    %77 = arith.addf %75, %76 : vector<2x32xf32>
    %c1_i32 = arith.constant 1 : i32
    %78 = arith.index_cast %c1_i32 : i32 to index
    %c0_35 = arith.constant 0 : index
    %c0_36 = arith.constant 0 : index
    %79 = vector.load %arg0[%78, %c0_35, %c0_36] : memref<8x2x96xf32, #tpu.memory_space<vmem>>, vector<1x2x96xf32>
    %80 = vector.shape_cast %79 : vector<1x2x96xf32> to vector<2x96xf32>
    %cst_37 = arith.constant dense<0.000000e+00> : vector<2x96xf32>
    %81 = tpu.matmul %45, %0, %cst_37 {dimension_numbers = #tpu.dot_dimension_numbers<[1], [0], [0], [1], [0, 0, 1, 1], [], []>} : vector<2x32xf32>, vector<32x96xf32>, vector<2x96xf32> -> vector<2x96xf32>
    %82 = vector.extract_strided_slice %80 {offsets = [0, 0], sizes = [2, 32], strides = [1, 1]} : vector<2x96xf32> to vector<2x32xf32>
    %83 = vector.extract_strided_slice %81 {offsets = [0, 0], sizes = [2, 32], strides = [1, 1]} : vector<2x96xf32> to vector<2x32xf32>
    %84 = arith.addf %82, %83 : vector<2x32xf32>
    %85 = arith.negf %84 : vector<2x32xf32>
    %86 = math.exp %85 : vector<2x32xf32>
    %cst_38 = arith.constant 1.000000e+00 : f32
    %87 = vector.broadcast %cst_38 : f32 to vector<2x32xf32>
    %88 = arith.addf %87, %86 : vector<2x32xf32>
    %89 = arith.divf %87, %88 : vector<2x32xf32>
    %90 = vector.extract_strided_slice %80 {offsets = [0, 32], sizes = [2, 32], strides = [1, 1]} : vector<2x96xf32> to vector<2x32xf32>
    %91 = vector.extract_strided_slice %81 {offsets = [0, 32], sizes = [2, 32], strides = [1, 1]} : vector<2x96xf32> to vector<2x32xf32>
    %92 = arith.addf %90, %91 : vector<2x32xf32>
    %93 = arith.negf %92 : vector<2x32xf32>
    %94 = math.exp %93 : vector<2x32xf32>
    %cst_39 = arith.constant 1.000000e+00 : f32
    %95 = vector.broadcast %cst_39 : f32 to vector<2x32xf32>
    %96 = arith.addf %95, %94 : vector<2x32xf32>
    %97 = arith.divf %95, %96 : vector<2x32xf32>
    %98 = vector.extract_strided_slice %80 {offsets = [0, 64], sizes = [2, 32], strides = [1, 1]} : vector<2x96xf32> to vector<2x32xf32>
    %99 = vector.extract_strided_slice %81 {offsets = [0, 64], sizes = [2, 32], strides = [1, 1]} : vector<2x96xf32> to vector<2x32xf32>
    %100 = vector.broadcast %1 : vector<1x32xf32> to vector<2x32xf32>
    %101 = arith.addf %99, %100 : vector<2x32xf32>
    %102 = arith.mulf %89, %101 : vector<2x32xf32>
    %103 = arith.addf %98, %102 : vector<2x32xf32>
    %104 = math.tanh %103 : vector<2x32xf32>
    %cst_40 = arith.constant 1.000000e+00 : f32
    %105 = vector.broadcast %cst_40 : f32 to vector<2x32xf32>
    %106 = arith.subf %105, %97 : vector<2x32xf32>
    %107 = arith.mulf %106, %104 : vector<2x32xf32>
    %108 = arith.mulf %97, %45 : vector<2x32xf32>
    %109 = arith.addf %107, %108 : vector<2x32xf32>
    %cst_41 = arith.constant dense<0.000000e+00> : vector<2x96xf32>
    %110 = tpu.matmul %109, %2, %cst_41 {dimension_numbers = #tpu.dot_dimension_numbers<[1], [0], [0], [1], [0, 0, 1, 1], [], []>} : vector<2x32xf32>, vector<32x96xf32>, vector<2x96xf32> -> vector<2x96xf32>
    %111 = vector.broadcast %3 : vector<1x96xf32> to vector<2x96xf32>
    %112 = arith.addf %110, %111 : vector<2x96xf32>
    %cst_42 = arith.constant dense<0.000000e+00> : vector<2x96xf32>
    %113 = tpu.matmul %77, %4, %cst_42 {dimension_numbers = #tpu.dot_dimension_numbers<[1], [0], [0], [1], [0, 0, 1, 1], [], []>} : vector<2x32xf32>, vector<32x96xf32>, vector<2x96xf32> -> vector<2x96xf32>
    %114 = vector.extract_strided_slice %112 {offsets = [0, 0], sizes = [2, 32], strides = [1, 1]} : vector<2x96xf32> to vector<2x32xf32>
    %115 = vector.extract_strided_slice %113 {offsets = [0, 0], sizes = [2, 32], strides = [1, 1]} : vector<2x96xf32> to vector<2x32xf32>
    %116 = arith.addf %114, %115 : vector<2x32xf32>
    %117 = arith.negf %116 : vector<2x32xf32>
    %118 = math.exp %117 : vector<2x32xf32>
    %cst_43 = arith.constant 1.000000e+00 : f32
    %119 = vector.broadcast %cst_43 : f32 to vector<2x32xf32>
    %120 = arith.addf %119, %118 : vector<2x32xf32>
    %121 = arith.divf %119, %120 : vector<2x32xf32>
    %122 = vector.extract_strided_slice %112 {offsets = [0, 32], sizes = [2, 32], strides = [1, 1]} : vector<2x96xf32> to vector<2x32xf32>
    %123 = vector.extract_strided_slice %113 {offsets = [0, 32], sizes = [2, 32], strides = [1, 1]} : vector<2x96xf32> to vector<2x32xf32>
    %124 = arith.addf %122, %123 : vector<2x32xf32>
    %125 = arith.negf %124 : vector<2x32xf32>
    %126 = math.exp %125 : vector<2x32xf32>
    %cst_44 = arith.constant 1.000000e+00 : f32
    %127 = vector.broadcast %cst_44 : f32 to vector<2x32xf32>
    %128 = arith.addf %127, %126 : vector<2x32xf32>
    %129 = arith.divf %127, %128 : vector<2x32xf32>
    %130 = vector.extract_strided_slice %112 {offsets = [0, 64], sizes = [2, 32], strides = [1, 1]} : vector<2x96xf32> to vector<2x32xf32>
    %131 = vector.extract_strided_slice %113 {offsets = [0, 64], sizes = [2, 32], strides = [1, 1]} : vector<2x96xf32> to vector<2x32xf32>
    %132 = vector.broadcast %5 : vector<1x32xf32> to vector<2x32xf32>
    %133 = arith.addf %131, %132 : vector<2x32xf32>
    %134 = arith.mulf %121, %133 : vector<2x32xf32>
    %135 = arith.addf %130, %134 : vector<2x32xf32>
    %136 = math.tanh %135 : vector<2x32xf32>
    %cst_45 = arith.constant 1.000000e+00 : f32
    %137 = vector.broadcast %cst_45 : f32 to vector<2x32xf32>
    %138 = arith.subf %137, %129 : vector<2x32xf32>
    %139 = arith.mulf %138, %136 : vector<2x32xf32>
    %140 = arith.mulf %129, %77 : vector<2x32xf32>
    %141 = arith.addf %139, %140 : vector<2x32xf32>
    %c2_i32 = arith.constant 2 : i32
    %142 = arith.index_cast %c2_i32 : i32 to index
    %c0_46 = arith.constant 0 : index
    %c0_47 = arith.constant 0 : index
    %143 = vector.load %arg0[%142, %c0_46, %c0_47] : memref<8x2x96xf32, #tpu.memory_space<vmem>>, vector<1x2x96xf32>
    %144 = vector.shape_cast %143 : vector<1x2x96xf32> to vector<2x96xf32>
    %cst_48 = arith.constant dense<0.000000e+00> : vector<2x96xf32>
    %145 = tpu.matmul %109, %0, %cst_48 {dimension_numbers = #tpu.dot_dimension_numbers<[1], [0], [0], [1], [0, 0, 1, 1], [], []>} : vector<2x32xf32>, vector<32x96xf32>, vector<2x96xf32> -> vector<2x96xf32>
    %146 = vector.extract_strided_slice %144 {offsets = [0, 0], sizes = [2, 32], strides = [1, 1]} : vector<2x96xf32> to vector<2x32xf32>
    %147 = vector.extract_strided_slice %145 {offsets = [0, 0], sizes = [2, 32], strides = [1, 1]} : vector<2x96xf32> to vector<2x32xf32>
    %148 = arith.addf %146, %147 : vector<2x32xf32>
    %149 = arith.negf %148 : vector<2x32xf32>
    %150 = math.exp %149 : vector<2x32xf32>
    %cst_49 = arith.constant 1.000000e+00 : f32
    %151 = vector.broadcast %cst_49 : f32 to vector<2x32xf32>
    %152 = arith.addf %151, %150 : vector<2x32xf32>
    %153 = arith.divf %151, %152 : vector<2x32xf32>
    %154 = vector.extract_strided_slice %144 {offsets = [0, 32], sizes = [2, 32], strides = [1, 1]} : vector<2x96xf32> to vector<2x32xf32>
    %155 = vector.extract_strided_slice %145 {offsets = [0, 32], sizes = [2, 32], strides = [1, 1]} : vector<2x96xf32> to vector<2x32xf32>
    %156 = arith.addf %154, %155 : vector<2x32xf32>
    %157 = arith.negf %156 : vector<2x32xf32>
    %158 = math.exp %157 : vector<2x32xf32>
    %cst_50 = arith.constant 1.000000e+00 : f32
    %159 = vector.broadcast %cst_50 : f32 to vector<2x32xf32>
    %160 = arith.addf %159, %158 : vector<2x32xf32>
    %161 = arith.divf %159, %160 : vector<2x32xf32>
    %162 = vector.extract_strided_slice %144 {offsets = [0, 64], sizes = [2, 32], strides = [1, 1]} : vector<2x96xf32> to vector<2x32xf32>
    %163 = vector.extract_strided_slice %145 {offsets = [0, 64], sizes = [2, 32], strides = [1, 1]} : vector<2x96xf32> to vector<2x32xf32>
    %164 = vector.broadcast %1 : vector<1x32xf32> to vector<2x32xf32>
    %165 = arith.addf %163, %164 : vector<2x32xf32>
    %166 = arith.mulf %153, %165 : vector<2x32xf32>
    %167 = arith.addf %162, %166 : vector<2x32xf32>
    %168 = math.tanh %167 : vector<2x32xf32>
    %cst_51 = arith.constant 1.000000e+00 : f32
    %169 = vector.broadcast %cst_51 : f32 to vector<2x32xf32>
    %170 = arith.subf %169, %161 : vector<2x32xf32>
    %171 = arith.mulf %170, %168 : vector<2x32xf32>
    %172 = arith.mulf %161, %109 : vector<2x32xf32>
    %173 = arith.addf %171, %172 : vector<2x32xf32>
    %cst_52 = arith.constant dense<0.000000e+00> : vector<2x96xf32>
    %174 = tpu.matmul %173, %2, %cst_52 {dimension_numbers = #tpu.dot_dimension_numbers<[1], [0], [0], [1], [0, 0, 1, 1], [], []>} : vector<2x32xf32>, vector<32x96xf32>, vector<2x96xf32> -> vector<2x96xf32>
    %175 = vector.broadcast %3 : vector<1x96xf32> to vector<2x96xf32>
    %176 = arith.addf %174, %175 : vector<2x96xf32>
    %cst_53 = arith.constant dense<0.000000e+00> : vector<2x96xf32>
    %177 = tpu.matmul %141, %4, %cst_53 {dimension_numbers = #tpu.dot_dimension_numbers<[1], [0], [0], [1], [0, 0, 1, 1], [], []>} : vector<2x32xf32>, vector<32x96xf32>, vector<2x96xf32> -> vector<2x96xf32>
    %178 = vector.extract_strided_slice %176 {offsets = [0, 0], sizes = [2, 32], strides = [1, 1]} : vector<2x96xf32> to vector<2x32xf32>
    %179 = vector.extract_strided_slice %177 {offsets = [0, 0], sizes = [2, 32], strides = [1, 1]} : vector<2x96xf32> to vector<2x32xf32>
    %180 = arith.addf %178, %179 : vector<2x32xf32>
    %181 = arith.negf %180 : vector<2x32xf32>
    %182 = math.exp %181 : vector<2x32xf32>
    %cst_54 = arith.constant 1.000000e+00 : f32
    %183 = vector.broadcast %cst_54 : f32 to vector<2x32xf32>
    %184 = arith.addf %183, %182 : vector<2x32xf32>
    %185 = arith.divf %183, %184 : vector<2x32xf32>
    %186 = vector.extract_strided_slice %176 {offsets = [0, 32], sizes = [2, 32], strides = [1, 1]} : vector<2x96xf32> to vector<2x32xf32>
    %187 = vector.extract_strided_slice %177 {offsets = [0, 32], sizes = [2, 32], strides = [1, 1]} : vector<2x96xf32> to vector<2x32xf32>
    %188 = arith.addf %186, %187 : vector<2x32xf32>
    %189 = arith.negf %188 : vector<2x32xf32>
    %190 = math.exp %189 : vector<2x32xf32>
    %cst_55 = arith.constant 1.000000e+00 : f32
    %191 = vector.broadcast %cst_55 : f32 to vector<2x32xf32>
    %192 = arith.addf %191, %190 : vector<2x32xf32>
    %193 = arith.divf %191, %192 : vector<2x32xf32>
    %194 = vector.extract_strided_slice %176 {offsets = [0, 64], sizes = [2, 32], strides = [1, 1]} : vector<2x96xf32> to vector<2x32xf32>
    %195 = vector.extract_strided_slice %177 {offsets = [0, 64], sizes = [2, 32], strides = [1, 1]} : vector<2x96xf32> to vector<2x32xf32>
    %196 = vector.broadcast %5 : vector<1x32xf32> to vector<2x32xf32>
    %197 = arith.addf %195, %196 : vector<2x32xf32>
    %198 = arith.mulf %185, %197 : vector<2x32xf32>
    %199 = arith.addf %194, %198 : vector<2x32xf32>
    %200 = math.tanh %199 : vector<2x32xf32>
    %cst_56 = arith.constant 1.000000e+00 : f32
    %201 = vector.broadcast %cst_56 : f32 to vector<2x32xf32>
    %202 = arith.subf %201, %193 : vector<2x32xf32>
    %203 = arith.mulf %202, %200 : vector<2x32xf32>
    %204 = arith.mulf %193, %141 : vector<2x32xf32>
    %205 = arith.addf %203, %204 : vector<2x32xf32>
    %c3_i32 = arith.constant 3 : i32
    %206 = arith.index_cast %c3_i32 : i32 to index
    %c0_57 = arith.constant 0 : index
    %c0_58 = arith.constant 0 : index
    %207 = vector.load %arg0[%206, %c0_57, %c0_58] : memref<8x2x96xf32, #tpu.memory_space<vmem>>, vector<1x2x96xf32>
    %208 = vector.shape_cast %207 : vector<1x2x96xf32> to vector<2x96xf32>
    %cst_59 = arith.constant dense<0.000000e+00> : vector<2x96xf32>
    %209 = tpu.matmul %173, %0, %cst_59 {dimension_numbers = #tpu.dot_dimension_numbers<[1], [0], [0], [1], [0, 0, 1, 1], [], []>} : vector<2x32xf32>, vector<32x96xf32>, vector<2x96xf32> -> vector<2x96xf32>
    %210 = vector.extract_strided_slice %208 {offsets = [0, 0], sizes = [2, 32], strides = [1, 1]} : vector<2x96xf32> to vector<2x32xf32>
    %211 = vector.extract_strided_slice %209 {offsets = [0, 0], sizes = [2, 32], strides = [1, 1]} : vector<2x96xf32> to vector<2x32xf32>
    %212 = arith.addf %210, %211 : vector<2x32xf32>
    %213 = arith.negf %212 : vector<2x32xf32>
    %214 = math.exp %213 : vector<2x32xf32>
    %cst_60 = arith.constant 1.000000e+00 : f32
    %215 = vector.broadcast %cst_60 : f32 to vector<2x32xf32>
    %216 = arith.addf %215, %214 : vector<2x32xf32>
    %217 = arith.divf %215, %216 : vector<2x32xf32>
    %218 = vector.extract_strided_slice %208 {offsets = [0, 32], sizes = [2, 32], strides = [1, 1]} : vector<2x96xf32> to vector<2x32xf32>
    %219 = vector.extract_strided_slice %209 {offsets = [0, 32], sizes = [2, 32], strides = [1, 1]} : vector<2x96xf32> to vector<2x32xf32>
    %220 = arith.addf %218, %219 : vector<2x32xf32>
    %221 = arith.negf %220 : vector<2x32xf32>
    %222 = math.exp %221 : vector<2x32xf32>
    %cst_61 = arith.constant 1.000000e+00 : f32
    %223 = vector.broadcast %cst_61 : f32 to vector<2x32xf32>
    %224 = arith.addf %223, %222 : vector<2x32xf32>
    %225 = arith.divf %223, %224 : vector<2x32xf32>
    %226 = vector.extract_strided_slice %208 {offsets = [0, 64], sizes = [2, 32], strides = [1, 1]} : vector<2x96xf32> to vector<2x32xf32>
    %227 = vector.extract_strided_slice %209 {offsets = [0, 64], sizes = [2, 32], strides = [1, 1]} : vector<2x96xf32> to vector<2x32xf32>
    %228 = vector.broadcast %1 : vector<1x32xf32> to vector<2x32xf32>
    %229 = arith.addf %227, %228 : vector<2x32xf32>
    %230 = arith.mulf %217, %229 : vector<2x32xf32>
    %231 = arith.addf %226, %230 : vector<2x32xf32>
    %232 = math.tanh %231 : vector<2x32xf32>
    %cst_62 = arith.constant 1.000000e+00 : f32
    %233 = vector.broadcast %cst_62 : f32 to vector<2x32xf32>
    %234 = arith.subf %233, %225 : vector<2x32xf32>
    %235 = arith.mulf %234, %232 : vector<2x32xf32>
    %236 = arith.mulf %225, %173 : vector<2x32xf32>
    %237 = arith.addf %235, %236 : vector<2x32xf32>
    %cst_63 = arith.constant dense<0.000000e+00> : vector<2x96xf32>
    %238 = tpu.matmul %237, %2, %cst_63 {dimension_numbers = #tpu.dot_dimension_numbers<[1], [0], [0], [1], [0, 0, 1, 1], [], []>} : vector<2x32xf32>, vector<32x96xf32>, vector<2x96xf32> -> vector<2x96xf32>
    %239 = vector.broadcast %3 : vector<1x96xf32> to vector<2x96xf32>
    %240 = arith.addf %238, %239 : vector<2x96xf32>
    %cst_64 = arith.constant dense<0.000000e+00> : vector<2x96xf32>
    %241 = tpu.matmul %205, %4, %cst_64 {dimension_numbers = #tpu.dot_dimension_numbers<[1], [0], [0], [1], [0, 0, 1, 1], [], []>} : vector<2x32xf32>, vector<32x96xf32>, vector<2x96xf32> -> vector<2x96xf32>
    %242 = vector.extract_strided_slice %240 {offsets = [0, 0], sizes = [2, 32], strides = [1, 1]} : vector<2x96xf32> to vector<2x32xf32>
    %243 = vector.extract_strided_slice %241 {offsets = [0, 0], sizes = [2, 32], strides = [1, 1]} : vector<2x96xf32> to vector<2x32xf32>
    %244 = arith.addf %242, %243 : vector<2x32xf32>
    %245 = arith.negf %244 : vector<2x32xf32>
    %246 = math.exp %245 : vector<2x32xf32>
    %cst_65 = arith.constant 1.000000e+00 : f32
    %247 = vector.broadcast %cst_65 : f32 to vector<2x32xf32>
    %248 = arith.addf %247, %246 : vector<2x32xf32>
    %249 = arith.divf %247, %248 : vector<2x32xf32>
    %250 = vector.extract_strided_slice %240 {offsets = [0, 32], sizes = [2, 32], strides = [1, 1]} : vector<2x96xf32> to vector<2x32xf32>
    %251 = vector.extract_strided_slice %241 {offsets = [0, 32], sizes = [2, 32], strides = [1, 1]} : vector<2x96xf32> to vector<2x32xf32>
    %252 = arith.addf %250, %251 : vector<2x32xf32>
    %253 = arith.negf %252 : vector<2x32xf32>
    %254 = math.exp %253 : vector<2x32xf32>
    %cst_66 = arith.constant 1.000000e+00 : f32
    %255 = vector.broadcast %cst_66 : f32 to vector<2x32xf32>
    %256 = arith.addf %255, %254 : vector<2x32xf32>
    %257 = arith.divf %255, %256 : vector<2x32xf32>
    %258 = vector.extract_strided_slice %240 {offsets = [0, 64], sizes = [2, 32], strides = [1, 1]} : vector<2x96xf32> to vector<2x32xf32>
    %259 = vector.extract_strided_slice %241 {offsets = [0, 64], sizes = [2, 32], strides = [1, 1]} : vector<2x96xf32> to vector<2x32xf32>
    %260 = vector.broadcast %5 : vector<1x32xf32> to vector<2x32xf32>
    %261 = arith.addf %259, %260 : vector<2x32xf32>
    %262 = arith.mulf %249, %261 : vector<2x32xf32>
    %263 = arith.addf %258, %262 : vector<2x32xf32>
    %264 = math.tanh %263 : vector<2x32xf32>
    %cst_67 = arith.constant 1.000000e+00 : f32
    %265 = vector.broadcast %cst_67 : f32 to vector<2x32xf32>
    %266 = arith.subf %265, %257 : vector<2x32xf32>
    %267 = arith.mulf %266, %264 : vector<2x32xf32>
    %268 = arith.mulf %257, %205 : vector<2x32xf32>
    %269 = arith.addf %267, %268 : vector<2x32xf32>
    %c4_i32 = arith.constant 4 : i32
    %270 = arith.index_cast %c4_i32 : i32 to index
    %c0_68 = arith.constant 0 : index
    %c0_69 = arith.constant 0 : index
    %271 = vector.load %arg0[%270, %c0_68, %c0_69] : memref<8x2x96xf32, #tpu.memory_space<vmem>>, vector<1x2x96xf32>
    %272 = vector.shape_cast %271 : vector<1x2x96xf32> to vector<2x96xf32>
    %cst_70 = arith.constant dense<0.000000e+00> : vector<2x96xf32>
    %273 = tpu.matmul %237, %0, %cst_70 {dimension_numbers = #tpu.dot_dimension_numbers<[1], [0], [0], [1], [0, 0, 1, 1], [], []>} : vector<2x32xf32>, vector<32x96xf32>, vector<2x96xf32> -> vector<2x96xf32>
    %274 = vector.extract_strided_slice %272 {offsets = [0, 0], sizes = [2, 32], strides = [1, 1]} : vector<2x96xf32> to vector<2x32xf32>
    %275 = vector.extract_strided_slice %273 {offsets = [0, 0], sizes = [2, 32], strides = [1, 1]} : vector<2x96xf32> to vector<2x32xf32>
    %276 = arith.addf %274, %275 : vector<2x32xf32>
    %277 = arith.negf %276 : vector<2x32xf32>
    %278 = math.exp %277 : vector<2x32xf32>
    %cst_71 = arith.constant 1.000000e+00 : f32
    %279 = vector.broadcast %cst_71 : f32 to vector<2x32xf32>
    %280 = arith.addf %279, %278 : vector<2x32xf32>
    %281 = arith.divf %279, %280 : vector<2x32xf32>
    %282 = vector.extract_strided_slice %272 {offsets = [0, 32], sizes = [2, 32], strides = [1, 1]} : vector<2x96xf32> to vector<2x32xf32>
    %283 = vector.extract_strided_slice %273 {offsets = [0, 32], sizes = [2, 32], strides = [1, 1]} : vector<2x96xf32> to vector<2x32xf32>
    %284 = arith.addf %282, %283 : vector<2x32xf32>
    %285 = arith.negf %284 : vector<2x32xf32>
    %286 = math.exp %285 : vector<2x32xf32>
    %cst_72 = arith.constant 1.000000e+00 : f32
    %287 = vector.broadcast %cst_72 : f32 to vector<2x32xf32>
    %288 = arith.addf %287, %286 : vector<2x32xf32>
    %289 = arith.divf %287, %288 : vector<2x32xf32>
    %290 = vector.extract_strided_slice %272 {offsets = [0, 64], sizes = [2, 32], strides = [1, 1]} : vector<2x96xf32> to vector<2x32xf32>
    %291 = vector.extract_strided_slice %273 {offsets = [0, 64], sizes = [2, 32], strides = [1, 1]} : vector<2x96xf32> to vector<2x32xf32>
    %292 = vector.broadcast %1 : vector<1x32xf32> to vector<2x32xf32>
    %293 = arith.addf %291, %292 : vector<2x32xf32>
    %294 = arith.mulf %281, %293 : vector<2x32xf32>
    %295 = arith.addf %290, %294 : vector<2x32xf32>
    %296 = math.tanh %295 : vector<2x32xf32>
    %cst_73 = arith.constant 1.000000e+00 : f32
    %297 = vector.broadcast %cst_73 : f32 to vector<2x32xf32>
    %298 = arith.subf %297, %289 : vector<2x32xf32>
    %299 = arith.mulf %298, %296 : vector<2x32xf32>
    %300 = arith.mulf %289, %237 : vector<2x32xf32>
    %301 = arith.addf %299, %300 : vector<2x32xf32>
    %cst_74 = arith.constant dense<0.000000e+00> : vector<2x96xf32>
    %302 = tpu.matmul %301, %2, %cst_74 {dimension_numbers = #tpu.dot_dimension_numbers<[1], [0], [0], [1], [0, 0, 1, 1], [], []>} : vector<2x32xf32>, vector<32x96xf32>, vector<2x96xf32> -> vector<2x96xf32>
    %303 = vector.broadcast %3 : vector<1x96xf32> to vector<2x96xf32>
    %304 = arith.addf %302, %303 : vector<2x96xf32>
    %cst_75 = arith.constant dense<0.000000e+00> : vector<2x96xf32>
    %305 = tpu.matmul %269, %4, %cst_75 {dimension_numbers = #tpu.dot_dimension_numbers<[1], [0], [0], [1], [0, 0, 1, 1], [], []>} : vector<2x32xf32>, vector<32x96xf32>, vector<2x96xf32> -> vector<2x96xf32>
    %306 = vector.extract_strided_slice %304 {offsets = [0, 0], sizes = [2, 32], strides = [1, 1]} : vector<2x96xf32> to vector<2x32xf32>
    %307 = vector.extract_strided_slice %305 {offsets = [0, 0], sizes = [2, 32], strides = [1, 1]} : vector<2x96xf32> to vector<2x32xf32>
    %308 = arith.addf %306, %307 : vector<2x32xf32>
    %309 = arith.negf %308 : vector<2x32xf32>
    %310 = math.exp %309 : vector<2x32xf32>
    %cst_76 = arith.constant 1.000000e+00 : f32
    %311 = vector.broadcast %cst_76 : f32 to vector<2x32xf32>
    %312 = arith.addf %311, %310 : vector<2x32xf32>
    %313 = arith.divf %311, %312 : vector<2x32xf32>
    %314 = vector.extract_strided_slice %304 {offsets = [0, 32], sizes = [2, 32], strides = [1, 1]} : vector<2x96xf32> to vector<2x32xf32>
    %315 = vector.extract_strided_slice %305 {offsets = [0, 32], sizes = [2, 32], strides = [1, 1]} : vector<2x96xf32> to vector<2x32xf32>
    %316 = arith.addf %314, %315 : vector<2x32xf32>
    %317 = arith.negf %316 : vector<2x32xf32>
    %318 = math.exp %317 : vector<2x32xf32>
    %cst_77 = arith.constant 1.000000e+00 : f32
    %319 = vector.broadcast %cst_77 : f32 to vector<2x32xf32>
    %320 = arith.addf %319, %318 : vector<2x32xf32>
    %321 = arith.divf %319, %320 : vector<2x32xf32>
    %322 = vector.extract_strided_slice %304 {offsets = [0, 64], sizes = [2, 32], strides = [1, 1]} : vector<2x96xf32> to vector<2x32xf32>
    %323 = vector.extract_strided_slice %305 {offsets = [0, 64], sizes = [2, 32], strides = [1, 1]} : vector<2x96xf32> to vector<2x32xf32>
    %324 = vector.broadcast %5 : vector<1x32xf32> to vector<2x32xf32>
    %325 = arith.addf %323, %324 : vector<2x32xf32>
    %326 = arith.mulf %313, %325 : vector<2x32xf32>
    %327 = arith.addf %322, %326 : vector<2x32xf32>
    %328 = math.tanh %327 : vector<2x32xf32>
    %cst_78 = arith.constant 1.000000e+00 : f32
    %329 = vector.broadcast %cst_78 : f32 to vector<2x32xf32>
    %330 = arith.subf %329, %321 : vector<2x32xf32>
    %331 = arith.mulf %330, %328 : vector<2x32xf32>
    %332 = arith.mulf %321, %269 : vector<2x32xf32>
    %333 = arith.addf %331, %332 : vector<2x32xf32>
    %c5_i32 = arith.constant 5 : i32
    %334 = arith.index_cast %c5_i32 : i32 to index
    %c0_79 = arith.constant 0 : index
    %c0_80 = arith.constant 0 : index
    %335 = vector.load %arg0[%334, %c0_79, %c0_80] : memref<8x2x96xf32, #tpu.memory_space<vmem>>, vector<1x2x96xf32>
    %336 = vector.shape_cast %335 : vector<1x2x96xf32> to vector<2x96xf32>
    %cst_81 = arith.constant dense<0.000000e+00> : vector<2x96xf32>
    %337 = tpu.matmul %301, %0, %cst_81 {dimension_numbers = #tpu.dot_dimension_numbers<[1], [0], [0], [1], [0, 0, 1, 1], [], []>} : vector<2x32xf32>, vector<32x96xf32>, vector<2x96xf32> -> vector<2x96xf32>
    %338 = vector.extract_strided_slice %336 {offsets = [0, 0], sizes = [2, 32], strides = [1, 1]} : vector<2x96xf32> to vector<2x32xf32>
    %339 = vector.extract_strided_slice %337 {offsets = [0, 0], sizes = [2, 32], strides = [1, 1]} : vector<2x96xf32> to vector<2x32xf32>
    %340 = arith.addf %338, %339 : vector<2x32xf32>
    %341 = arith.negf %340 : vector<2x32xf32>
    %342 = math.exp %341 : vector<2x32xf32>
    %cst_82 = arith.constant 1.000000e+00 : f32
    %343 = vector.broadcast %cst_82 : f32 to vector<2x32xf32>
    %344 = arith.addf %343, %342 : vector<2x32xf32>
    %345 = arith.divf %343, %344 : vector<2x32xf32>
    %346 = vector.extract_strided_slice %336 {offsets = [0, 32], sizes = [2, 32], strides = [1, 1]} : vector<2x96xf32> to vector<2x32xf32>
    %347 = vector.extract_strided_slice %337 {offsets = [0, 32], sizes = [2, 32], strides = [1, 1]} : vector<2x96xf32> to vector<2x32xf32>
    %348 = arith.addf %346, %347 : vector<2x32xf32>
    %349 = arith.negf %348 : vector<2x32xf32>
    %350 = math.exp %349 : vector<2x32xf32>
    %cst_83 = arith.constant 1.000000e+00 : f32
    %351 = vector.broadcast %cst_83 : f32 to vector<2x32xf32>
    %352 = arith.addf %351, %350 : vector<2x32xf32>
    %353 = arith.divf %351, %352 : vector<2x32xf32>
    %354 = vector.extract_strided_slice %336 {offsets = [0, 64], sizes = [2, 32], strides = [1, 1]} : vector<2x96xf32> to vector<2x32xf32>
    %355 = vector.extract_strided_slice %337 {offsets = [0, 64], sizes = [2, 32], strides = [1, 1]} : vector<2x96xf32> to vector<2x32xf32>
    %356 = vector.broadcast %1 : vector<1x32xf32> to vector<2x32xf32>
    %357 = arith.addf %355, %356 : vector<2x32xf32>
    %358 = arith.mulf %345, %357 : vector<2x32xf32>
    %359 = arith.addf %354, %358 : vector<2x32xf32>
    %360 = math.tanh %359 : vector<2x32xf32>
    %cst_84 = arith.constant 1.000000e+00 : f32
    %361 = vector.broadcast %cst_84 : f32 to vector<2x32xf32>
    %362 = arith.subf %361, %353 : vector<2x32xf32>
    %363 = arith.mulf %362, %360 : vector<2x32xf32>
    %364 = arith.mulf %353, %301 : vector<2x32xf32>
    %365 = arith.addf %363, %364 : vector<2x32xf32>
    %cst_85 = arith.constant dense<0.000000e+00> : vector<2x96xf32>
    %366 = tpu.matmul %365, %2, %cst_85 {dimension_numbers = #tpu.dot_dimension_numbers<[1], [0], [0], [1], [0, 0, 1, 1], [], []>} : vector<2x32xf32>, vector<32x96xf32>, vector<2x96xf32> -> vector<2x96xf32>
    %367 = vector.broadcast %3 : vector<1x96xf32> to vector<2x96xf32>
    %368 = arith.addf %366, %367 : vector<2x96xf32>
    %cst_86 = arith.constant dense<0.000000e+00> : vector<2x96xf32>
    %369 = tpu.matmul %333, %4, %cst_86 {dimension_numbers = #tpu.dot_dimension_numbers<[1], [0], [0], [1], [0, 0, 1, 1], [], []>} : vector<2x32xf32>, vector<32x96xf32>, vector<2x96xf32> -> vector<2x96xf32>
    %370 = vector.extract_strided_slice %368 {offsets = [0, 0], sizes = [2, 32], strides = [1, 1]} : vector<2x96xf32> to vector<2x32xf32>
    %371 = vector.extract_strided_slice %369 {offsets = [0, 0], sizes = [2, 32], strides = [1, 1]} : vector<2x96xf32> to vector<2x32xf32>
    %372 = arith.addf %370, %371 : vector<2x32xf32>
    %373 = arith.negf %372 : vector<2x32xf32>
    %374 = math.exp %373 : vector<2x32xf32>
    %cst_87 = arith.constant 1.000000e+00 : f32
    %375 = vector.broadcast %cst_87 : f32 to vector<2x32xf32>
    %376 = arith.addf %375, %374 : vector<2x32xf32>
    %377 = arith.divf %375, %376 : vector<2x32xf32>
    %378 = vector.extract_strided_slice %368 {offsets = [0, 32], sizes = [2, 32], strides = [1, 1]} : vector<2x96xf32> to vector<2x32xf32>
    %379 = vector.extract_strided_slice %369 {offsets = [0, 32], sizes = [2, 32], strides = [1, 1]} : vector<2x96xf32> to vector<2x32xf32>
    %380 = arith.addf %378, %379 : vector<2x32xf32>
    %381 = arith.negf %380 : vector<2x32xf32>
    %382 = math.exp %381 : vector<2x32xf32>
    %cst_88 = arith.constant 1.000000e+00 : f32
    %383 = vector.broadcast %cst_88 : f32 to vector<2x32xf32>
    %384 = arith.addf %383, %382 : vector<2x32xf32>
    %385 = arith.divf %383, %384 : vector<2x32xf32>
    %386 = vector.extract_strided_slice %368 {offsets = [0, 64], sizes = [2, 32], strides = [1, 1]} : vector<2x96xf32> to vector<2x32xf32>
    %387 = vector.extract_strided_slice %369 {offsets = [0, 64], sizes = [2, 32], strides = [1, 1]} : vector<2x96xf32> to vector<2x32xf32>
    %388 = vector.broadcast %5 : vector<1x32xf32> to vector<2x32xf32>
    %389 = arith.addf %387, %388 : vector<2x32xf32>
    %390 = arith.mulf %377, %389 : vector<2x32xf32>
    %391 = arith.addf %386, %390 : vector<2x32xf32>
    %392 = math.tanh %391 : vector<2x32xf32>
    %cst_89 = arith.constant 1.000000e+00 : f32
    %393 = vector.broadcast %cst_89 : f32 to vector<2x32xf32>
    %394 = arith.subf %393, %385 : vector<2x32xf32>
    %395 = arith.mulf %394, %392 : vector<2x32xf32>
    %396 = arith.mulf %385, %333 : vector<2x32xf32>
    %397 = arith.addf %395, %396 : vector<2x32xf32>
    %c6_i32 = arith.constant 6 : i32
    %398 = arith.index_cast %c6_i32 : i32 to index
    %c0_90 = arith.constant 0 : index
    %c0_91 = arith.constant 0 : index
    %399 = vector.load %arg0[%398, %c0_90, %c0_91] : memref<8x2x96xf32, #tpu.memory_space<vmem>>, vector<1x2x96xf32>
    %400 = vector.shape_cast %399 : vector<1x2x96xf32> to vector<2x96xf32>
    %cst_92 = arith.constant dense<0.000000e+00> : vector<2x96xf32>
    %401 = tpu.matmul %365, %0, %cst_92 {dimension_numbers = #tpu.dot_dimension_numbers<[1], [0], [0], [1], [0, 0, 1, 1], [], []>} : vector<2x32xf32>, vector<32x96xf32>, vector<2x96xf32> -> vector<2x96xf32>
    %402 = vector.extract_strided_slice %400 {offsets = [0, 0], sizes = [2, 32], strides = [1, 1]} : vector<2x96xf32> to vector<2x32xf32>
    %403 = vector.extract_strided_slice %401 {offsets = [0, 0], sizes = [2, 32], strides = [1, 1]} : vector<2x96xf32> to vector<2x32xf32>
    %404 = arith.addf %402, %403 : vector<2x32xf32>
    %405 = arith.negf %404 : vector<2x32xf32>
    %406 = math.exp %405 : vector<2x32xf32>
    %cst_93 = arith.constant 1.000000e+00 : f32
    %407 = vector.broadcast %cst_93 : f32 to vector<2x32xf32>
    %408 = arith.addf %407, %406 : vector<2x32xf32>
    %409 = arith.divf %407, %408 : vector<2x32xf32>
    %410 = vector.extract_strided_slice %400 {offsets = [0, 32], sizes = [2, 32], strides = [1, 1]} : vector<2x96xf32> to vector<2x32xf32>
    %411 = vector.extract_strided_slice %401 {offsets = [0, 32], sizes = [2, 32], strides = [1, 1]} : vector<2x96xf32> to vector<2x32xf32>
    %412 = arith.addf %410, %411 : vector<2x32xf32>
    %413 = arith.negf %412 : vector<2x32xf32>
    %414 = math.exp %413 : vector<2x32xf32>
    %cst_94 = arith.constant 1.000000e+00 : f32
    %415 = vector.broadcast %cst_94 : f32 to vector<2x32xf32>
    %416 = arith.addf %415, %414 : vector<2x32xf32>
    %417 = arith.divf %415, %416 : vector<2x32xf32>
    %418 = vector.extract_strided_slice %400 {offsets = [0, 64], sizes = [2, 32], strides = [1, 1]} : vector<2x96xf32> to vector<2x32xf32>
    %419 = vector.extract_strided_slice %401 {offsets = [0, 64], sizes = [2, 32], strides = [1, 1]} : vector<2x96xf32> to vector<2x32xf32>
    %420 = vector.broadcast %1 : vector<1x32xf32> to vector<2x32xf32>
    %421 = arith.addf %419, %420 : vector<2x32xf32>
    %422 = arith.mulf %409, %421 : vector<2x32xf32>
    %423 = arith.addf %418, %422 : vector<2x32xf32>
    %424 = math.tanh %423 : vector<2x32xf32>
    %cst_95 = arith.constant 1.000000e+00 : f32
    %425 = vector.broadcast %cst_95 : f32 to vector<2x32xf32>
    %426 = arith.subf %425, %417 : vector<2x32xf32>
    %427 = arith.mulf %426, %424 : vector<2x32xf32>
    %428 = arith.mulf %417, %365 : vector<2x32xf32>
    %429 = arith.addf %427, %428 : vector<2x32xf32>
    %cst_96 = arith.constant dense<0.000000e+00> : vector<2x96xf32>
    %430 = tpu.matmul %429, %2, %cst_96 {dimension_numbers = #tpu.dot_dimension_numbers<[1], [0], [0], [1], [0, 0, 1, 1], [], []>} : vector<2x32xf32>, vector<32x96xf32>, vector<2x96xf32> -> vector<2x96xf32>
    %431 = vector.broadcast %3 : vector<1x96xf32> to vector<2x96xf32>
    %432 = arith.addf %430, %431 : vector<2x96xf32>
    %cst_97 = arith.constant dense<0.000000e+00> : vector<2x96xf32>
    %433 = tpu.matmul %397, %4, %cst_97 {dimension_numbers = #tpu.dot_dimension_numbers<[1], [0], [0], [1], [0, 0, 1, 1], [], []>} : vector<2x32xf32>, vector<32x96xf32>, vector<2x96xf32> -> vector<2x96xf32>
    %434 = vector.extract_strided_slice %432 {offsets = [0, 0], sizes = [2, 32], strides = [1, 1]} : vector<2x96xf32> to vector<2x32xf32>
    %435 = vector.extract_strided_slice %433 {offsets = [0, 0], sizes = [2, 32], strides = [1, 1]} : vector<2x96xf32> to vector<2x32xf32>
    %436 = arith.addf %434, %435 : vector<2x32xf32>
    %437 = arith.negf %436 : vector<2x32xf32>
    %438 = math.exp %437 : vector<2x32xf32>
    %cst_98 = arith.constant 1.000000e+00 : f32
    %439 = vector.broadcast %cst_98 : f32 to vector<2x32xf32>
    %440 = arith.addf %439, %438 : vector<2x32xf32>
    %441 = arith.divf %439, %440 : vector<2x32xf32>
    %442 = vector.extract_strided_slice %432 {offsets = [0, 32], sizes = [2, 32], strides = [1, 1]} : vector<2x96xf32> to vector<2x32xf32>
    %443 = vector.extract_strided_slice %433 {offsets = [0, 32], sizes = [2, 32], strides = [1, 1]} : vector<2x96xf32> to vector<2x32xf32>
    %444 = arith.addf %442, %443 : vector<2x32xf32>
    %445 = arith.negf %444 : vector<2x32xf32>
    %446 = math.exp %445 : vector<2x32xf32>
    %cst_99 = arith.constant 1.000000e+00 : f32
    %447 = vector.broadcast %cst_99 : f32 to vector<2x32xf32>
    %448 = arith.addf %447, %446 : vector<2x32xf32>
    %449 = arith.divf %447, %448 : vector<2x32xf32>
    %450 = vector.extract_strided_slice %432 {offsets = [0, 64], sizes = [2, 32], strides = [1, 1]} : vector<2x96xf32> to vector<2x32xf32>
    %451 = vector.extract_strided_slice %433 {offsets = [0, 64], sizes = [2, 32], strides = [1, 1]} : vector<2x96xf32> to vector<2x32xf32>
    %452 = vector.broadcast %5 : vector<1x32xf32> to vector<2x32xf32>
    %453 = arith.addf %451, %452 : vector<2x32xf32>
    %454 = arith.mulf %441, %453 : vector<2x32xf32>
    %455 = arith.addf %450, %454 : vector<2x32xf32>
    %456 = math.tanh %455 : vector<2x32xf32>
    %cst_100 = arith.constant 1.000000e+00 : f32
    %457 = vector.broadcast %cst_100 : f32 to vector<2x32xf32>
    %458 = arith.subf %457, %449 : vector<2x32xf32>
    %459 = arith.mulf %458, %456 : vector<2x32xf32>
    %460 = arith.mulf %449, %397 : vector<2x32xf32>
    %461 = arith.addf %459, %460 : vector<2x32xf32>
    %c7_i32 = arith.constant 7 : i32
    %462 = arith.index_cast %c7_i32 : i32 to index
    %c0_101 = arith.constant 0 : index
    %c0_102 = arith.constant 0 : index
    %463 = vector.load %arg0[%462, %c0_101, %c0_102] : memref<8x2x96xf32, #tpu.memory_space<vmem>>, vector<1x2x96xf32>
    %464 = vector.shape_cast %463 : vector<1x2x96xf32> to vector<2x96xf32>
    %cst_103 = arith.constant dense<0.000000e+00> : vector<2x96xf32>
    %465 = tpu.matmul %429, %0, %cst_103 {dimension_numbers = #tpu.dot_dimension_numbers<[1], [0], [0], [1], [0, 0, 1, 1], [], []>} : vector<2x32xf32>, vector<32x96xf32>, vector<2x96xf32> -> vector<2x96xf32>
    %466 = vector.extract_strided_slice %464 {offsets = [0, 0], sizes = [2, 32], strides = [1, 1]} : vector<2x96xf32> to vector<2x32xf32>
    %467 = vector.extract_strided_slice %465 {offsets = [0, 0], sizes = [2, 32], strides = [1, 1]} : vector<2x96xf32> to vector<2x32xf32>
    %468 = arith.addf %466, %467 : vector<2x32xf32>
    %469 = arith.negf %468 : vector<2x32xf32>
    %470 = math.exp %469 : vector<2x32xf32>
    %cst_104 = arith.constant 1.000000e+00 : f32
    %471 = vector.broadcast %cst_104 : f32 to vector<2x32xf32>
    %472 = arith.addf %471, %470 : vector<2x32xf32>
    %473 = arith.divf %471, %472 : vector<2x32xf32>
    %474 = vector.extract_strided_slice %464 {offsets = [0, 32], sizes = [2, 32], strides = [1, 1]} : vector<2x96xf32> to vector<2x32xf32>
    %475 = vector.extract_strided_slice %465 {offsets = [0, 32], sizes = [2, 32], strides = [1, 1]} : vector<2x96xf32> to vector<2x32xf32>
    %476 = arith.addf %474, %475 : vector<2x32xf32>
    %477 = arith.negf %476 : vector<2x32xf32>
    %478 = math.exp %477 : vector<2x32xf32>
    %cst_105 = arith.constant 1.000000e+00 : f32
    %479 = vector.broadcast %cst_105 : f32 to vector<2x32xf32>
    %480 = arith.addf %479, %478 : vector<2x32xf32>
    %481 = arith.divf %479, %480 : vector<2x32xf32>
    %482 = vector.extract_strided_slice %464 {offsets = [0, 64], sizes = [2, 32], strides = [1, 1]} : vector<2x96xf32> to vector<2x32xf32>
    %483 = vector.extract_strided_slice %465 {offsets = [0, 64], sizes = [2, 32], strides = [1, 1]} : vector<2x96xf32> to vector<2x32xf32>
    %484 = vector.broadcast %1 : vector<1x32xf32> to vector<2x32xf32>
    %485 = arith.addf %483, %484 : vector<2x32xf32>
    %486 = arith.mulf %473, %485 : vector<2x32xf32>
    %487 = arith.addf %482, %486 : vector<2x32xf32>
    %488 = math.tanh %487 : vector<2x32xf32>
    %cst_106 = arith.constant 1.000000e+00 : f32
    %489 = vector.broadcast %cst_106 : f32 to vector<2x32xf32>
    %490 = arith.subf %489, %481 : vector<2x32xf32>
    %491 = arith.mulf %490, %488 : vector<2x32xf32>
    %492 = arith.mulf %481, %429 : vector<2x32xf32>
    %493 = arith.addf %491, %492 : vector<2x32xf32>
    %cst_107 = arith.constant dense<0.000000e+00> : vector<2x96xf32>
    %494 = tpu.matmul %493, %2, %cst_107 {dimension_numbers = #tpu.dot_dimension_numbers<[1], [0], [0], [1], [0, 0, 1, 1], [], []>} : vector<2x32xf32>, vector<32x96xf32>, vector<2x96xf32> -> vector<2x96xf32>
    %495 = vector.broadcast %3 : vector<1x96xf32> to vector<2x96xf32>
    %496 = arith.addf %494, %495 : vector<2x96xf32>
    %cst_108 = arith.constant dense<0.000000e+00> : vector<2x96xf32>
    %497 = tpu.matmul %461, %4, %cst_108 {dimension_numbers = #tpu.dot_dimension_numbers<[1], [0], [0], [1], [0, 0, 1, 1], [], []>} : vector<2x32xf32>, vector<32x96xf32>, vector<2x96xf32> -> vector<2x96xf32>
    %498 = vector.extract_strided_slice %496 {offsets = [0, 0], sizes = [2, 32], strides = [1, 1]} : vector<2x96xf32> to vector<2x32xf32>
    %499 = vector.extract_strided_slice %497 {offsets = [0, 0], sizes = [2, 32], strides = [1, 1]} : vector<2x96xf32> to vector<2x32xf32>
    %500 = arith.addf %498, %499 : vector<2x32xf32>
    %501 = arith.negf %500 : vector<2x32xf32>
    %502 = math.exp %501 : vector<2x32xf32>
    %cst_109 = arith.constant 1.000000e+00 : f32
    %503 = vector.broadcast %cst_109 : f32 to vector<2x32xf32>
    %504 = arith.addf %503, %502 : vector<2x32xf32>
    %505 = arith.divf %503, %504 : vector<2x32xf32>
    %506 = vector.extract_strided_slice %496 {offsets = [0, 32], sizes = [2, 32], strides = [1, 1]} : vector<2x96xf32> to vector<2x32xf32>
    %507 = vector.extract_strided_slice %497 {offsets = [0, 32], sizes = [2, 32], strides = [1, 1]} : vector<2x96xf32> to vector<2x32xf32>
    %508 = arith.addf %506, %507 : vector<2x32xf32>
    %509 = arith.negf %508 : vector<2x32xf32>
    %510 = math.exp %509 : vector<2x32xf32>
    %cst_110 = arith.constant 1.000000e+00 : f32
    %511 = vector.broadcast %cst_110 : f32 to vector<2x32xf32>
    %512 = arith.addf %511, %510 : vector<2x32xf32>
    %513 = arith.divf %511, %512 : vector<2x32xf32>
    %514 = vector.extract_strided_slice %496 {offsets = [0, 64], sizes = [2, 32], strides = [1, 1]} : vector<2x96xf32> to vector<2x32xf32>
    %515 = vector.extract_strided_slice %497 {offsets = [0, 64], sizes = [2, 32], strides = [1, 1]} : vector<2x96xf32> to vector<2x32xf32>
    %516 = vector.broadcast %5 : vector<1x32xf32> to vector<2x32xf32>
    %517 = arith.addf %515, %516 : vector<2x32xf32>
    %518 = arith.mulf %505, %517 : vector<2x32xf32>
    %519 = arith.addf %514, %518 : vector<2x32xf32>
    %520 = math.tanh %519 : vector<2x32xf32>
    %cst_111 = arith.constant 1.000000e+00 : f32
    %521 = vector.broadcast %cst_111 : f32 to vector<2x32xf32>
    %522 = arith.subf %521, %513 : vector<2x32xf32>
    %523 = arith.mulf %522, %520 : vector<2x32xf32>
    %524 = arith.mulf %513, %461 : vector<2x32xf32>
    %525 = arith.addf %523, %524 : vector<2x32xf32>
    %c8_i32 = arith.constant 8 : i32
    %cst_112 = arith.constant dense<0.000000e+00> : vector<2x32xf32>
    %526 = tpu.matmul %525, %6, %cst_112 {dimension_numbers = #tpu.dot_dimension_numbers<[1], [0], [0], [1], [0, 0, 1, 1], [], []>} : vector<2x32xf32>, vector<32x32xf32>, vector<2x32xf32> -> vector<2x32xf32>
    %527 = vector.broadcast %7 : vector<1x32xf32> to vector<2x32xf32>
    %528 = arith.addf %526, %527 : vector<2x32xf32>
    %cst_113 = arith.constant 0.000000e+00 : f32
    %529 = vector.broadcast %cst_113 : f32 to vector<2x32xf32>
    %530 = arith.maximumf %528, %529 : vector<2x32xf32>
    %cst_114 = arith.constant dense<0.000000e+00> : vector<2x16xf32>
    %531 = tpu.matmul %530, %8, %cst_114 {dimension_numbers = #tpu.dot_dimension_numbers<[1], [0], [0], [1], [0, 0, 1, 1], [], []>} : vector<2x32xf32>, vector<32x16xf32>, vector<2x16xf32> -> vector<2x16xf32>
    %532 = vector.broadcast %9 : vector<1x16xf32> to vector<2x16xf32>
    %533 = arith.addf %531, %532 : vector<2x16xf32>
    %cst_115 = arith.constant 0.000000e+00 : f32
    %534 = vector.broadcast %cst_115 : f32 to vector<2x16xf32>
    %535 = arith.maximumf %533, %534 : vector<2x16xf32>
    %cst_116 = arith.constant dense<0.000000e+00> : vector<2x5xf32>
    %536 = tpu.matmul %535, %10, %cst_116 {dimension_numbers = #tpu.dot_dimension_numbers<[1], [0], [0], [1], [0, 0, 1, 1], [], []>} : vector<2x16xf32>, vector<16x5xf32>, vector<2x5xf32> -> vector<2x5xf32>
    %537 = vector.broadcast %11 : vector<1x5xf32> to vector<2x5xf32>
    %538 = arith.addf %536, %537 : vector<2x5xf32>
    %cst_117 = arith.constant dense<0xFF800000> : vector<2xf32>
    %539 = vector.multi_reduction <maximumf>, %538, %cst_117 [1] : vector<2x5xf32> to vector<2xf32>
    %540 = vector.shape_cast %539 : vector<2xf32> to vector<2x1xf32>
    %541 = vector.broadcast %540 : vector<2x1xf32> to vector<2x5xf32>
    %542 = arith.subf %538, %541 : vector<2x5xf32>
    %543 = math.exp %542 : vector<2x5xf32>
    %cst_118 = arith.constant dense<0.000000e+00> : vector<2xf32>
    %544 = vector.multi_reduction <add>, %543, %cst_118 [1] : vector<2x5xf32> to vector<2xf32>
    %545 = vector.shape_cast %544 : vector<2xf32> to vector<2x1xf32>
    %546 = vector.broadcast %545 : vector<2x1xf32> to vector<2x5xf32>
    %547 = arith.divf %543, %546 : vector<2x5xf32>
    %c0_119 = arith.constant 0 : index
    %c0_120 = arith.constant 0 : index
    %548 = vector.load %arg13[%c0_119, %c0_120] : memref<2x5xf32, #tpu.memory_space<vmem>>, vector<2x5xf32>
    tpu.vector_store %arg13[%c0_119, %c0_120], %547 {strides = array<i32>} : memref<2x5xf32, #tpu.memory_space<vmem>>, vector<2x5xf32>,
    return
  }
}

</mosaic_0001>

<llo_original>
// kernel: gru_model_forward.1
$region0: #{gru_model_forward.1}
  #allocation0 [shape = 'u32[]', space=smem, size = 0x4, offset = 0x4, fixed_abs, tag = 'smem constant byte address 0x4 - core index']
  #allocation1 [shape = 'u32[144,128]{1,0:T(1,128)}', space=vmem, size = 0x12000, scoped, tag = 'internal scratch']
  %s0 = inlined_call_operand.vmem [shape: f32[8,2,96], index: 0, kind: input, shape index: {}]
  %s1 = inlined_call_operand.vmem [shape: f32[32,96], index: 1, kind: input, shape index: {}]
  %s2 = inlined_call_operand.vmem [shape: f32[1,32], index: 2, kind: input, shape index: {}]
  %s3 = inlined_call_operand.vmem [shape: f32[32,96], index: 3, kind: input, shape index: {}]
  %s4 = inlined_call_operand.vmem [shape: f32[1,96], index: 4, kind: input, shape index: {}]
  %s5 = inlined_call_operand.vmem [shape: f32[32,96], index: 5, kind: input, shape index: {}]
  %s6 = inlined_call_operand.vmem [shape: f32[1,32], index: 6, kind: input, shape index: {}]
  %s7 = inlined_call_operand.vmem [shape: f32[32,32], index: 7, kind: input, shape index: {}]
  %s8 = inlined_call_operand.vmem [shape: f32[1,32], index: 8, kind: input, shape index: {}]
  %s9 = inlined_call_operand.vmem [shape: f32[32,16], index: 9, kind: input, shape index: {}]
  %s10 = inlined_call_operand.vmem [shape: f32[1,16], index: 10, kind: input, shape index: {}]
  %s11 = inlined_call_operand.vmem [shape: f32[16,5], index: 11, kind: input, shape index: {}]
  %s12 = inlined_call_operand.vmem [shape: f32[1,5], index: 12, kind: input, shape index: {}]
  %s13 = inlined_call_operand.hbm [shape: f32[2,5], index: 13, kind: output, shape index: {}]
  %s14 = sld [smem:[#allocation0]]
  $region62: #{gru_model_forward.1} parent=0
    _
  %s16 = ssub.s32 1, %s14
  %s17 = scalar_select 0, %s16, %s14
  $region1: #{gru_model_forward.1} parent=0
    #allocation2 [shape = 'u8[1024]{0}', space=vmem, size = 0x400, scoped, tag = 'output window, operand 0, single buffered']
    #allocation3 [shape = 's32[1]{0}', space=sflag, size = 0x4, scoped, tag = 'scoped memory for gru_model_forward.1']
    %18 = vsyncpa [#allocation3], 0
    // Predicated region
    $region2: #{gru_model_forward.1} parent=1 // pred_check
      _
    $region3: #{gru_model_forward.1} parent=1 // pred_check_branch
      %20 = sbr.rel (0) target = $region5
    $region4: #{gru_model_forward.1} parent=1 // pred_region
      _
    $region5: #{gru_model_forward.1} parent=1 // pred_fallthru
      _
    // Predicated region
    $region6: #{gru_model_forward.1} parent=1 // pred_check
      _
    $region7: #{gru_model_forward.1} parent=1 // pred_check_branch
      %22 = sbr.rel (0) target = $region9
    $region8: #{gru_model_forward.1} parent=1 // pred_region
      _
    $region9: #{gru_model_forward.1} parent=1 // pred_fallthru
      _
    // Predicated region
    $region10: #{gru_model_forward.1} parent=1 // pred_check
      _
    $region11: #{gru_model_forward.1} parent=1 // pred_check_branch
      %24 = sbr.rel (0) target = $region13
    $region12: #{gru_model_forward.1} parent=1 // pred_region
      _
    $region13: #{gru_model_forward.1} parent=1 // pred_fallthru
      _
    // Predicated region
    $region14: #{gru_model_forward.1} parent=1 // pred_check
      _
    $region15: #{gru_model_forward.1} parent=1 // pred_check_branch
      %26 = sbr.rel (0) target = $region17
    $region16: #{gru_model_forward.1} parent=1 // pred_region
      _
    $region17: #{gru_model_forward.1} parent=1 // pred_fallthru
      _
    // Predicated region
    $region18: #{gru_model_forward.1} parent=1 // pred_check
      _
    $region19: #{gru_model_forward.1} parent=1 // pred_check_branch
      %28 = sbr.rel (0) target = $region21
    $region20: #{gru_model_forward.1} parent=1 // pred_region
      _
    $region21: #{gru_model_forward.1} parent=1 // pred_fallthru
      _
    // Predicated region
    $region22: #{gru_model_forward.1} parent=1 // pred_check
      _
    $region23: #{gru_model_forward.1} parent=1 // pred_check_branch
      %30 = sbr.rel (0) target = $region25
    $region24: #{gru_model_forward.1} parent=1 // pred_region
      _
    $region25: #{gru_model_forward.1} parent=1 // pred_fallthru
      _
    // Predicated region
    $region26: #{gru_model_forward.1} parent=1 // pred_check
      _
    $region27: #{gru_model_forward.1} parent=1 // pred_check_branch
      %32 = sbr.rel (0) target = $region29
    $region28: #{gru_model_forward.1} parent=1 // pred_region
      _
    $region29: #{gru_model_forward.1} parent=1 // pred_fallthru
      _
    // Predicated region
    $region30: #{gru_model_forward.1} parent=1 // pred_check
      _
    $region31: #{gru_model_forward.1} parent=1 // pred_check_branch
      %34 = sbr.rel (0) target = $region33
    $region32: #{gru_model_forward.1} parent=1 // pred_region
      _
    $region33: #{gru_model_forward.1} parent=1 // pred_fallthru
      _
    // Predicated region
    $region34: #{gru_model_forward.1} parent=1 // pred_check
      _
    $region35: #{gru_model_forward.1} parent=1 // pred_check_branch
      %36 = sbr.rel (0) target = $region37
    $region36: #{gru_model_forward.1} parent=1 // pred_region
      _
    $region37: #{gru_model_forward.1} parent=1 // pred_fallthru
      _
    // Predicated region
    $region38: #{gru_model_forward.1} parent=1 // pred_check
      _
    $region39: #{gru_model_forward.1} parent=1 // pred_check_branch
      %38 = sbr.rel (0) target = $region41
    $region40: #{gru_model_forward.1} parent=1 // pred_region
      _
    $region41: #{gru_model_forward.1} parent=1 // pred_fallthru
      _
    // Predicated region
    $region42: #{gru_model_forward.1} parent=1 // pred_check
      _
    $region43: #{gru_model_forward.1} parent=1 // pred_check_branch
      %40 = sbr.rel (0) target = $region45
    $region44: #{gru_model_forward.1} parent=1 // pred_region
      _
    $region45: #{gru_model_forward.1} parent=1 // pred_fallthru
      _
    // Predicated region
    $region46: #{gru_model_forward.1} parent=1 // pred_check
      _
    $region47: #{gru_model_forward.1} parent=1 // pred_check_branch
      %42 = sbr.rel (0) target = $region49
    $region48: #{gru_model_forward.1} parent=1 // pred_region
      _
    $region49: #{gru_model_forward.1} parent=1 // pred_fallthru
      _
    // Predicated region
    $region50: #{gru_model_forward.1} parent=1 // pred_check
      _
    $region51: #{gru_model_forward.1} parent=1 // pred_check_branch
      %44 = sbr.rel (0) target = $region53
    $region52: #{gru_model_forward.1} parent=1 // pred_region
      _
    $region53: #{gru_model_forward.1} parent=1 // pred_fallthru
      _
    %v45 = vld [vmem:[%s1] sm:$0xff]
    %v46 = vld [vmem:[%s1 + $0x8] sm:$0xff]
    %v47 = vld [vmem:[%s1 + $0x10] sm:$0xff]
    %v48 = vld [vmem:[%s1 + $0x18] sm:$0xff]
    %v49 = vld [vmem:[%s2] sm:$0x1]
    %v50 = vld [vmem:[%s3] sm:$0xff]
    %v51 = vld [vmem:[%s3 + $0x8] sm:$0xff]
    %v52 = vld [vmem:[%s3 + $0x10] sm:$0xff]
    %v53 = vld [vmem:[%s3 + $0x18] sm:$0xff]
    %v54 = vld [vmem:[%s4] sm:$0x1]
    %v55 = vld [vmem:[%s5] sm:$0xff]
    %v56 = vld [vmem:[%s5 + $0x8] sm:$0xff]
    %v57 = vld [vmem:[%s5 + $0x10] sm:$0xff]
    %v58 = vld [vmem:[%s5 + $0x18] sm:$0xff]
    %v59 = vld [vmem:[%s6] sm:$0x1]
    %v60 = vld [vmem:[%s7] sm:$0xff]
    %v61 = vld [vmem:[%s7 + $0x8] sm:$0xff]
    %v62 = vld [vmem:[%s7 + $0x10] sm:$0xff]
    %v63 = vld [vmem:[%s7 + $0x18] sm:$0xff]
    %v64 = vld [vmem:[%s8] sm:$0x1]
    %v65 = vld [vmem:[%s9] sm:$0xff]
    %v66 = vld [vmem:[%s9 + $0x8] sm:$0xff]
    %v67 = vld [vmem:[%s9 + $0x10] sm:$0xff]
    %v68 = vld [vmem:[%s9 + $0x18] sm:$0xff]
    %v69 = vld [vmem:[%s10] sm:$0x1]
    %v70 = vld [vmem:[%s11] sm:$0xff]
    %v71 = vld [vmem:[%s11 + $0x8] sm:$0xff]
    %v72 = vld [vmem:[%s12] sm:$0x1]
    %v73 = vld [vmem:[%s0] sm:$0x3]
    %vm74 = vcmask 261120
    %v76 = vsel %vm74, 0.0, 0
    %78 = vmatprep.subr.mxu0 0.0
    %79 = vmatpush1.msra.mxu0 %v45
    %80 = vmatprep.subr.mxu0 0.0
    %81 = vmatpush1.msra.mxu0 %v46
    %82 = vmatprep.subr.mxu0 0.0
    %83 = vmatpush1.msra.mxu0 %v47
    %84 = vmatprep.subr.mxu0 0.0
    %85 = vmatpush1.msra.mxu0 %v48
    %86 = vmatprep.subr.mxu0 0.0
    %87 = vmatpush1.msra.mxu0 0.0
    %88 = vmatprep.subr.mxu0 0.0
    %89 = vmatpush1.msra.mxu0 0.0
    %90 = vmatprep.subr.mxu0 0.0
    %91 = vmatpush1.msra.mxu0 0.0
    %92 = vmatprep.subr.mxu0 0.0
    %93 = vmatpush1.msra.mxu0 0.0
    %94 = vmatprep.subr.mxu0 0.0
    %95 = vmatpush1.msra.mxu0 0.0
    %96 = vmatprep.subr.mxu0 0.0
    %97 = vmatpush1.msra.mxu0 0.0
    %98 = vmatprep.subr.mxu0 0.0
    %99 = vmatpush1.msra.mxu0 0.0
    %100 = vmatprep.subr.mxu0 0.0
    %101 = vmatpush1.msra.mxu0 0.0
    %102 = vmatprep.subr.mxu0 0.0
    %103 = vmatpush1.msra.mxu0 0.0
    %104 = vmatprep.subr.mxu0 0.0
    %105 = vmatpush1.msra.mxu0 0.0
    %106 = vmatprep.subr.mxu0 0.0
    %107 = vmatpush1.msra.mxu0 0.0
    %108 = vmatprep.subr.mxu0 0.0
    %109 = vmatpush1.msra.mxu0 0.0
    %110 = vmatprep.subr.mxu0 0.0
    %111 = vmatpush1.msra.mxu0 0.0
    %112 = vmatprep.subr.mxu0 0.0
    %113 = vmatpush1.msra.mxu0 0.0
    %114 = vmatprep.subr.mxu0 0.0
    %115 = vmatpush1.msra.mxu0 0.0
    %116 = vmatprep.subr.mxu0 0.0
    %117 = vmatpush1.msra.mxu0 0.0
    %118 = vmatprep.subr.mxu0 0.0
    %119 = vmatpush1.msra.mxu0 0.0
    %120 = vmatprep.subr.mxu0 0.0
    %121 = vmatpush1.msra.mxu0 0.0
    %122 = vmatprep.subr.mxu0 0.0
    %123 = vmatpush1.msra.mxu0 0.0
    %124 = vmatprep.subr.mxu0 0.0
    %125 = vmatpush1.msra.mxu0 0.0
    %126 = vmatprep.subr.mxu0 0.0
    %127 = vmatpush1.msra.mxu0 0.0
    %128 = vmatprep.subr.mxu0 0.0
    %129 = vmatpush1.msra.mxu0 0.0
    %130 = vmatprep.subr.mxu0 0.0
    %131 = vmatpush1.msra.mxu0 0.0
    %132 = vmatprep.subr.mxu0 0.0
    %133 = vmatpush1.msra.mxu0 0.0
    %134 = vmatprep.subr.mxu0 0.0
    %135 = vmatpush1.msra.mxu0 0.0
    %136 = vmatprep.subr.mxu0 0.0
    %137 = vmatpush1.msra.mxu0 0.0
    %138 = vmatprep.subr.mxu0 0.0
    %139 = vmatpush1.msra.mxu0 0.0
    %140 = vmatprep.subr.mxu0 0.0
    %141 = vmatpush1.msra.mxu0 0.0
    %142 = vmatprep.mubr.f32.mxu0 0.0
    %143 = vmatmul.mubr.f32.gmra.mrb[0].mxu0 %v76
    %v144 = vpop.f32.mrb[0].mxu0
    %v145 = vadd.f32 0.0, %v144
    %v146 = vpop.f32.mrb[0].mxu0
    %147 = vdwg.mxu0
    %v148 = vadd.f32 %v73, %v145
    %v149 = vxor.u32 %v148, 2147483648
    %v150 = vmul.f32 %v149, 1.442695
    %v151 = vpow.pop %v150
    %v152 = vadd.f32 %v151, 1.0
    %v153 = vrcp.pop %v152
    %v154 = vmul.f32 1.0, %v153
    %v156 = vlaneseq
    %v157 = vshrl.u32 %v156, 7
    %v158 = vsub.s32 0, %v157
    %v159 = vrot.slane %v49, %v158
    %160 = vrot.lane.b32.xlu0 %v159, 64
    %v161 = vpop.permute.xlu0 %160
    %v163 = vadd.f32 %v145, %v161
    %165 = vrot.lane.b32.xlu0 %v163, 64
    %v166 = vpop.permute.xlu0 %165
    %v168 = vmul.f32 %v154, %v166
    %170 = vrot.lane.b32.xlu0 %v168, 64
    %v171 = vpop.permute.xlu0 %170
    %v173 = vadd.f32 %v73, %v171
    %v174 = vtanh.pop %v173
    %v175 = vsub.f32 1.0, %v154
    %177 = vrot.lane.b32.xlu0 %v174, 96
    %v178 = vpop.permute.xlu0 %177
    %v180 = vmul.f32 %v175, %v178
    %v181 = vmul.f32 %v154, 0.0
    %v182 = vadd.f32 %v180, %v181
    %v184 = vlaneseq
    %v185 = vshrl.u32 %v184, 7
    %v186 = vsub.s32 0, %v185
    %v187 = vrot.slane %v54, %v186
    %190 = vrot.lane.b32.xlu0 %v182, 96
    %v191 = vpop.permute.xlu0 %190
    %v192 = vsel %vm74, %v191, 0
    %194 = vmatprep.subr.mxu0 0.0
    %195 = vmatpush1.msra.mxu0 %v50
    %196 = vmatprep.subr.mxu0 0.0
    %197 = vmatpush1.msra.mxu0 %v51
    %198 = vmatprep.subr.mxu0 0.0
    %199 = vmatpush1.msra.mxu0 %v52
    %200 = vmatprep.subr.mxu0 0.0
    %201 = vmatpush1.msra.mxu0 %v53
    %202 = vmatprep.subr.mxu0 0.0
    %203 = vmatpush1.msra.mxu0 0.0
    %204 = vmatprep.subr.mxu0 0.0
    %205 = vmatpush1.msra.mxu0 0.0
    %206 = vmatprep.subr.mxu0 0.0
    %207 = vmatpush1.msra.mxu0 0.0
    %208 = vmatprep.subr.mxu0 0.0
    %209 = vmatpush1.msra.mxu0 0.0
    %210 = vmatprep.subr.mxu0 0.0
    %211 = vmatpush1.msra.mxu0 0.0
    %212 = vmatprep.subr.mxu0 0.0
    %213 = vmatpush1.msra.mxu0 0.0
    %214 = vmatprep.subr.mxu0 0.0
    %215 = vmatpush1.msra.mxu0 0.0
    %216 = vmatprep.subr.mxu0 0.0
    %217 = vmatpush1.msra.mxu0 0.0
    %218 = vmatprep.subr.mxu0 0.0
    %219 = vmatpush1.msra.mxu0 0.0
    %220 = vmatprep.subr.mxu0 0.0
    %221 = vmatpush1.msra.mxu0 0.0
    %222 = vmatprep.subr.mxu0 0.0
    %223 = vmatpush1.msra.mxu0 0.0
    %224 = vmatprep.subr.mxu0 0.0
    %225 = vmatpush1.msra.mxu0 0.0
    %226 = vmatprep.subr.mxu0 0.0
    %227 = vmatpush1.msra.mxu0 0.0
    %228 = vmatprep.subr.mxu0 0.0
    %229 = vmatpush1.msra.mxu0 0.0
    %230 = vmatprep.subr.mxu0 0.0
    %231 = vmatpush1.msra.mxu0 0.0
    %232 = vmatprep.subr.mxu0 0.0
    %233 = vmatpush1.msra.mxu0 0.0
    %234 = vmatprep.subr.mxu0 0.0
    %235 = vmatpush1.msra.mxu0 0.0
    %236 = vmatprep.subr.mxu0 0.0
    %237 = vmatpush1.msra.mxu0 0.0
    %238 = vmatprep.subr.mxu0 0.0
    %239 = vmatpush1.msra.mxu0 0.0
    %240 = vmatprep.subr.mxu0 0.0
    %241 = vmatpush1.msra.mxu0 0.0
    %242 = vmatprep.subr.mxu0 0.0
    %243 = vmatpush1.msra.mxu0 0.0
    %244 = vmatprep.subr.mxu0 0.0
    %245 = vmatpush1.msra.mxu0 0.0
    %246 = vmatprep.subr.mxu0 0.0
    %247 = vmatpush1.msra.mxu0 0.0
    %248 = vmatprep.subr.mxu0 0.0
    %249 = vmatpush1.msra.mxu0 0.0
    %250 = vmatprep.subr.mxu0 0.0
    %251 = vmatpush1.msra.mxu0 0.0
    %252 = vmatprep.subr.mxu0 0.0
    %253 = vmatpush1.msra.mxu0 0.0
    %254 = vmatprep.subr.mxu0 0.0
    %255 = vmatpush1.msra.mxu0 0.0
    %256 = vmatprep.subr.mxu0 0.0
    %257 = vmatpush1.msra.mxu0 0.0
    %258 = vmatprep.mubr.f32.mxu0 0.0
    %259 = vmatmul.mubr.f32.gmra.mrb[0].mxu0 %v192
    %v260 = vpop.f32.mrb[0].mxu0
    %v261 = vadd.f32 %v187, %v260
    %v262 = vpop.f32.mrb[0].mxu0
    %263 = vdwg.mxu0
    %264 = vmatprep.subr.mxu0 0.0
    %265 = vmatpush1.msra.mxu0 %v55
    %266 = vmatprep.subr.mxu0 0.0
    %267 = vmatpush1.msra.mxu0 %v56
    %268 = vmatprep.subr.mxu0 0.0
    %269 = vmatpush1.msra.mxu0 %v57
    %270 = vmatprep.subr.mxu0 0.0
    %271 = vmatpush1.msra.mxu0 %v58
    %272 = vmatprep.subr.mxu0 0.0
    %273 = vmatpush1.msra.mxu0 0.0
    %274 = vmatprep.subr.mxu0 0.0
    %275 = vmatpush1.msra.mxu0 0.0
    %276 = vmatprep.subr.mxu0 0.0
    %277 = vmatpush1.msra.mxu0 0.0
    %278 = vmatprep.subr.mxu0 0.0
    %279 = vmatpush1.msra.mxu0 0.0
    %280 = vmatprep.subr.mxu0 0.0
    %281 = vmatpush1.msra.mxu0 0.0
    %282 = vmatprep.subr.mxu0 0.0
    %283 = vmatpush1.msra.mxu0 0.0
    %284 = vmatprep.subr.mxu0 0.0
    %285 = vmatpush1.msra.mxu0 0.0
    %286 = vmatprep.subr.mxu0 0.0
    %287 = vmatpush1.msra.mxu0 0.0
    %288 = vmatprep.subr.mxu0 0.0
    %289 = vmatpush1.msra.mxu0 0.0
    %290 = vmatprep.subr.mxu0 0.0
    %291 = vmatpush1.msra.mxu0 0.0
    %292 = vmatprep.subr.mxu0 0.0
    %293 = vmatpush1.msra.mxu0 0.0
    %294 = vmatprep.subr.mxu0 0.0
    %295 = vmatpush1.msra.mxu0 0.0
    %296 = vmatprep.subr.mxu0 0.0
    %297 = vmatpush1.msra.mxu0 0.0
    %298 = vmatprep.subr.mxu0 0.0
    %299 = vmatpush1.msra.mxu0 0.0
    %300 = vmatprep.subr.mxu0 0.0
    %301 = vmatpush1.msra.mxu0 0.0
    %302 = vmatprep.subr.mxu0 0.0
    %303 = vmatpush1.msra.mxu0 0.0
    %304 = vmatprep.subr.mxu0 0.0
    %305 = vmatpush1.msra.mxu0 0.0
    %306 = vmatprep.subr.mxu0 0.0
    %307 = vmatpush1.msra.mxu0 0.0
    %308 = vmatprep.subr.mxu0 0.0
    %309 = vmatpush1.msra.mxu0 0.0
    %310 = vmatprep.subr.mxu0 0.0
    %311 = vmatpush1.msra.mxu0 0.0
    %312 = vmatprep.subr.mxu0 0.0
    %313 = vmatpush1.msra.mxu0 0.0
    %314 = vmatprep.subr.mxu0 0.0
    %315 = vmatpush1.msra.mxu0 0.0
    %316 = vmatprep.subr.mxu0 0.0
    %317 = vmatpush1.msra.mxu0 0.0
    %318 = vmatprep.subr.mxu0 0.0
    %319 = vmatpush1.msra.mxu0 0.0
    %320 = vmatprep.subr.mxu0 0.0
    %321 = vmatpush1.msra.mxu0 0.0
    %322 = vmatprep.subr.mxu0 0.0
    %323 = vmatpush1.msra.mxu0 0.0
    %324 = vmatprep.subr.mxu0 0.0
    %325 = vmatpush1.msra.mxu0 0.0
    %326 = vmatprep.subr.mxu0 0.0
    %327 = vmatpush1.msra.mxu0 0.0
    %328 = vmatprep.mubr.f32.mxu0 0.0
    %329 = vmatmul.mubr.f32.gmra.mrb[0].mxu0 %v76
    %v330 = vpop.f32.mrb[0].mxu0
    %v331 = vadd.f32 0.0, %v330
    %v332 = vpop.f32.mrb[0].mxu0
    %333 = vdwg.mxu0
    %v334 = vadd.f32 %v261, %v331
    %v335 = vxor.u32 %v334, 2147483648
    %v336 = vmul.f32 %v335, 1.442695
    %v337 = vpow.pop %v336
    %v338 = vadd.f32 %v337, 1.0
    %v339 = vrcp.pop %v338
    %v340 = vmul.f32 1.0, %v339
    %v342 = vlaneseq
    %v343 = vshrl.u32 %v342, 7
    %v344 = vsub.s32 0, %v343
    %v345 = vrot.slane %v59, %v344
    %346 = vrot.lane.b32.xlu0 %v345, 64
    %v347 = vpop.permute.xlu0 %346
    %v349 = vadd.f32 %v331, %v347
    %351 = vrot.lane.b32.xlu0 %v349, 64
    %v352 = vpop.permute.xlu0 %351
    %v354 = vmul.f32 %v340, %v352
    %356 = vrot.lane.b32.xlu0 %v354, 64
    %v357 = vpop.permute.xlu0 %356
    %v359 = vadd.f32 %v261, %v357
    %v360 = vtanh.pop %v359
    %v361 = vsub.f32 1.0, %v340
    %363 = vrot.lane.b32.xlu0 %v360, 96
    %v364 = vpop.permute.xlu0 %363
    %v366 = vmul.f32 %v361, %v364
    %v367 = vmul.f32 %v340, 0.0
    %v368 = vadd.f32 %v366, %v367
    %s369 = scalar_lea.vmem %s0, 2
    %v370 = vld [vmem:[%s369] sm:$0x3]
    %371 = vmatprep.subr.mxu0 0.0
    %372 = vmatpush1.msra.mxu0 %v45
    %373 = vmatprep.subr.mxu0 0.0
    %374 = vmatpush1.msra.mxu0 %v46
    %375 = vmatprep.subr.mxu0 0.0
    %376 = vmatpush1.msra.mxu0 %v47
    %377 = vmatprep.subr.mxu0 0.0
    %378 = vmatpush1.msra.mxu0 %v48
    %379 = vmatprep.subr.mxu0 0.0
    %380 = vmatpush1.msra.mxu0 0.0
    %381 = vmatprep.subr.mxu0 0.0
    %382 = vmatpush1.msra.mxu0 0.0
    %383 = vmatprep.subr.mxu0 0.0
    %384 = vmatpush1.msra.mxu0 0.0
    %385 = vmatprep.subr.mxu0 0.0
    %386 = vmatpush1.msra.mxu0 0.0
    %387 = vmatprep.subr.mxu0 0.0
    %388 = vmatpush1.msra.mxu0 0.0
    %389 = vmatprep.subr.mxu0 0.0
    %390 = vmatpush1.msra.mxu0 0.0
    %391 = vmatprep.subr.mxu0 0.0
    %392 = vmatpush1.msra.mxu0 0.0
    %393 = vmatprep.subr.mxu0 0.0
    %394 = vmatpush1.msra.mxu0 0.0
    %395 = vmatprep.subr.mxu0 0.0
    %396 = vmatpush1.msra.mxu0 0.0
    %397 = vmatprep.subr.mxu0 0.0
    %398 = vmatpush1.msra.mxu0 0.0
    %399 = vmatprep.subr.mxu0 0.0
    %400 = vmatpush1.msra.mxu0 0.0
    %401 = vmatprep.subr.mxu0 0.0
    %402 = vmatpush1.msra.mxu0 0.0
    %403 = vmatprep.subr.mxu0 0.0
    %404 = vmatpush1.msra.mxu0 0.0
    %405 = vmatprep.subr.mxu0 0.0
    %406 = vmatpush1.msra.mxu0 0.0
    %407 = vmatprep.subr.mxu0 0.0
    %408 = vmatpush1.msra.mxu0 0.0
    %409 = vmatprep.subr.mxu0 0.0
    %410 = vmatpush1.msra.mxu0 0.0
    %411 = vmatprep.subr.mxu0 0.0
    %412 = vmatpush1.msra.mxu0 0.0
    %413 = vmatprep.subr.mxu0 0.0
    %414 = vmatpush1.msra.mxu0 0.0
    %415 = vmatprep.subr.mxu0 0.0
    %416 = vmatpush1.msra.mxu0 0.0
    %417 = vmatprep.subr.mxu0 0.0
    %418 = vmatpush1.msra.mxu0 0.0
    %419 = vmatprep.subr.mxu0 0.0
    %420 = vmatpush1.msra.mxu0 0.0
    %421 = vmatprep.subr.mxu0 0.0
    %422 = vmatpush1.msra.mxu0 0.0
    %423 = vmatprep.subr.mxu0 0.0
    %424 = vmatpush1.msra.mxu0 0.0
    %425 = vmatprep.subr.mxu0 0.0
    %426 = vmatpush1.msra.mxu0 0.0
    %427 = vmatprep.subr.mxu0 0.0
    %428 = vmatpush1.msra.mxu0 0.0
    %429 = vmatprep.subr.mxu0 0.0
    %430 = vmatpush1.msra.mxu0 0.0
    %431 = vmatprep.subr.mxu0 0.0
    %432 = vmatpush1.msra.mxu0 0.0
    %433 = vmatprep.subr.mxu0 0.0
    %434 = vmatpush1.msra.mxu0 0.0
    %435 = vmatprep.mubr.f32.mxu0 0.0
    %436 = vmatmul.mubr.f32.gmra.mrb[0].mxu0 %v192
    %v437 = vpop.f32.mrb[0].mxu0
    %v438 = vadd.f32 0.0, %v437
    %v439 = vpop.f32.mrb[0].mxu0
    %440 = vdwg.mxu0
    %v441 = vadd.f32 %v370, %v438
    %v442 = vxor.u32 %v441, 2147483648
    %v443 = vmul.f32 %v442, 1.442695
    %v444 = vpow.pop %v443
    %v445 = vadd.f32 %v444, 1.0
    %v446 = vrcp.pop %v445
    %v447 = vmul.f32 1.0, %v446
    %v448 = vadd.f32 %v438, %v161
    %450 = vrot.lane.b32.xlu0 %v448, 64
    %v451 = vpop.permute.xlu0 %450
    %v453 = vmul.f32 %v447, %v451
    %455 = vrot.lane.b32.xlu0 %v453, 64
    %v456 = vpop.permute.xlu0 %455
    %v458 = vadd.f32 %v370, %v456
    %v459 = vtanh.pop %v458
    %v460 = vsub.f32 1.0, %v447
    %462 = vrot.lane.b32.xlu0 %v459, 96
    %v463 = vpop.permute.xlu0 %462
    %v465 = vmul.f32 %v460, %v463
    %v466 = vmul.f32 %v447, %v182
    %v467 = vadd.f32 %v465, %v466
    %469 = vrot.lane.b32.xlu0 %v467, 96
    %v470 = vpop.permute.xlu0 %469
    %v471 = vsel %vm74, %v470, 0
    %473 = vmatprep.subr.mxu0 0.0
    %474 = vmatpush1.msra.mxu0 %v50
    %475 = vmatprep.subr.mxu0 0.0
    %476 = vmatpush1.msra.mxu0 %v51
    %477 = vmatprep.subr.mxu0 0.0
    %478 = vmatpush1.msra.mxu0 %v52
    %479 = vmatprep.subr.mxu0 0.0
    %480 = vmatpush1.msra.mxu0 %v53
    %481 = vmatprep.subr.mxu0 0.0
    %482 = vmatpush1.msra.mxu0 0.0
    %483 = vmatprep.subr.mxu0 0.0
    %484 = vmatpush1.msra.mxu0 0.0
    %485 = vmatprep.subr.mxu0 0.0
    %486 = vmatpush1.msra.mxu0 0.0
    %487 = vmatprep.subr.mxu0 0.0
    %488 = vmatpush1.msra.mxu0 0.0
    %489 = vmatprep.subr.mxu0 0.0
    %490 = vmatpush1.msra.mxu0 0.0
    %491 = vmatprep.subr.mxu0 0.0
    %492 = vmatpush1.msra.mxu0 0.0
    %493 = vmatprep.subr.mxu0 0.0
    %494 = vmatpush1.msra.mxu0 0.0
    %495 = vmatprep.subr.mxu0 0.0
    %496 = vmatpush1.msra.mxu0 0.0
    %497 = vmatprep.subr.mxu0 0.0
    %498 = vmatpush1.msra.mxu0 0.0
    %499 = vmatprep.subr.mxu0 0.0
    %500 = vmatpush1.msra.mxu0 0.0
    %501 = vmatprep.subr.mxu0 0.0
    %502 = vmatpush1.msra.mxu0 0.0
    %503 = vmatprep.subr.mxu0 0.0
    %504 = vmatpush1.msra.mxu0 0.0
    %505 = vmatprep.subr.mxu0 0.0
    %506 = vmatpush1.msra.mxu0 0.0
    %507 = vmatprep.subr.mxu0 0.0
    %508 = vmatpush1.msra.mxu0 0.0
    %509 = vmatprep.subr.mxu0 0.0
    %510 = vmatpush1.msra.mxu0 0.0
    %511 = vmatprep.subr.mxu0 0.0
    %512 = vmatpush1.msra.mxu0 0.0
    %513 = vmatprep.subr.mxu0 0.0
    %514 = vmatpush1.msra.mxu0 0.0
    %515 = vmatprep.subr.mxu0 0.0
    %516 = vmatpush1.msra.mxu0 0.0
    %517 = vmatprep.subr.mxu0 0.0
    %518 = vmatpush1.msra.mxu0 0.0
    %519 = vmatprep.subr.mxu0 0.0
    %520 = vmatpush1.msra.mxu0 0.0
    %521 = vmatprep.subr.mxu0 0.0
    %522 = vmatpush1.msra.mxu0 0.0
    %523 = vmatprep.subr.mxu0 0.0
    %524 = vmatpush1.msra.mxu0 0.0
    %525 = vmatprep.subr.mxu0 0.0
    %526 = vmatpush1.msra.mxu0 0.0
    %527 = vmatprep.subr.mxu0 0.0
    %528 = vmatpush1.msra.mxu0 0.0
    %529 = vmatprep.subr.mxu0 0.0
    %530 = vmatpush1.msra.mxu0 0.0
    %531 = vmatprep.subr.mxu0 0.0
    %532 = vmatpush1.msra.mxu0 0.0
    %533 = vmatprep.subr.mxu0 0.0
    %534 = vmatpush1.msra.mxu0 0.0
    %535 = vmatprep.subr.mxu0 0.0
    %536 = vmatpush1.msra.mxu0 0.0
    %537 = vmatprep.mubr.f32.mxu0 0.0
    %538 = vmatmul.mubr.f32.gmra.mrb[0].mxu0 %v471
    %v539 = vpop.f32.mrb[0].mxu0
    %v540 = vadd.f32 %v187, %v539
    %v541 = vpop.f32.mrb[0].mxu0
    %542 = vdwg.mxu0
    %544 = vrot.lane.b32.xlu0 %v368, 96
    %v545 = vpop.permute.xlu0 %544
    %v546 = vsel %vm74, %v545, 0
    %548 = vmatprep.subr.mxu0 0.0
    %549 = vmatpush1.msra.mxu0 %v55
    %550 = vmatprep.subr.mxu0 0.0
    %551 = vmatpush1.msra.mxu0 %v56
    %552 = vmatprep.subr.mxu0 0.0
    %553 = vmatpush1.msra.mxu0 %v57
    %554 = vmatprep.subr.mxu0 0.0
    %555 = vmatpush1.msra.mxu0 %v58
    %556 = vmatprep.subr.mxu0 0.0
    %557 = vmatpush1.msra.mxu0 0.0
    %558 = vmatprep.subr.mxu0 0.0
    %559 = vmatpush1.msra.mxu0 0.0
    %560 = vmatprep.subr.mxu0 0.0
    %561 = vmatpush1.msra.mxu0 0.0
    %562 = vmatprep.subr.mxu0 0.0
    %563 = vmatpush1.msra.mxu0 0.0
    %564 = vmatprep.subr.mxu0 0.0
    %565 = vmatpush1.msra.mxu0 0.0
    %566 = vmatprep.subr.mxu0 0.0
    %567 = vmatpush1.msra.mxu0 0.0
    %568 = vmatprep.subr.mxu0 0.0
    %569 = vmatpush1.msra.mxu0 0.0
    %570 = vmatprep.subr.mxu0 0.0
    %571 = vmatpush1.msra.mxu0 0.0
    %572 = vmatprep.subr.mxu0 0.0
    %573 = vmatpush1.msra.mxu0 0.0
    %574 = vmatprep.subr.mxu0 0.0
    %575 = vmatpush1.msra.mxu0 0.0
    %576 = vmatprep.subr.mxu0 0.0
    %577 = vmatpush1.msra.mxu0 0.0
    %578 = vmatprep.subr.mxu0 0.0
    %579 = vmatpush1.msra.mxu0 0.0
    %580 = vmatprep.subr.mxu0 0.0
    %581 = vmatpush1.msra.mxu0 0.0
    %582 = vmatprep.subr.mxu0 0.0
    %583 = vmatpush1.msra.mxu0 0.0
    %584 = vmatprep.subr.mxu0 0.0
    %585 = vmatpush1.msra.mxu0 0.0
    %586 = vmatprep.subr.mxu0 0.0
    %587 = vmatpush1.msra.mxu0 0.0
    %588 = vmatprep.subr.mxu0 0.0
    %589 = vmatpush1.msra.mxu0 0.0
    %590 = vmatprep.subr.mxu0 0.0
    %591 = vmatpush1.msra.mxu0 0.0
    %592 = vmatprep.subr.mxu0 0.0
    %593 = vmatpush1.msra.mxu0 0.0
    %594 = vmatprep.subr.mxu0 0.0
    %595 = vmatpush1.msra.mxu0 0.0
    %596 = vmatprep.subr.mxu0 0.0
    %597 = vmatpush1.msra.mxu0 0.0
    %598 = vmatprep.subr.mxu0 0.0
    %599 = vmatpush1.msra.mxu0 0.0
    %600 = vmatprep.subr.mxu0 0.0
    %601 = vmatpush1.msra.mxu0 0.0
    %602 = vmatprep.subr.mxu0 0.0
    %603 = vmatpush1.msra.mxu0 0.0
    %604 = vmatprep.subr.mxu0 0.0
    %605 = vmatpush1.msra.mxu0 0.0
    %606 = vmatprep.subr.mxu0 0.0
    %607 = vmatpush1.msra.mxu0 0.0
    %608 = vmatprep.subr.mxu0 0.0
    %609 = vmatpush1.msra.mxu0 0.0
    %610 = vmatprep.subr.mxu0 0.0
    %611 = vmatpush1.msra.mxu0 0.0
    %612 = vmatprep.mubr.f32.mxu0 0.0
    %613 = vmatmul.mubr.f32.gmra.mrb[0].mxu0 %v546
    %v614 = vpop.f32.mrb[0].mxu0
    %v615 = vadd.f32 0.0, %v614
    %v616 = vpop.f32.mrb[0].mxu0
    %617 = vdwg.mxu0
    %v618 = vadd.f32 %v540, %v615
    %v619 = vxor.u32 %v618, 2147483648
    %v620 = vmul.f32 %v619, 1.442695
    %v621 = vpow.pop %v620
    %v622 = vadd.f32 %v621, 1.0
    %v623 = vrcp.pop %v622
    %v624 = vmul.f32 1.0, %v623
    %v625 = vadd.f32 %v615, %v347
    %627 = vrot.lane.b32.xlu0 %v625, 64
    %v628 = vpop.permute.xlu0 %627
    %v630 = vmul.f32 %v624, %v628
    %632 = vrot.lane.b32.xlu0 %v630, 64
    %v633 = vpop.permute.xlu0 %632
    %v635 = vadd.f32 %v540, %v633
    %v636 = vtanh.pop %v635
    %v637 = vsub.f32 1.0, %v624
    %639 = vrot.lane.b32.xlu0 %v636, 96
    %v640 = vpop.permute.xlu0 %639
    %v642 = vmul.f32 %v637, %v640
    %v643 = vmul.f32 %v624, %v368
    %v644 = vadd.f32 %v642, %v643
    %s645 = scalar_lea.vmem %s0, 4
    %v646 = vld [vmem:[%s645] sm:$0x3]
    %647 = vmatprep.subr.mxu0 0.0
    %648 = vmatpush1.msra.mxu0 %v45
    %649 = vmatprep.subr.mxu0 0.0
    %650 = vmatpush1.msra.mxu0 %v46
    %651 = vmatprep.subr.mxu0 0.0
    %652 = vmatpush1.msra.mxu0 %v47
    %653 = vmatprep.subr.mxu0 0.0
    %654 = vmatpush1.msra.mxu0 %v48
    %655 = vmatprep.subr.mxu0 0.0
    %656 = vmatpush1.msra.mxu0 0.0
    %657 = vmatprep.subr.mxu0 0.0
    %658 = vmatpush1.msra.mxu0 0.0
    %659 = vmatprep.subr.mxu0 0.0
    %660 = vmatpush1.msra.mxu0 0.0
    %661 = vmatprep.subr.mxu0 0.0
    %662 = vmatpush1.msra.mxu0 0.0
    %663 = vmatprep.subr.mxu0 0.0
    %664 = vmatpush1.msra.mxu0 0.0
    %665 = vmatprep.subr.mxu0 0.0
    %666 = vmatpush1.msra.mxu0 0.0
    %667 = vmatprep.subr.mxu0 0.0
    %668 = vmatpush1.msra.mxu0 0.0
    %669 = vmatprep.subr.mxu0 0.0
    %670 = vmatpush1.msra.mxu0 0.0
    %671 = vmatprep.subr.mxu0 0.0
    %672 = vmatpush1.msra.mxu0 0.0
    %673 = vmatprep.subr.mxu0 0.0
    %674 = vmatpush1.msra.mxu0 0.0
    %675 = vmatprep.subr.mxu0 0.0
    %676 = vmatpush1.msra.mxu0 0.0
    %677 = vmatprep.subr.mxu0 0.0
    %678 = vmatpush1.msra.mxu0 0.0
    %679 = vmatprep.subr.mxu0 0.0
    %680 = vmatpush1.msra.mxu0 0.0
    %681 = vmatprep.subr.mxu0 0.0
    %682 = vmatpush1.msra.mxu0 0.0
    %683 = vmatprep.subr.mxu0 0.0
    %684 = vmatpush1.msra.mxu0 0.0
    %685 = vmatprep.subr.mxu0 0.0
    %686 = vmatpush1.msra.mxu0 0.0
    %687 = vmatprep.subr.mxu0 0.0
    %688 = vmatpush1.msra.mxu0 0.0
    %689 = vmatprep.subr.mxu0 0.0
    %690 = vmatpush1.msra.mxu0 0.0
    %691 = vmatprep.subr.mxu0 0.0
    %692 = vmatpush1.msra.mxu0 0.0
    %693 = vmatprep.subr.mxu0 0.0
    %694 = vmatpush1.msra.mxu0 0.0
    %695 = vmatprep.subr.mxu0 0.0
    %696 = vmatpush1.msra.mxu0 0.0
    %697 = vmatprep.subr.mxu0 0.0
    %698 = vmatpush1.msra.mxu0 0.0
    %699 = vmatprep.subr.mxu0 0.0
    %700 = vmatpush1.msra.mxu0 0.0
    %701 = vmatprep.subr.mxu0 0.0
    %702 = vmatpush1.msra.mxu0 0.0
    %703 = vmatprep.subr.mxu0 0.0
    %704 = vmatpush1.msra.mxu0 0.0
    %705 = vmatprep.subr.mxu0 0.0
    %706 = vmatpush1.msra.mxu0 0.0
    %707 = vmatprep.subr.mxu0 0.0
    %708 = vmatpush1.msra.mxu0 0.0
    %709 = vmatprep.subr.mxu0 0.0
    %710 = vmatpush1.msra.mxu0 0.0
    %711 = vmatprep.mubr.f32.mxu0 0.0
    %712 = vmatmul.mubr.f32.gmra.mrb[0].mxu0 %v471
    %v713 = vpop.f32.mrb[0].mxu0
    %v714 = vadd.f32 0.0, %v713
    %v715 = vpop.f32.mrb[0].mxu0
    %716 = vdwg.mxu0
    %v717 = vadd.f32 %v646, %v714
    %v718 = vxor.u32 %v717, 2147483648
    %v719 = vmul.f32 %v718, 1.442695
    %v720 = vpow.pop %v719
    %v721 = vadd.f32 %v720, 1.0
    %v722 = vrcp.pop %v721
    %v723 = vmul.f32 1.0, %v722
    %v724 = vadd.f32 %v714, %v161
    %726 = vrot.lane.b32.xlu0 %v724, 64
    %v727 = vpop.permute.xlu0 %726
    %v729 = vmul.f32 %v723, %v727
    %731 = vrot.lane.b32.xlu0 %v729, 64
    %v732 = vpop.permute.xlu0 %731
    %v734 = vadd.f32 %v646, %v732
    %v735 = vtanh.pop %v734
    %v736 = vsub.f32 1.0, %v723
    %738 = vrot.lane.b32.xlu0 %v735, 96
    %v739 = vpop.permute.xlu0 %738
    %v741 = vmul.f32 %v736, %v739
    %v742 = vmul.f32 %v723, %v467
    %v743 = vadd.f32 %v741, %v742
    %745 = vrot.lane.b32.xlu0 %v743, 96
    %v746 = vpop.permute.xlu0 %745
    %v747 = vsel %vm74, %v746, 0
    %749 = vmatprep.subr.mxu0 0.0
    %750 = vmatpush1.msra.mxu0 %v50
    %751 = vmatprep.subr.mxu0 0.0
    %752 = vmatpush1.msra.mxu0 %v51
    %753 = vmatprep.subr.mxu0 0.0
    %754 = vmatpush1.msra.mxu0 %v52
    %755 = vmatprep.subr.mxu0 0.0
    %756 = vmatpush1.msra.mxu0 %v53
    %757 = vmatprep.subr.mxu0 0.0
    %758 = vmatpush1.msra.mxu0 0.0
    %759 = vmatprep.subr.mxu0 0.0
    %760 = vmatpush1.msra.mxu0 0.0
    %761 = vmatprep.subr.mxu0 0.0
    %762 = vmatpush1.msra.mxu0 0.0
    %763 = vmatprep.subr.mxu0 0.0
    %764 = vmatpush1.msra.mxu0 0.0
    %765 = vmatprep.subr.mxu0 0.0
    %766 = vmatpush1.msra.mxu0 0.0
    %767 = vmatprep.subr.mxu0 0.0
    %768 = vmatpush1.msra.mxu0 0.0
    %769 = vmatprep.subr.mxu0 0.0
    %770 = vmatpush1.msra.mxu0 0.0
    %771 = vmatprep.subr.mxu0 0.0
    %772 = vmatpush1.msra.mxu0 0.0
    %773 = vmatprep.subr.mxu0 0.0
    %774 = vmatpush1.msra.mxu0 0.0
    %775 = vmatprep.subr.mxu0 0.0
    %776 = vmatpush1.msra.mxu0 0.0
    %777 = vmatprep.subr.mxu0 0.0
    %778 = vmatpush1.msra.mxu0 0.0
    %779 = vmatprep.subr.mxu0 0.0
    %780 = vmatpush1.msra.mxu0 0.0
    %781 = vmatprep.subr.mxu0 0.0
    %782 = vmatpush1.msra.mxu0 0.0
    %783 = vmatprep.subr.mxu0 0.0
    %784 = vmatpush1.msra.mxu0 0.0
    %785 = vmatprep.subr.mxu0 0.0
    %786 = vmatpush1.msra.mxu0 0.0
    %787 = vmatprep.subr.mxu0 0.0
    %788 = vmatpush1.msra.mxu0 0.0
    %789 = vmatprep.subr.mxu0 0.0
    %790 = vmatpush1.msra.mxu0 0.0
    %791 = vmatprep.subr.mxu0 0.0
    %792 = vmatpush1.msra.mxu0 0.0
    %793 = vmatprep.subr.mxu0 0.0
    %794 = vmatpush1.msra.mxu0 0.0
    %795 = vmatprep.subr.mxu0 0.0
    %796 = vmatpush1.msra.mxu0 0.0
    %797 = vmatprep.subr.mxu0 0.0
    %798 = vmatpush1.msra.mxu0 0.0
    %799 = vmatprep.subr.mxu0 0.0
    %800 = vmatpush1.msra.mxu0 0.0
    %801 = vmatprep.subr.mxu0 0.0
    %802 = vmatpush1.msra.mxu0 0.0
    %803 = vmatprep.subr.mxu0 0.0
    %804 = vmatpush1.msra.mxu0 0.0
    %805 = vmatprep.subr.mxu0 0.0
    %806 = vmatpush1.msra.mxu0 0.0
    %807 = vmatprep.subr.mxu0 0.0
    %808 = vmatpush1.msra.mxu0 0.0
    %809 = vmatprep.subr.mxu0 0.0
    %810 = vmatpush1.msra.mxu0 0.0
    %811 = vmatprep.subr.mxu0 0.0
    %812 = vmatpush1.msra.mxu0 0.0
    %813 = vmatprep.mubr.f32.mxu0 0.0
    %814 = vmatmul.mubr.f32.gmra.mrb[0].mxu0 %v747
    %v815 = vpop.f32.mrb[0].mxu0
    %v816 = vadd.f32 %v187, %v815
    %v817 = vpop.f32.mrb[0].mxu0
    %818 = vdwg.mxu0
    %820 = vrot.lane.b32.xlu0 %v644, 96
    %v821 = vpop.permute.xlu0 %820
    %v822 = vsel %vm74, %v821, 0
    %824 = vmatprep.subr.mxu0 0.0
    %825 = vmatpush1.msra.mxu0 %v55
    %826 = vmatprep.subr.mxu0 0.0
    %827 = vmatpush1.msra.mxu0 %v56
    %828 = vmatprep.subr.mxu0 0.0
    %829 = vmatpush1.msra.mxu0 %v57
    %830 = vmatprep.subr.mxu0 0.0
    %831 = vmatpush1.msra.mxu0 %v58
    %832 = vmatprep.subr.mxu0 0.0
    %833 = vmatpush1.msra.mxu0 0.0
    %834 = vmatprep.subr.mxu0 0.0
    %835 = vmatpush1.msra.mxu0 0.0
    %836 = vmatprep.subr.mxu0 0.0
    %837 = vmatpush1.msra.mxu0 0.0
    %838 = vmatprep.subr.mxu0 0.0
    %839 = vmatpush1.msra.mxu0 0.0
    %840 = vmatprep.subr.mxu0 0.0
    %841 = vmatpush1.msra.mxu0 0.0
    %842 = vmatprep.subr.mxu0 0.0
    %843 = vmatpush1.msra.mxu0 0.0
    %844 = vmatprep.subr.mxu0 0.0
    %845 = vmatpush1.msra.mxu0 0.0
    %846 = vmatprep.subr.mxu0 0.0
    %847 = vmatpush1.msra.mxu0 0.0
    %848 = vmatprep.subr.mxu0 0.0
    %849 = vmatpush1.msra.mxu0 0.0
    %850 = vmatprep.subr.mxu0 0.0
    %851 = vmatpush1.msra.mxu0 0.0
    %852 = vmatprep.subr.mxu0 0.0
    %853 = vmatpush1.msra.mxu0 0.0
    %854 = vmatprep.subr.mxu0 0.0
    %855 = vmatpush1.msra.mxu0 0.0
    %856 = vmatprep.subr.mxu0 0.0
    %857 = vmatpush1.msra.mxu0 0.0
    %858 = vmatprep.subr.mxu0 0.0
    %859 = vmatpush1.msra.mxu0 0.0
    %860 = vmatprep.subr.mxu0 0.0
    %861 = vmatpush1.msra.mxu0 0.0
    %862 = vmatprep.subr.mxu0 0.0
    %863 = vmatpush1.msra.mxu0 0.0
    %864 = vmatprep.subr.mxu0 0.0
    %865 = vmatpush1.msra.mxu0 0.0
    %866 = vmatprep.subr.mxu0 0.0
    %867 = vmatpush1.msra.mxu0 0.0
    %868 = vmatprep.subr.mxu0 0.0
    %869 = vmatpush1.msra.mxu0 0.0
    %870 = vmatprep.subr.mxu0 0.0
    %871 = vmatpush1.msra.mxu0 0.0
    %872 = vmatprep.subr.mxu0 0.0
    %873 = vmatpush1.msra.mxu0 0.0
    %874 = vmatprep.subr.mxu0 0.0
    %875 = vmatpush1.msra.mxu0 0.0
    %876 = vmatprep.subr.mxu0 0.0
    %877 = vmatpush1.msra.mxu0 0.0
    %878 = vmatprep.subr.mxu0 0.0
    %879 = vmatpush1.msra.mxu0 0.0
    %880 = vmatprep.subr.mxu0 0.0
    %881 = vmatpush1.msra.mxu0 0.0
    %882 = vmatprep.subr.mxu0 0.0
    %883 = vmatpush1.msra.mxu0 0.0
    %884 = vmatprep.subr.mxu0 0.0
    %885 = vmatpush1.msra.mxu0 0.0
    %886 = vmatprep.subr.mxu0 0.0
    %887 = vmatpush1.msra.mxu0 0.0
    %888 = vmatprep.mubr.f32.mxu0 0.0
    %889 = vmatmul.mubr.f32.gmra.mrb[0].mxu0 %v822
    %v890 = vpop.f32.mrb[0].mxu0
    %v891 = vadd.f32 0.0, %v890
    %v892 = vpop.f32.mrb[0].mxu0
    %893 = vdwg.mxu0
    %v894 = vadd.f32 %v816, %v891
    %v895 = vxor.u32 %v894, 2147483648
    %v896 = vmul.f32 %v895, 1.442695
    %v897 = vpow.pop %v896
    %v898 = vadd.f32 %v897, 1.0
    %v899 = vrcp.pop %v898
    %v900 = vmul.f32 1.0, %v899
    %v901 = vadd.f32 %v891, %v347
    %903 = vrot.lane.b32.xlu0 %v901, 64
    %v904 = vpop.permute.xlu0 %903
    %v906 = vmul.f32 %v900, %v904
    %908 = vrot.lane.b32.xlu0 %v906, 64
    %v909 = vpop.permute.xlu0 %908
    %v911 = vadd.f32 %v816, %v909
    %v912 = vtanh.pop %v911
    %v913 = vsub.f32 1.0, %v900
    %915 = vrot.lane.b32.xlu0 %v912, 96
    %v916 = vpop.permute.xlu0 %915
    %v918 = vmul.f32 %v913, %v916
    %v919 = vmul.f32 %v900, %v644
    %v920 = vadd.f32 %v918, %v919
    %s921 = scalar_lea.vmem %s0, 6
    %v922 = vld [vmem:[%s921] sm:$0x3]
    %923 = vmatprep.subr.mxu0 0.0
    %924 = vmatpush1.msra.mxu0 %v45
    %925 = vmatprep.subr.mxu0 0.0
    %926 = vmatpush1.msra.mxu0 %v46
    %927 = vmatprep.subr.mxu0 0.0
    %928 = vmatpush1.msra.mxu0 %v47
    %929 = vmatprep.subr.mxu0 0.0
    %930 = vmatpush1.msra.mxu0 %v48
    %931 = vmatprep.subr.mxu0 0.0
    %932 = vmatpush1.msra.mxu0 0.0
    %933 = vmatprep.subr.mxu0 0.0
    %934 = vmatpush1.msra.mxu0 0.0
    %935 = vmatprep.subr.mxu0 0.0
    %936 = vmatpush1.msra.mxu0 0.0
    %937 = vmatprep.subr.mxu0 0.0
    %938 = vmatpush1.msra.mxu0 0.0
    %939 = vmatprep.subr.mxu0 0.0
    %940 = vmatpush1.msra.mxu0 0.0
    %941 = vmatprep.subr.mxu0 0.0
    %942 = vmatpush1.msra.mxu0 0.0
    %943 = vmatprep.subr.mxu0 0.0
    %944 = vmatpush1.msra.mxu0 0.0
    %945 = vmatprep.subr.mxu0 0.0
    %946 = vmatpush1.msra.mxu0 0.0
    %947 = vmatprep.subr.mxu0 0.0
    %948 = vmatpush1.msra.mxu0 0.0
    %949 = vmatprep.subr.mxu0 0.0
    %950 = vmatpush1.msra.mxu0 0.0
    %951 = vmatprep.subr.mxu0 0.0
    %952 = vmatpush1.msra.mxu0 0.0
    %953 = vmatprep.subr.mxu0 0.0
    %954 = vmatpush1.msra.mxu0 0.0
    %955 = vmatprep.subr.mxu0 0.0
    %956 = vmatpush1.msra.mxu0 0.0
    %957 = vmatprep.subr.mxu0 0.0
    %958 = vmatpush1.msra.mxu0 0.0
    %959 = vmatprep.subr.mxu0 0.0
    %960 = vmatpush1.msra.mxu0 0.0
    %961 = vmatprep.subr.mxu0 0.0
    %962 = vmatpush1.msra.mxu0 0.0
    %963 = vmatprep.subr.mxu0 0.0
    %964 = vmatpush1.msra.mxu0 0.0
    %965 = vmatprep.subr.mxu0 0.0
    %966 = vmatpush1.msra.mxu0 0.0
    %967 = vmatprep.subr.mxu0 0.0
    %968 = vmatpush1.msra.mxu0 0.0
    %969 = vmatprep.subr.mxu0 0.0
    %970 = vmatpush1.msra.mxu0 0.0
    %971 = vmatprep.subr.mxu0 0.0
    %972 = vmatpush1.msra.mxu0 0.0
    %973 = vmatprep.subr.mxu0 0.0
    %974 = vmatpush1.msra.mxu0 0.0
    %975 = vmatprep.subr.mxu0 0.0
    %976 = vmatpush1.msra.mxu0 0.0
    %977 = vmatprep.subr.mxu0 0.0
    %978 = vmatpush1.msra.mxu0 0.0
    %979 = vmatprep.subr.mxu0 0.0
    %980 = vmatpush1.msra.mxu0 0.0
    %981 = vmatprep.subr.mxu0 0.0
    %982 = vmatpush1.msra.mxu0 0.0
    %983 = vmatprep.subr.mxu0 0.0
    %984 = vmatpush1.msra.mxu0 0.0
    %985 = vmatprep.subr.mxu0 0.0
    %986 = vmatpush1.msra.mxu0 0.0
    %987 = vmatprep.mubr.f32.mxu0 0.0
    %988 = vmatmul.mubr.f32.gmra.mrb[0].mxu0 %v747
    %v989 = vpop.f32.mrb[0].mxu0
    %v990 = vadd.f32 0.0, %v989
    %v991 = vpop.f32.mrb[0].mxu0
    %992 = vdwg.mxu0
    %v993 = vadd.f32 %v922, %v990
    %v994 = vxor.u32 %v993, 2147483648
    %v995 = vmul.f32 %v994, 1.442695
    %v996 = vpow.pop %v995
    %v997 = vadd.f32 %v996, 1.0
    %v998 = vrcp.pop %v997
    %v999 = vmul.f32 1.0, %v998
    %v1000 = vadd.f32 %v990, %v161
    %1002 = vrot.lane.b32.xlu0 %v1000, 64
    %v1003 = vpop.permute.xlu0 %1002
    %v1005 = vmul.f32 %v999, %v1003
    %1007 = vrot.lane.b32.xlu0 %v1005, 64
    %v1008 = vpop.permute.xlu0 %1007
    %v1010 = vadd.f32 %v922, %v1008
    %v1011 = vtanh.pop %v1010
    %v1012 = vsub.f32 1.0, %v999
    %1014 = vrot.lane.b32.xlu0 %v1011, 96
    %v1015 = vpop.permute.xlu0 %1014
    %v1017 = vmul.f32 %v1012, %v1015
    %v1018 = vmul.f32 %v999, %v743
    %v1019 = vadd.f32 %v1017, %v1018
    %1021 = vrot.lane.b32.xlu0 %v1019, 96
    %v1022 = vpop.permute.xlu0 %1021
    %v1023 = vsel %vm74, %v1022, 0
    %1025 = vmatprep.subr.mxu0 0.0
    %1026 = vmatpush1.msra.mxu0 %v50
    %1027 = vmatprep.subr.mxu0 0.0
    %1028 = vmatpush1.msra.mxu0 %v51
    %1029 = vmatprep.subr.mxu0 0.0
    %1030 = vmatpush1.msra.mxu0 %v52
    %1031 = vmatprep.subr.mxu0 0.0
    %1032 = vmatpush1.msra.mxu0 %v53
    %1033 = vmatprep.subr.mxu0 0.0
    %1034 = vmatpush1.msra.mxu0 0.0
    %1035 = vmatprep.subr.mxu0 0.0
    %1036 = vmatpush1.msra.mxu0 0.0
    %1037 = vmatprep.subr.mxu0 0.0
    %1038 = vmatpush1.msra.mxu0 0.0
    %1039 = vmatprep.subr.mxu0 0.0
    %1040 = vmatpush1.msra.mxu0 0.0
    %1041 = vmatprep.subr.mxu0 0.0
    %1042 = vmatpush1.msra.mxu0 0.0
    %1043 = vmatprep.subr.mxu0 0.0
    %1044 = vmatpush1.msra.mxu0 0.0
    %1045 = vmatprep.subr.mxu0 0.0
    %1046 = vmatpush1.msra.mxu0 0.0
    %1047 = vmatprep.subr.mxu0 0.0
    %1048 = vmatpush1.msra.mxu0 0.0
    %1049 = vmatprep.subr.mxu0 0.0
    %1050 = vmatpush1.msra.mxu0 0.0
    %1051 = vmatprep.subr.mxu0 0.0
    %1052 = vmatpush1.msra.mxu0 0.0
    %1053 = vmatprep.subr.mxu0 0.0
    %1054 = vmatpush1.msra.mxu0 0.0
    %1055 = vmatprep.subr.mxu0 0.0
    %1056 = vmatpush1.msra.mxu0 0.0
    %1057 = vmatprep.subr.mxu0 0.0
    %1058 = vmatpush1.msra.mxu0 0.0
    %1059 = vmatprep.subr.mxu0 0.0
    %1060 = vmatpush1.msra.mxu0 0.0
    %1061 = vmatprep.subr.mxu0 0.0
    %1062 = vmatpush1.msra.mxu0 0.0
    %1063 = vmatprep.subr.mxu0 0.0
    %1064 = vmatpush1.msra.mxu0 0.0
    %1065 = vmatprep.subr.mxu0 0.0
    %1066 = vmatpush1.msra.mxu0 0.0
    %1067 = vmatprep.subr.mxu0 0.0
    %1068 = vmatpush1.msra.mxu0 0.0
    %1069 = vmatprep.subr.mxu0 0.0
    %1070 = vmatpush1.msra.mxu0 0.0
    %1071 = vmatprep.subr.mxu0 0.0
    %1072 = vmatpush1.msra.mxu0 0.0
    %1073 = vmatprep.subr.mxu0 0.0
    %1074 = vmatpush1.msra.mxu0 0.0
    %1075 = vmatprep.subr.mxu0 0.0
    %1076 = vmatpush1.msra.mxu0 0.0
    %1077 = vmatprep.subr.mxu0 0.0
    %1078 = vmatpush1.msra.mxu0 0.0
    %1079 = vmatprep.subr.mxu0 0.0
    %1080 = vmatpush1.msra.mxu0 0.0
    %1081 = vmatprep.subr.mxu0 0.0
    %1082 = vmatpush1.msra.mxu0 0.0
    %1083 = vmatprep.subr.mxu0 0.0
    %1084 = vmatpush1.msra.mxu0 0.0
    %1085 = vmatprep.subr.mxu0 0.0
    %1086 = vmatpush1.msra.mxu0 0.0
    %1087 = vmatprep.subr.mxu0 0.0
    %1088 = vmatpush1.msra.mxu0 0.0
    %1089 = vmatprep.mubr.f32.mxu0 0.0
    %1090 = vmatmul.mubr.f32.gmra.mrb[0].mxu0 %v1023
    %v1091 = vpop.f32.mrb[0].mxu0
    %v1092 = vadd.f32 %v187, %v1091
    %v1093 = vpop.f32.mrb[0].mxu0
    %1094 = vdwg.mxu0
    %1096 = vrot.lane.b32.xlu0 %v920, 96
    %v1097 = vpop.permute.xlu0 %1096
    %v1098 = vsel %vm74, %v1097, 0
    %1100 = vmatprep.subr.mxu0 0.0
    %1101 = vmatpush1.msra.mxu0 %v55
    %1102 = vmatprep.subr.mxu0 0.0
    %1103 = vmatpush1.msra.mxu0 %v56
    %1104 = vmatprep.subr.mxu0 0.0
    %1105 = vmatpush1.msra.mxu0 %v57
    %1106 = vmatprep.subr.mxu0 0.0
    %1107 = vmatpush1.msra.mxu0 %v58
    %1108 = vmatprep.subr.mxu0 0.0
    %1109 = vmatpush1.msra.mxu0 0.0
    %1110 = vmatprep.subr.mxu0 0.0
    %1111 = vmatpush1.msra.mxu0 0.0
    %1112 = vmatprep.subr.mxu0 0.0
    %1113 = vmatpush1.msra.mxu0 0.0
    %1114 = vmatprep.subr.mxu0 0.0
    %1115 = vmatpush1.msra.mxu0 0.0
    %1116 = vmatprep.subr.mxu0 0.0
    %1117 = vmatpush1.msra.mxu0 0.0
    %1118 = vmatprep.subr.mxu0 0.0
    %1119 = vmatpush1.msra.mxu0 0.0
    %1120 = vmatprep.subr.mxu0 0.0
    %1121 = vmatpush1.msra.mxu0 0.0
    %1122 = vmatprep.subr.mxu0 0.0
    %1123 = vmatpush1.msra.mxu0 0.0
    %1124 = vmatprep.subr.mxu0 0.0
    %1125 = vmatpush1.msra.mxu0 0.0
    %1126 = vmatprep.subr.mxu0 0.0
    %1127 = vmatpush1.msra.mxu0 0.0
    %1128 = vmatprep.subr.mxu0 0.0
    %1129 = vmatpush1.msra.mxu0 0.0
    %1130 = vmatprep.subr.mxu0 0.0
    %1131 = vmatpush1.msra.mxu0 0.0
    %1132 = vmatprep.subr.mxu0 0.0
    %1133 = vmatpush1.msra.mxu0 0.0
    %1134 = vmatprep.subr.mxu0 0.0
    %1135 = vmatpush1.msra.mxu0 0.0
    %1136 = vmatprep.subr.mxu0 0.0
    %1137 = vmatpush1.msra.mxu0 0.0
    %1138 = vmatprep.subr.mxu0 0.0
    %1139 = vmatpush1.msra.mxu0 0.0
    %1140 = vmatprep.subr.mxu0 0.0
    %1141 = vmatpush1.msra.mxu0 0.0
    %1142 = vmatprep.subr.mxu0 0.0
    %1143 = vmatpush1.msra.mxu0 0.0
    %1144 = vmatprep.subr.mxu0 0.0
    %1145 = vmatpush1.msra.mxu0 0.0
    %1146 = vmatprep.subr.mxu0 0.0
    %1147 = vmatpush1.msra.mxu0 0.0
    %1148 = vmatprep.subr.mxu0 0.0
    %1149 = vmatpush1.msra.mxu0 0.0
    %1150 = vmatprep.subr.mxu0 0.0
    %1151 = vmatpush1.msra.mxu0 0.0
    %1152 = vmatprep.subr.mxu0 0.0
    %1153 = vmatpush1.msra.mxu0 0.0
    %1154 = vmatprep.subr.mxu0 0.0
    %1155 = vmatpush1.msra.mxu0 0.0
    %1156 = vmatprep.subr.mxu0 0.0
    %1157 = vmatpush1.msra.mxu0 0.0
    %1158 = vmatprep.subr.mxu0 0.0
    %1159 = vmatpush1.msra.mxu0 0.0
    %1160 = vmatprep.subr.mxu0 0.0
    %1161 = vmatpush1.msra.mxu0 0.0
    %1162 = vmatprep.subr.mxu0 0.0
    %1163 = vmatpush1.msra.mxu0 0.0
    %1164 = vmatprep.mubr.f32.mxu0 0.0
    %1165 = vmatmul.mubr.f32.gmra.mrb[0].mxu0 %v1098
    %v1166 = vpop.f32.mrb[0].mxu0
    %v1167 = vadd.f32 0.0, %v1166
    %v1168 = vpop.f32.mrb[0].mxu0
    %1169 = vdwg.mxu0
    %v1170 = vadd.f32 %v1092, %v1167
    %v1171 = vxor.u32 %v1170, 2147483648
    %v1172 = vmul.f32 %v1171, 1.442695
    %v1173 = vpow.pop %v1172
    %v1174 = vadd.f32 %v1173, 1.0
    %v1175 = vrcp.pop %v1174
    %v1176 = vmul.f32 1.0, %v1175
    %v1177 = vadd.f32 %v1167, %v347
    %1179 = vrot.lane.b32.xlu0 %v1177, 64
    %v1180 = vpop.permute.xlu0 %1179
    %v1182 = vmul.f32 %v1176, %v1180
    %1184 = vrot.lane.b32.xlu0 %v1182, 64
    %v1185 = vpop.permute.xlu0 %1184
    %v1187 = vadd.f32 %v1092, %v1185
    %v1188 = vtanh.pop %v1187
    %v1189 = vsub.f32 1.0, %v1176
    %1191 = vrot.lane.b32.xlu0 %v1188, 96
    %v1192 = vpop.permute.xlu0 %1191
    %v1194 = vmul.f32 %v1189, %v1192
    %v1195 = vmul.f32 %v1176, %v920
    %v1196 = vadd.f32 %v1194, %v1195
    %s1197 = scalar_lea.vmem %s0, 8
    %v1198 = vld [vmem:[%s1197] sm:$0x3]
    %1199 = vmatprep.subr.mxu0 0.0
    %1200 = vmatpush1.msra.mxu0 %v45
    %1201 = vmatprep.subr.mxu0 0.0
    %1202 = vmatpush1.msra.mxu0 %v46
    %1203 = vmatprep.subr.mxu0 0.0
    %1204 = vmatpush1.msra.mxu0 %v47
    %1205 = vmatprep.subr.mxu0 0.0
    %1206 = vmatpush1.msra.mxu0 %v48
    %1207 = vmatprep.subr.mxu0 0.0
    %1208 = vmatpush1.msra.mxu0 0.0
    %1209 = vmatprep.subr.mxu0 0.0
    %1210 = vmatpush1.msra.mxu0 0.0
    %1211 = vmatprep.subr.mxu0 0.0
    %1212 = vmatpush1.msra.mxu0 0.0
    %1213 = vmatprep.subr.mxu0 0.0
    %1214 = vmatpush1.msra.mxu0 0.0
    %1215 = vmatprep.subr.mxu0 0.0
    %1216 = vmatpush1.msra.mxu0 0.0
    %1217 = vmatprep.subr.mxu0 0.0
    %1218 = vmatpush1.msra.mxu0 0.0
    %1219 = vmatprep.subr.mxu0 0.0
    %1220 = vmatpush1.msra.mxu0 0.0
    %1221 = vmatprep.subr.mxu0 0.0
    %1222 = vmatpush1.msra.mxu0 0.0
    %1223 = vmatprep.subr.mxu0 0.0
    %1224 = vmatpush1.msra.mxu0 0.0
    %1225 = vmatprep.subr.mxu0 0.0
    %1226 = vmatpush1.msra.mxu0 0.0
    %1227 = vmatprep.subr.mxu0 0.0
    %1228 = vmatpush1.msra.mxu0 0.0
    %1229 = vmatprep.subr.mxu0 0.0
    %1230 = vmatpush1.msra.mxu0 0.0
    %1231 = vmatprep.subr.mxu0 0.0
    %1232 = vmatpush1.msra.mxu0 0.0
    %1233 = vmatprep.subr.mxu0 0.0
    %1234 = vmatpush1.msra.mxu0 0.0
    %1235 = vmatprep.subr.mxu0 0.0
    %1236 = vmatpush1.msra.mxu0 0.0
    %1237 = vmatprep.subr.mxu0 0.0
    %1238 = vmatpush1.msra.mxu0 0.0
    %1239 = vmatprep.subr.mxu0 0.0
    %1240 = vmatpush1.msra.mxu0 0.0
    %1241 = vmatprep.subr.mxu0 0.0
    %1242 = vmatpush1.msra.mxu0 0.0
    %1243 = vmatprep.subr.mxu0 0.0
    %1244 = vmatpush1.msra.mxu0 0.0
    %1245 = vmatprep.subr.mxu0 0.0
    %1246 = vmatpush1.msra.mxu0 0.0
    %1247 = vmatprep.subr.mxu0 0.0
    %1248 = vmatpush1.msra.mxu0 0.0
    %1249 = vmatprep.subr.mxu0 0.0
    %1250 = vmatpush1.msra.mxu0 0.0
    %1251 = vmatprep.subr.mxu0 0.0
    %1252 = vmatpush1.msra.mxu0 0.0
    %1253 = vmatprep.subr.mxu0 0.0
    %1254 = vmatpush1.msra.mxu0 0.0
    %1255 = vmatprep.subr.mxu0 0.0
    %1256 = vmatpush1.msra.mxu0 0.0
    %1257 = vmatprep.subr.mxu0 0.0
    %1258 = vmatpush1.msra.mxu0 0.0
    %1259 = vmatprep.subr.mxu0 0.0
    %1260 = vmatpush1.msra.mxu0 0.0
    %1261 = vmatprep.subr.mxu0 0.0
    %1262 = vmatpush1.msra.mxu0 0.0
    %1263 = vmatprep.mubr.f32.mxu0 0.0
    %1264 = vmatmul.mubr.f32.gmra.mrb[0].mxu0 %v1023
    %v1265 = vpop.f32.mrb[0].mxu0
    %v1266 = vadd.f32 0.0, %v1265
    %v1267 = vpop.f32.mrb[0].mxu0
    %1268 = vdwg.mxu0
    %v1269 = vadd.f32 %v1198, %v1266
    %v1270 = vxor.u32 %v1269, 2147483648
    %v1271 = vmul.f32 %v1270, 1.442695
    %v1272 = vpow.pop %v1271
    %v1273 = vadd.f32 %v1272, 1.0
    %v1274 = vrcp.pop %v1273
    %v1275 = vmul.f32 1.0, %v1274
    %v1276 = vadd.f32 %v1266, %v161
    %1278 = vrot.lane.b32.xlu0 %v1276, 64
    %v1279 = vpop.permute.xlu0 %1278
    %v1281 = vmul.f32 %v1275, %v1279
    %1283 = vrot.lane.b32.xlu0 %v1281, 64
    %v1284 = vpop.permute.xlu0 %1283
    %v1286 = vadd.f32 %v1198, %v1284
    %v1287 = vtanh.pop %v1286
    %v1288 = vsub.f32 1.0, %v1275
    %1290 = vrot.lane.b32.xlu0 %v1287, 96
    %v1291 = vpop.permute.xlu0 %1290
    %v1293 = vmul.f32 %v1288, %v1291
    %v1294 = vmul.f32 %v1275, %v1019
    %v1295 = vadd.f32 %v1293, %v1294
    %1297 = vrot.lane.b32.xlu0 %v1295, 96
    %v1298 = vpop.permute.xlu0 %1297
    %v1299 = vsel %vm74, %v1298, 0
    %1301 = vmatprep.subr.mxu0 0.0
    %1302 = vmatpush1.msra.mxu0 %v50
    %1303 = vmatprep.subr.mxu0 0.0
    %1304 = vmatpush1.msra.mxu0 %v51
    %1305 = vmatprep.subr.mxu0 0.0
    %1306 = vmatpush1.msra.mxu0 %v52
    %1307 = vmatprep.subr.mxu0 0.0
    %1308 = vmatpush1.msra.mxu0 %v53
    %1309 = vmatprep.subr.mxu0 0.0
    %1310 = vmatpush1.msra.mxu0 0.0
    %1311 = vmatprep.subr.mxu0 0.0
    %1312 = vmatpush1.msra.mxu0 0.0
    %1313 = vmatprep.subr.mxu0 0.0
    %1314 = vmatpush1.msra.mxu0 0.0
    %1315 = vmatprep.subr.mxu0 0.0
    %1316 = vmatpush1.msra.mxu0 0.0
    %1317 = vmatprep.subr.mxu0 0.0
    %1318 = vmatpush1.msra.mxu0 0.0
    %1319 = vmatprep.subr.mxu0 0.0
    %1320 = vmatpush1.msra.mxu0 0.0
    %1321 = vmatprep.subr.mxu0 0.0
    %1322 = vmatpush1.msra.mxu0 0.0
    %1323 = vmatprep.subr.mxu0 0.0
    %1324 = vmatpush1.msra.mxu0 0.0
    %1325 = vmatprep.subr.mxu0 0.0
    %1326 = vmatpush1.msra.mxu0 0.0
    %1327 = vmatprep.subr.mxu0 0.0
    %1328 = vmatpush1.msra.mxu0 0.0
    %1329 = vmatprep.subr.mxu0 0.0
    %1330 = vmatpush1.msra.mxu0 0.0
    %1331 = vmatprep.subr.mxu0 0.0
    %1332 = vmatpush1.msra.mxu0 0.0
    %1333 = vmatprep.subr.mxu0 0.0
    %1334 = vmatpush1.msra.mxu0 0.0
    %1335 = vmatprep.subr.mxu0 0.0
    %1336 = vmatpush1.msra.mxu0 0.0
    %1337 = vmatprep.subr.mxu0 0.0
    %1338 = vmatpush1.msra.mxu0 0.0
    %1339 = vmatprep.subr.mxu0 0.0
    %1340 = vmatpush1.msra.mxu0 0.0
    %1341 = vmatprep.subr.mxu0 0.0
    %1342 = vmatpush1.msra.mxu0 0.0
    %1343 = vmatprep.subr.mxu0 0.0
    %1344 = vmatpush1.msra.mxu0 0.0
    %1345 = vmatprep.subr.mxu0 0.0
    %1346 = vmatpush1.msra.mxu0 0.0
    %1347 = vmatprep.subr.mxu0 0.0
    %1348 = vmatpush1.msra.mxu0 0.0
    %1349 = vmatprep.subr.mxu0 0.0
    %1350 = vmatpush1.msra.mxu0 0.0
    %1351 = vmatprep.subr.mxu0 0.0
    %1352 = vmatpush1.msra.mxu0 0.0
    %1353 = vmatprep.subr.mxu0 0.0
    %1354 = vmatpush1.msra.mxu0 0.0
    %1355 = vmatprep.subr.mxu0 0.0
    %1356 = vmatpush1.msra.mxu0 0.0
    %1357 = vmatprep.subr.mxu0 0.0
    %1358 = vmatpush1.msra.mxu0 0.0
    %1359 = vmatprep.subr.mxu0 0.0
    %1360 = vmatpush1.msra.mxu0 0.0
    %1361 = vmatprep.subr.mxu0 0.0
    %1362 = vmatpush1.msra.mxu0 0.0
    %1363 = vmatprep.subr.mxu0 0.0
    %1364 = vmatpush1.msra.mxu0 0.0
    %1365 = vmatprep.mubr.f32.mxu0 0.0
    %1366 = vmatmul.mubr.f32.gmra.mrb[0].mxu0 %v1299
    %v1367 = vpop.f32.mrb[0].mxu0
    %v1368 = vadd.f32 %v187, %v1367
    %v1369 = vpop.f32.mrb[0].mxu0
    %1370 = vdwg.mxu0
    %1372 = vrot.lane.b32.xlu0 %v1196, 96
    %v1373 = vpop.permute.xlu0 %1372
    %v1374 = vsel %vm74, %v1373, 0
    %1376 = vmatprep.subr.mxu0 0.0
    %1377 = vmatpush1.msra.mxu0 %v55
    %1378 = vmatprep.subr.mxu0 0.0
    %1379 = vmatpush1.msra.mxu0 %v56
    %1380 = vmatprep.subr.mxu0 0.0
    %1381 = vmatpush1.msra.mxu0 %v57
    %1382 = vmatprep.subr.mxu0 0.0
    %1383 = vmatpush1.msra.mxu0 %v58
    %1384 = vmatprep.subr.mxu0 0.0
    %1385 = vmatpush1.msra.mxu0 0.0
    %1386 = vmatprep.subr.mxu0 0.0
    %1387 = vmatpush1.msra.mxu0 0.0
    %1388 = vmatprep.subr.mxu0 0.0
    %1389 = vmatpush1.msra.mxu0 0.0
    %1390 = vmatprep.subr.mxu0 0.0
    %1391 = vmatpush1.msra.mxu0 0.0
    %1392 = vmatprep.subr.mxu0 0.0
    %1393 = vmatpush1.msra.mxu0 0.0
    %1394 = vmatprep.subr.mxu0 0.0
    %1395 = vmatpush1.msra.mxu0 0.0
    %1396 = vmatprep.subr.mxu0 0.0
    %1397 = vmatpush1.msra.mxu0 0.0
    %1398 = vmatprep.subr.mxu0 0.0
    %1399 = vmatpush1.msra.mxu0 0.0
    %1400 = vmatprep.subr.mxu0 0.0
    %1401 = vmatpush1.msra.mxu0 0.0
    %1402 = vmatprep.subr.mxu0 0.0
    %1403 = vmatpush1.msra.mxu0 0.0
    %1404 = vmatprep.subr.mxu0 0.0
    %1405 = vmatpush1.msra.mxu0 0.0
    %1406 = vmatprep.subr.mxu0 0.0
    %1407 = vmatpush1.msra.mxu0 0.0
    %1408 = vmatprep.subr.mxu0 0.0
    %1409 = vmatpush1.msra.mxu0 0.0
    %1410 = vmatprep.subr.mxu0 0.0
    %1411 = vmatpush1.msra.mxu0 0.0
    %1412 = vmatprep.subr.mxu0 0.0
    %1413 = vmatpush1.msra.mxu0 0.0
    %1414 = vmatprep.subr.mxu0 0.0
    %1415 = vmatpush1.msra.mxu0 0.0
    %1416 = vmatprep.subr.mxu0 0.0
    %1417 = vmatpush1.msra.mxu0 0.0
    %1418 = vmatprep.subr.mxu0 0.0
    %1419 = vmatpush1.msra.mxu0 0.0
    %1420 = vmatprep.subr.mxu0 0.0
    %1421 = vmatpush1.msra.mxu0 0.0
    %1422 = vmatprep.subr.mxu0 0.0
    %1423 = vmatpush1.msra.mxu0 0.0
    %1424 = vmatprep.subr.mxu0 0.0
    %1425 = vmatpush1.msra.mxu0 0.0
    %1426 = vmatprep.subr.mxu0 0.0
    %1427 = vmatpush1.msra.mxu0 0.0
    %1428 = vmatprep.subr.mxu0 0.0
    %1429 = vmatpush1.msra.mxu0 0.0
    %1430 = vmatprep.subr.mxu0 0.0
    %1431 = vmatpush1.msra.mxu0 0.0
    %1432 = vmatprep.subr.mxu0 0.0
    %1433 = vmatpush1.msra.mxu0 0.0
    %1434 = vmatprep.subr.mxu0 0.0
    %1435 = vmatpush1.msra.mxu0 0.0
    %1436 = vmatprep.subr.mxu0 0.0
    %1437 = vmatpush1.msra.mxu0 0.0
    %1438 = vmatprep.subr.mxu0 0.0
    %1439 = vmatpush1.msra.mxu0 0.0
    %1440 = vmatprep.mubr.f32.mxu0 0.0
    %1441 = vmatmul.mubr.f32.gmra.mrb[0].mxu0 %v1374
    %v1442 = vpop.f32.mrb[0].mxu0
    %v1443 = vadd.f32 0.0, %v1442
    %v1444 = vpop.f32.mrb[0].mxu0
    %1445 = vdwg.mxu0
    %v1446 = vadd.f32 %v1368, %v1443
    %v1447 = vxor.u32 %v1446, 2147483648
    %v1448 = vmul.f32 %v1447, 1.442695
    %v1449 = vpow.pop %v1448
    %v1450 = vadd.f32 %v1449, 1.0
    %v1451 = vrcp.pop %v1450
    %v1452 = vmul.f32 1.0, %v1451
    %v1453 = vadd.f32 %v1443, %v347
    %1455 = vrot.lane.b32.xlu0 %v1453, 64
    %v1456 = vpop.permute.xlu0 %1455
    %v1458 = vmul.f32 %v1452, %v1456
    %1460 = vrot.lane.b32.xlu0 %v1458, 64
    %v1461 = vpop.permute.xlu0 %1460
    %v1463 = vadd.f32 %v1368, %v1461
    %v1464 = vtanh.pop %v1463
    %v1465 = vsub.f32 1.0, %v1452
    %1467 = vrot.lane.b32.xlu0 %v1464, 96
    %v1468 = vpop.permute.xlu0 %1467
    %v1470 = vmul.f32 %v1465, %v1468
    %v1471 = vmul.f32 %v1452, %v1196
    %v1472 = vadd.f32 %v1470, %v1471
    %s1473 = scalar_lea.vmem %s0, 10
    %v1474 = vld [vmem:[%s1473] sm:$0x3]
    %1475 = vmatprep.subr.mxu0 0.0
    %1476 = vmatpush1.msra.mxu0 %v45
    %1477 = vmatprep.subr.mxu0 0.0
    %1478 = vmatpush1.msra.mxu0 %v46
    %1479 = vmatprep.subr.mxu0 0.0
    %1480 = vmatpush1.msra.mxu0 %v47
    %1481 = vmatprep.subr.mxu0 0.0
    %1482 = vmatpush1.msra.mxu0 %v48
    %1483 = vmatprep.subr.mxu0 0.0
    %1484 = vmatpush1.msra.mxu0 0.0
    %1485 = vmatprep.subr.mxu0 0.0
    %1486 = vmatpush1.msra.mxu0 0.0
    %1487 = vmatprep.subr.mxu0 0.0
    %1488 = vmatpush1.msra.mxu0 0.0
    %1489 = vmatprep.subr.mxu0 0.0
    %1490 = vmatpush1.msra.mxu0 0.0
    %1491 = vmatprep.subr.mxu0 0.0
    %1492 = vmatpush1.msra.mxu0 0.0
    %1493 = vmatprep.subr.mxu0 0.0
    %1494 = vmatpush1.msra.mxu0 0.0
    %1495 = vmatprep.subr.mxu0 0.0
    %1496 = vmatpush1.msra.mxu0 0.0
    %1497 = vmatprep.subr.mxu0 0.0
    %1498 = vmatpush1.msra.mxu0 0.0
    %1499 = vmatprep.subr.mxu0 0.0
    %1500 = vmatpush1.msra.mxu0 0.0
    %1501 = vmatprep.subr.mxu0 0.0
    %1502 = vmatpush1.msra.mxu0 0.0
    %1503 = vmatprep.subr.mxu0 0.0
    %1504 = vmatpush1.msra.mxu0 0.0
    %1505 = vmatprep.subr.mxu0 0.0
    %1506 = vmatpush1.msra.mxu0 0.0
    %1507 = vmatprep.subr.mxu0 0.0
    %1508 = vmatpush1.msra.mxu0 0.0
    %1509 = vmatprep.subr.mxu0 0.0
    %1510 = vmatpush1.msra.mxu0 0.0
    %1511 = vmatprep.subr.mxu0 0.0
    %1512 = vmatpush1.msra.mxu0 0.0
    %1513 = vmatprep.subr.mxu0 0.0
    %1514 = vmatpush1.msra.mxu0 0.0
    %1515 = vmatprep.subr.mxu0 0.0
    %1516 = vmatpush1.msra.mxu0 0.0
    %1517 = vmatprep.subr.mxu0 0.0
    %1518 = vmatpush1.msra.mxu0 0.0
    %1519 = vmatprep.subr.mxu0 0.0
    %1520 = vmatpush1.msra.mxu0 0.0
    %1521 = vmatprep.subr.mxu0 0.0
    %1522 = vmatpush1.msra.mxu0 0.0
    %1523 = vmatprep.subr.mxu0 0.0
    %1524 = vmatpush1.msra.mxu0 0.0
    %1525 = vmatprep.subr.mxu0 0.0
    %1526 = vmatpush1.msra.mxu0 0.0
    %1527 = vmatprep.subr.mxu0 0.0
    %1528 = vmatpush1.msra.mxu0 0.0
    %1529 = vmatprep.subr.mxu0 0.0
    %1530 = vmatpush1.msra.mxu0 0.0
    %1531 = vmatprep.subr.mxu0 0.0
    %1532 = vmatpush1.msra.mxu0 0.0
    %1533 = vmatprep.subr.mxu0 0.0
    %1534 = vmatpush1.msra.mxu0 0.0
    %1535 = vmatprep.subr.mxu0 0.0
    %1536 = vmatpush1.msra.mxu0 0.0
    %1537 = vmatprep.subr.mxu0 0.0
    %1538 = vmatpush1.msra.mxu0 0.0
    %1539 = vmatprep.mubr.f32.mxu0 0.0
    %1540 = vmatmul.mubr.f32.gmra.mrb[0].mxu0 %v1299
    %v1541 = vpop.f32.mrb[0].mxu0
    %v1542 = vadd.f32 0.0, %v1541
    %v1543 = vpop.f32.mrb[0].mxu0
    %1544 = vdwg.mxu0
    %v1545 = vadd.f32 %v1474, %v1542
    %v1546 = vxor.u32 %v1545, 2147483648
    %v1547 = vmul.f32 %v1546, 1.442695
    %v1548 = vpow.pop %v1547
    %v1549 = vadd.f32 %v1548, 1.0
    %v1550 = vrcp.pop %v1549
    %v1551 = vmul.f32 1.0, %v1550
    %v1552 = vadd.f32 %v1542, %v161
    %1554 = vrot.lane.b32.xlu0 %v1552, 64
    %v1555 = vpop.permute.xlu0 %1554
    %v1557 = vmul.f32 %v1551, %v1555
    %1559 = vrot.lane.b32.xlu0 %v1557, 64
    %v1560 = vpop.permute.xlu0 %1559
    %v1562 = vadd.f32 %v1474, %v1560
    %v1563 = vtanh.pop %v1562
    %v1564 = vsub.f32 1.0, %v1551
    %1566 = vrot.lane.b32.xlu0 %v1563, 96
    %v1567 = vpop.permute.xlu0 %1566
    %v1569 = vmul.f32 %v1564, %v1567
    %v1570 = vmul.f32 %v1551, %v1295
    %v1571 = vadd.f32 %v1569, %v1570
    %1573 = vrot.lane.b32.xlu0 %v1571, 96
    %v1574 = vpop.permute.xlu0 %1573
    %v1575 = vsel %vm74, %v1574, 0
    %1577 = vmatprep.subr.mxu0 0.0
    %1578 = vmatpush1.msra.mxu0 %v50
    %1579 = vmatprep.subr.mxu0 0.0
    %1580 = vmatpush1.msra.mxu0 %v51
    %1581 = vmatprep.subr.mxu0 0.0
    %1582 = vmatpush1.msra.mxu0 %v52
    %1583 = vmatprep.subr.mxu0 0.0
    %1584 = vmatpush1.msra.mxu0 %v53
    %1585 = vmatprep.subr.mxu0 0.0
    %1586 = vmatpush1.msra.mxu0 0.0
    %1587 = vmatprep.subr.mxu0 0.0
    %1588 = vmatpush1.msra.mxu0 0.0
    %1589 = vmatprep.subr.mxu0 0.0
    %1590 = vmatpush1.msra.mxu0 0.0
    %1591 = vmatprep.subr.mxu0 0.0
    %1592 = vmatpush1.msra.mxu0 0.0
    %1593 = vmatprep.subr.mxu0 0.0
    %1594 = vmatpush1.msra.mxu0 0.0
    %1595 = vmatprep.subr.mxu0 0.0
    %1596 = vmatpush1.msra.mxu0 0.0
    %1597 = vmatprep.subr.mxu0 0.0
    %1598 = vmatpush1.msra.mxu0 0.0
    %1599 = vmatprep.subr.mxu0 0.0
    %1600 = vmatpush1.msra.mxu0 0.0
    %1601 = vmatprep.subr.mxu0 0.0
    %1602 = vmatpush1.msra.mxu0 0.0
    %1603 = vmatprep.subr.mxu0 0.0
    %1604 = vmatpush1.msra.mxu0 0.0
    %1605 = vmatprep.subr.mxu0 0.0
    %1606 = vmatpush1.msra.mxu0 0.0
    %1607 = vmatprep.subr.mxu0 0.0
    %1608 = vmatpush1.msra.mxu0 0.0
    %1609 = vmatprep.subr.mxu0 0.0
    %1610 = vmatpush1.msra.mxu0 0.0
    %1611 = vmatprep.subr.mxu0 0.0
    %1612 = vmatpush1.msra.mxu0 0.0
    %1613 = vmatprep.subr.mxu0 0.0
    %1614 = vmatpush1.msra.mxu0 0.0
    %1615 = vmatprep.subr.mxu0 0.0
    %1616 = vmatpush1.msra.mxu0 0.0
    %1617 = vmatprep.subr.mxu0 0.0
    %1618 = vmatpush1.msra.mxu0 0.0
    %1619 = vmatprep.subr.mxu0 0.0
    %1620 = vmatpush1.msra.mxu0 0.0
    %1621 = vmatprep.subr.mxu0 0.0
    %1622 = vmatpush1.msra.mxu0 0.0
    %1623 = vmatprep.subr.mxu0 0.0
    %1624 = vmatpush1.msra.mxu0 0.0
    %1625 = vmatprep.subr.mxu0 0.0
    %1626 = vmatpush1.msra.mxu0 0.0
    %1627 = vmatprep.subr.mxu0 0.0
    %1628 = vmatpush1.msra.mxu0 0.0
    %1629 = vmatprep.subr.mxu0 0.0
    %1630 = vmatpush1.msra.mxu0 0.0
    %1631 = vmatprep.subr.mxu0 0.0
    %1632 = vmatpush1.msra.mxu0 0.0
    %1633 = vmatprep.subr.mxu0 0.0
    %1634 = vmatpush1.msra.mxu0 0.0
    %1635 = vmatprep.subr.mxu0 0.0
    %1636 = vmatpush1.msra.mxu0 0.0
    %1637 = vmatprep.subr.mxu0 0.0
    %1638 = vmatpush1.msra.mxu0 0.0
    %1639 = vmatprep.subr.mxu0 0.0
    %1640 = vmatpush1.msra.mxu0 0.0
    %1641 = vmatprep.mubr.f32.mxu0 0.0
    %1642 = vmatmul.mubr.f32.gmra.mrb[0].mxu0 %v1575
    %v1643 = vpop.f32.mrb[0].mxu0
    %v1644 = vadd.f32 %v187, %v1643
    %v1645 = vpop.f32.mrb[0].mxu0
    %1646 = vdwg.mxu0
    %1648 = vrot.lane.b32.xlu0 %v1472, 96
    %v1649 = vpop.permute.xlu0 %1648
    %v1650 = vsel %vm74, %v1649, 0
    %1652 = vmatprep.subr.mxu0 0.0
    %1653 = vmatpush1.msra.mxu0 %v55
    %1654 = vmatprep.subr.mxu0 0.0
    %1655 = vmatpush1.msra.mxu0 %v56
    %1656 = vmatprep.subr.mxu0 0.0
    %1657 = vmatpush1.msra.mxu0 %v57
    %1658 = vmatprep.subr.mxu0 0.0
    %1659 = vmatpush1.msra.mxu0 %v58
    %1660 = vmatprep.subr.mxu0 0.0
    %1661 = vmatpush1.msra.mxu0 0.0
    %1662 = vmatprep.subr.mxu0 0.0
    %1663 = vmatpush1.msra.mxu0 0.0
    %1664 = vmatprep.subr.mxu0 0.0
    %1665 = vmatpush1.msra.mxu0 0.0
    %1666 = vmatprep.subr.mxu0 0.0
    %1667 = vmatpush1.msra.mxu0 0.0
    %1668 = vmatprep.subr.mxu0 0.0
    %1669 = vmatpush1.msra.mxu0 0.0
    %1670 = vmatprep.subr.mxu0 0.0
    %1671 = vmatpush1.msra.mxu0 0.0
    %1672 = vmatprep.subr.mxu0 0.0
    %1673 = vmatpush1.msra.mxu0 0.0
    %1674 = vmatprep.subr.mxu0 0.0
    %1675 = vmatpush1.msra.mxu0 0.0
    %1676 = vmatprep.subr.mxu0 0.0
    %1677 = vmatpush1.msra.mxu0 0.0
    %1678 = vmatprep.subr.mxu0 0.0
    %1679 = vmatpush1.msra.mxu0 0.0
    %1680 = vmatprep.subr.mxu0 0.0
    %1681 = vmatpush1.msra.mxu0 0.0
    %1682 = vmatprep.subr.mxu0 0.0
    %1683 = vmatpush1.msra.mxu0 0.0
    %1684 = vmatprep.subr.mxu0 0.0
    %1685 = vmatpush1.msra.mxu0 0.0
    %1686 = vmatprep.subr.mxu0 0.0
    %1687 = vmatpush1.msra.mxu0 0.0
    %1688 = vmatprep.subr.mxu0 0.0
    %1689 = vmatpush1.msra.mxu0 0.0
    %1690 = vmatprep.subr.mxu0 0.0
    %1691 = vmatpush1.msra.mxu0 0.0
    %1692 = vmatprep.subr.mxu0 0.0
    %1693 = vmatpush1.msra.mxu0 0.0
    %1694 = vmatprep.subr.mxu0 0.0
    %1695 = vmatpush1.msra.mxu0 0.0
    %1696 = vmatprep.subr.mxu0 0.0
    %1697 = vmatpush1.msra.mxu0 0.0
    %1698 = vmatprep.subr.mxu0 0.0
    %1699 = vmatpush1.msra.mxu0 0.0
    %1700 = vmatprep.subr.mxu0 0.0
    %1701 = vmatpush1.msra.mxu0 0.0
    %1702 = vmatprep.subr.mxu0 0.0
    %1703 = vmatpush1.msra.mxu0 0.0
    %1704 = vmatprep.subr.mxu0 0.0
    %1705 = vmatpush1.msra.mxu0 0.0
    %1706 = vmatprep.subr.mxu0 0.0
    %1707 = vmatpush1.msra.mxu0 0.0
    %1708 = vmatprep.subr.mxu0 0.0
    %1709 = vmatpush1.msra.mxu0 0.0
    %1710 = vmatprep.subr.mxu0 0.0
    %1711 = vmatpush1.msra.mxu0 0.0
    %1712 = vmatprep.subr.mxu0 0.0
    %1713 = vmatpush1.msra.mxu0 0.0
    %1714 = vmatprep.subr.mxu0 0.0
    %1715 = vmatpush1.msra.mxu0 0.0
    %1716 = vmatprep.mubr.f32.mxu0 0.0
    %1717 = vmatmul.mubr.f32.gmra.mrb[0].mxu0 %v1650
    %v1718 = vpop.f32.mrb[0].mxu0
    %v1719 = vadd.f32 0.0, %v1718
    %v1720 = vpop.f32.mrb[0].mxu0
    %1721 = vdwg.mxu0
    %v1722 = vadd.f32 %v1644, %v1719
    %v1723 = vxor.u32 %v1722, 2147483648
    %v1724 = vmul.f32 %v1723, 1.442695
    %v1725 = vpow.pop %v1724
    %v1726 = vadd.f32 %v1725, 1.0
    %v1727 = vrcp.pop %v1726
    %v1728 = vmul.f32 1.0, %v1727
    %v1729 = vadd.f32 %v1719, %v347
    %1731 = vrot.lane.b32.xlu0 %v1729, 64
    %v1732 = vpop.permute.xlu0 %1731
    %v1734 = vmul.f32 %v1728, %v1732
    %1736 = vrot.lane.b32.xlu0 %v1734, 64
    %v1737 = vpop.permute.xlu0 %1736
    %v1739 = vadd.f32 %v1644, %v1737
    %v1740 = vtanh.pop %v1739
    %v1741 = vsub.f32 1.0, %v1728
    %1743 = vrot.lane.b32.xlu0 %v1740, 96
    %v1744 = vpop.permute.xlu0 %1743
    %v1746 = vmul.f32 %v1741, %v1744
    %v1747 = vmul.f32 %v1728, %v1472
    %v1748 = vadd.f32 %v1746, %v1747
    %s1749 = scalar_lea.vmem %s0, 12
    %v1750 = vld [vmem:[%s1749] sm:$0x3]
    %1751 = vmatprep.subr.mxu0 0.0
    %1752 = vmatpush1.msra.mxu0 %v45
    %1753 = vmatprep.subr.mxu0 0.0
    %1754 = vmatpush1.msra.mxu0 %v46
    %1755 = vmatprep.subr.mxu0 0.0
    %1756 = vmatpush1.msra.mxu0 %v47
    %1757 = vmatprep.subr.mxu0 0.0
    %1758 = vmatpush1.msra.mxu0 %v48
    %1759 = vmatprep.subr.mxu0 0.0
    %1760 = vmatpush1.msra.mxu0 0.0
    %1761 = vmatprep.subr.mxu0 0.0
    %1762 = vmatpush1.msra.mxu0 0.0
    %1763 = vmatprep.subr.mxu0 0.0
    %1764 = vmatpush1.msra.mxu0 0.0
    %1765 = vmatprep.subr.mxu0 0.0
    %1766 = vmatpush1.msra.mxu0 0.0
    %1767 = vmatprep.subr.mxu0 0.0
    %1768 = vmatpush1.msra.mxu0 0.0
    %1769 = vmatprep.subr.mxu0 0.0
    %1770 = vmatpush1.msra.mxu0 0.0
    %1771 = vmatprep.subr.mxu0 0.0
    %1772 = vmatpush1.msra.mxu0 0.0
    %1773 = vmatprep.subr.mxu0 0.0
    %1774 = vmatpush1.msra.mxu0 0.0
    %1775 = vmatprep.subr.mxu0 0.0
    %1776 = vmatpush1.msra.mxu0 0.0
    %1777 = vmatprep.subr.mxu0 0.0
    %1778 = vmatpush1.msra.mxu0 0.0
    %1779 = vmatprep.subr.mxu0 0.0
    %1780 = vmatpush1.msra.mxu0 0.0
    %1781 = vmatprep.subr.mxu0 0.0
    %1782 = vmatpush1.msra.mxu0 0.0
    %1783 = vmatprep.subr.mxu0 0.0
    %1784 = vmatpush1.msra.mxu0 0.0
    %1785 = vmatprep.subr.mxu0 0.0
    %1786 = vmatpush1.msra.mxu0 0.0
    %1787 = vmatprep.subr.mxu0 0.0
    %1788 = vmatpush1.msra.mxu0 0.0
    %1789 = vmatprep.subr.mxu0 0.0
    %1790 = vmatpush1.msra.mxu0 0.0
    %1791 = vmatprep.subr.mxu0 0.0
    %1792 = vmatpush1.msra.mxu0 0.0
    %1793 = vmatprep.subr.mxu0 0.0
    %1794 = vmatpush1.msra.mxu0 0.0
    %1795 = vmatprep.subr.mxu0 0.0
    %1796 = vmatpush1.msra.mxu0 0.0
    %1797 = vmatprep.subr.mxu0 0.0
    %1798 = vmatpush1.msra.mxu0 0.0
    %1799 = vmatprep.subr.mxu0 0.0
    %1800 = vmatpush1.msra.mxu0 0.0
    %1801 = vmatprep.subr.mxu0 0.0
    %1802 = vmatpush1.msra.mxu0 0.0
    %1803 = vmatprep.subr.mxu0 0.0
    %1804 = vmatpush1.msra.mxu0 0.0
    %1805 = vmatprep.subr.mxu0 0.0
    %1806 = vmatpush1.msra.mxu0 0.0
    %1807 = vmatprep.subr.mxu0 0.0
    %1808 = vmatpush1.msra.mxu0 0.0
    %1809 = vmatprep.subr.mxu0 0.0
    %1810 = vmatpush1.msra.mxu0 0.0
    %1811 = vmatprep.subr.mxu0 0.0
    %1812 = vmatpush1.msra.mxu0 0.0
    %1813 = vmatprep.subr.mxu0 0.0
    %1814 = vmatpush1.msra.mxu0 0.0
    %1815 = vmatprep.mubr.f32.mxu0 0.0
    %1816 = vmatmul.mubr.f32.gmra.mrb[0].mxu0 %v1575
    %v1817 = vpop.f32.mrb[0].mxu0
    %v1818 = vadd.f32 0.0, %v1817
    %v1819 = vpop.f32.mrb[0].mxu0
    %1820 = vdwg.mxu0
    %v1821 = vadd.f32 %v1750, %v1818
    %v1822 = vxor.u32 %v1821, 2147483648
    %v1823 = vmul.f32 %v1822, 1.442695
    %v1824 = vpow.pop %v1823
    %v1825 = vadd.f32 %v1824, 1.0
    %v1826 = vrcp.pop %v1825
    %v1827 = vmul.f32 1.0, %v1826
    %v1828 = vadd.f32 %v1818, %v161
    %1830 = vrot.lane.b32.xlu0 %v1828, 64
    %v1831 = vpop.permute.xlu0 %1830
    %v1833 = vmul.f32 %v1827, %v1831
    %1835 = vrot.lane.b32.xlu0 %v1833, 64
    %v1836 = vpop.permute.xlu0 %1835
    %v1838 = vadd.f32 %v1750, %v1836
    %v1839 = vtanh.pop %v1838
    %v1840 = vsub.f32 1.0, %v1827
    %1842 = vrot.lane.b32.xlu0 %v1839, 96
    %v1843 = vpop.permute.xlu0 %1842
    %v1845 = vmul.f32 %v1840, %v1843
    %v1846 = vmul.f32 %v1827, %v1571
    %v1847 = vadd.f32 %v1845, %v1846
    %1849 = vrot.lane.b32.xlu0 %v1847, 96
    %v1850 = vpop.permute.xlu0 %1849
    %v1851 = vsel %vm74, %v1850, 0
    %1853 = vmatprep.subr.mxu0 0.0
    %1854 = vmatpush1.msra.mxu0 %v50
    %1855 = vmatprep.subr.mxu0 0.0
    %1856 = vmatpush1.msra.mxu0 %v51
    %1857 = vmatprep.subr.mxu0 0.0
    %1858 = vmatpush1.msra.mxu0 %v52
    %1859 = vmatprep.subr.mxu0 0.0
    %1860 = vmatpush1.msra.mxu0 %v53
    %1861 = vmatprep.subr.mxu0 0.0
    %1862 = vmatpush1.msra.mxu0 0.0
    %1863 = vmatprep.subr.mxu0 0.0
    %1864 = vmatpush1.msra.mxu0 0.0
    %1865 = vmatprep.subr.mxu0 0.0
    %1866 = vmatpush1.msra.mxu0 0.0
    %1867 = vmatprep.subr.mxu0 0.0
    %1868 = vmatpush1.msra.mxu0 0.0
    %1869 = vmatprep.subr.mxu0 0.0
    %1870 = vmatpush1.msra.mxu0 0.0
    %1871 = vmatprep.subr.mxu0 0.0
    %1872 = vmatpush1.msra.mxu0 0.0
    %1873 = vmatprep.subr.mxu0 0.0
    %1874 = vmatpush1.msra.mxu0 0.0
    %1875 = vmatprep.subr.mxu0 0.0
    %1876 = vmatpush1.msra.mxu0 0.0
    %1877 = vmatprep.subr.mxu0 0.0
    %1878 = vmatpush1.msra.mxu0 0.0
    %1879 = vmatprep.subr.mxu0 0.0
    %1880 = vmatpush1.msra.mxu0 0.0
    %1881 = vmatprep.subr.mxu0 0.0
    %1882 = vmatpush1.msra.mxu0 0.0
    %1883 = vmatprep.subr.mxu0 0.0
    %1884 = vmatpush1.msra.mxu0 0.0
    %1885 = vmatprep.subr.mxu0 0.0
    %1886 = vmatpush1.msra.mxu0 0.0
    %1887 = vmatprep.subr.mxu0 0.0
    %1888 = vmatpush1.msra.mxu0 0.0
    %1889 = vmatprep.subr.mxu0 0.0
    %1890 = vmatpush1.msra.mxu0 0.0
    %1891 = vmatprep.subr.mxu0 0.0
    %1892 = vmatpush1.msra.mxu0 0.0
    %1893 = vmatprep.subr.mxu0 0.0
    %1894 = vmatpush1.msra.mxu0 0.0
    %1895 = vmatprep.subr.mxu0 0.0
    %1896 = vmatpush1.msra.mxu0 0.0
    %1897 = vmatprep.subr.mxu0 0.0
    %1898 = vmatpush1.msra.mxu0 0.0
    %1899 = vmatprep.subr.mxu0 0.0
    %1900 = vmatpush1.msra.mxu0 0.0
    %1901 = vmatprep.subr.mxu0 0.0
    %1902 = vmatpush1.msra.mxu0 0.0
    %1903 = vmatprep.subr.mxu0 0.0
    %1904 = vmatpush1.msra.mxu0 0.0
    %1905 = vmatprep.subr.mxu0 0.0
    %1906 = vmatpush1.msra.mxu0 0.0
    %1907 = vmatprep.subr.mxu0 0.0
    %1908 = vmatpush1.msra.mxu0 0.0
    %1909 = vmatprep.subr.mxu0 0.0
    %1910 = vmatpush1.msra.mxu0 0.0
    %1911 = vmatprep.subr.mxu0 0.0
    %1912 = vmatpush1.msra.mxu0 0.0
    %1913 = vmatprep.subr.mxu0 0.0
    %1914 = vmatpush1.msra.mxu0 0.0
    %1915 = vmatprep.subr.mxu0 0.0
    %1916 = vmatpush1.msra.mxu0 0.0
    %1917 = vmatprep.mubr.f32.mxu0 0.0
    %1918 = vmatmul.mubr.f32.gmra.mrb[0].mxu0 %v1851
    %v1919 = vpop.f32.mrb[0].mxu0
    %v1920 = vadd.f32 %v187, %v1919
    %v1921 = vpop.f32.mrb[0].mxu0
    %1922 = vdwg.mxu0
    %1924 = vrot.lane.b32.xlu0 %v1748, 96
    %v1925 = vpop.permute.xlu0 %1924
    %v1926 = vsel %vm74, %v1925, 0
    %1928 = vmatprep.subr.mxu0 0.0
    %1929 = vmatpush1.msra.mxu0 %v55
    %1930 = vmatprep.subr.mxu0 0.0
    %1931 = vmatpush1.msra.mxu0 %v56
    %1932 = vmatprep.subr.mxu0 0.0
    %1933 = vmatpush1.msra.mxu0 %v57
    %1934 = vmatprep.subr.mxu0 0.0
    %1935 = vmatpush1.msra.mxu0 %v58
    %1936 = vmatprep.subr.mxu0 0.0
    %1937 = vmatpush1.msra.mxu0 0.0
    %1938 = vmatprep.subr.mxu0 0.0
    %1939 = vmatpush1.msra.mxu0 0.0
    %1940 = vmatprep.subr.mxu0 0.0
    %1941 = vmatpush1.msra.mxu0 0.0
    %1942 = vmatprep.subr.mxu0 0.0
    %1943 = vmatpush1.msra.mxu0 0.0
    %1944 = vmatprep.subr.mxu0 0.0
    %1945 = vmatpush1.msra.mxu0 0.0
    %1946 = vmatprep.subr.mxu0 0.0
    %1947 = vmatpush1.msra.mxu0 0.0
    %1948 = vmatprep.subr.mxu0 0.0
    %1949 = vmatpush1.msra.mxu0 0.0
    %1950 = vmatprep.subr.mxu0 0.0
    %1951 = vmatpush1.msra.mxu0 0.0
    %1952 = vmatprep.subr.mxu0 0.0
    %1953 = vmatpush1.msra.mxu0 0.0
    %1954 = vmatprep.subr.mxu0 0.0
    %1955 = vmatpush1.msra.mxu0 0.0
    %1956 = vmatprep.subr.mxu0 0.0
    %1957 = vmatpush1.msra.mxu0 0.0
    %1958 = vmatprep.subr.mxu0 0.0
    %1959 = vmatpush1.msra.mxu0 0.0
    %1960 = vmatprep.subr.mxu0 0.0
    %1961 = vmatpush1.msra.mxu0 0.0
    %1962 = vmatprep.subr.mxu0 0.0
    %1963 = vmatpush1.msra.mxu0 0.0
    %1964 = vmatprep.subr.mxu0 0.0
    %1965 = vmatpush1.msra.mxu0 0.0
    %1966 = vmatprep.subr.mxu0 0.0
    %1967 = vmatpush1.msra.mxu0 0.0
    %1968 = vmatprep.subr.mxu0 0.0
    %1969 = vmatpush1.msra.mxu0 0.0
    %1970 = vmatprep.subr.mxu0 0.0
    %1971 = vmatpush1.msra.mxu0 0.0
    %1972 = vmatprep.subr.mxu0 0.0
    %1973 = vmatpush1.msra.mxu0 0.0
    %1974 = vmatprep.subr.mxu0 0.0
    %1975 = vmatpush1.msra.mxu0 0.0
    %1976 = vmatprep.subr.mxu0 0.0
    %1977 = vmatpush1.msra.mxu0 0.0
    %1978 = vmatprep.subr.mxu0 0.0
    %1979 = vmatpush1.msra.mxu0 0.0
    %1980 = vmatprep.subr.mxu0 0.0
    %1981 = vmatpush1.msra.mxu0 0.0
    %1982 = vmatprep.subr.mxu0 0.0
    %1983 = vmatpush1.msra.mxu0 0.0
    %1984 = vmatprep.subr.mxu0 0.0
    %1985 = vmatpush1.msra.mxu0 0.0
    %1986 = vmatprep.subr.mxu0 0.0
    %1987 = vmatpush1.msra.mxu0 0.0
    %1988 = vmatprep.subr.mxu0 0.0
    %1989 = vmatpush1.msra.mxu0 0.0
    %1990 = vmatprep.subr.mxu0 0.0
    %1991 = vmatpush1.msra.mxu0 0.0
    %1992 = vmatprep.mubr.f32.mxu0 0.0
    %1993 = vmatmul.mubr.f32.gmra.mrb[0].mxu0 %v1926
    %v1994 = vpop.f32.mrb[0].mxu0
    %v1995 = vadd.f32 0.0, %v1994
    %v1996 = vpop.f32.mrb[0].mxu0
    %1997 = vdwg.mxu0
    %v1998 = vadd.f32 %v1920, %v1995
    %v1999 = vxor.u32 %v1998, 2147483648
    %v2000 = vmul.f32 %v1999, 1.442695
    %v2001 = vpow.pop %v2000
    %v2002 = vadd.f32 %v2001, 1.0
    %v2003 = vrcp.pop %v2002
    %v2004 = vmul.f32 1.0, %v2003
    %v2005 = vadd.f32 %v1995, %v347
    %2007 = vrot.lane.b32.xlu0 %v2005, 64
    %v2008 = vpop.permute.xlu0 %2007
    %v2010 = vmul.f32 %v2004, %v2008
    %2012 = vrot.lane.b32.xlu0 %v2010, 64
    %v2013 = vpop.permute.xlu0 %2012
    %v2015 = vadd.f32 %v1920, %v2013
    %v2016 = vtanh.pop %v2015
    %v2017 = vsub.f32 1.0, %v2004
    %2019 = vrot.lane.b32.xlu0 %v2016, 96
    %v2020 = vpop.permute.xlu0 %2019
    %v2022 = vmul.f32 %v2017, %v2020
    %v2023 = vmul.f32 %v2004, %v1748
    %v2024 = vadd.f32 %v2022, %v2023
    %s2025 = scalar_lea.vmem %s0, 14
    %v2026 = vld [vmem:[%s2025] sm:$0x3]
    %2027 = vmatprep.subr.mxu0 0.0
    %2028 = vmatpush1.msra.mxu0 %v45
    %2029 = vmatprep.subr.mxu0 0.0
    %2030 = vmatpush1.msra.mxu0 %v46
    %2031 = vmatprep.subr.mxu0 0.0
    %2032 = vmatpush1.msra.mxu0 %v47
    %2033 = vmatprep.subr.mxu0 0.0
    %2034 = vmatpush1.msra.mxu0 %v48
    %2035 = vmatprep.subr.mxu0 0.0
    %2036 = vmatpush1.msra.mxu0 0.0
    %2037 = vmatprep.subr.mxu0 0.0
    %2038 = vmatpush1.msra.mxu0 0.0
    %2039 = vmatprep.subr.mxu0 0.0
    %2040 = vmatpush1.msra.mxu0 0.0
    %2041 = vmatprep.subr.mxu0 0.0
    %2042 = vmatpush1.msra.mxu0 0.0
    %2043 = vmatprep.subr.mxu0 0.0
    %2044 = vmatpush1.msra.mxu0 0.0
    %2045 = vmatprep.subr.mxu0 0.0
    %2046 = vmatpush1.msra.mxu0 0.0
    %2047 = vmatprep.subr.mxu0 0.0
    %2048 = vmatpush1.msra.mxu0 0.0
    %2049 = vmatprep.subr.mxu0 0.0
    %2050 = vmatpush1.msra.mxu0 0.0
    %2051 = vmatprep.subr.mxu0 0.0
    %2052 = vmatpush1.msra.mxu0 0.0
    %2053 = vmatprep.subr.mxu0 0.0
    %2054 = vmatpush1.msra.mxu0 0.0
    %2055 = vmatprep.subr.mxu0 0.0
    %2056 = vmatpush1.msra.mxu0 0.0
    %2057 = vmatprep.subr.mxu0 0.0
    %2058 = vmatpush1.msra.mxu0 0.0
    %2059 = vmatprep.subr.mxu0 0.0
    %2060 = vmatpush1.msra.mxu0 0.0
    %2061 = vmatprep.subr.mxu0 0.0
    %2062 = vmatpush1.msra.mxu0 0.0
    %2063 = vmatprep.subr.mxu0 0.0
    %2064 = vmatpush1.msra.mxu0 0.0
    %2065 = vmatprep.subr.mxu0 0.0
    %2066 = vmatpush1.msra.mxu0 0.0
    %2067 = vmatprep.subr.mxu0 0.0
    %2068 = vmatpush1.msra.mxu0 0.0
    %2069 = vmatprep.subr.mxu0 0.0
    %2070 = vmatpush1.msra.mxu0 0.0
    %2071 = vmatprep.subr.mxu0 0.0
    %2072 = vmatpush1.msra.mxu0 0.0
    %2073 = vmatprep.subr.mxu0 0.0
    %2074 = vmatpush1.msra.mxu0 0.0
    %2075 = vmatprep.subr.mxu0 0.0
    %2076 = vmatpush1.msra.mxu0 0.0
    %2077 = vmatprep.subr.mxu0 0.0
    %2078 = vmatpush1.msra.mxu0 0.0
    %2079 = vmatprep.subr.mxu0 0.0
    %2080 = vmatpush1.msra.mxu0 0.0
    %2081 = vmatprep.subr.mxu0 0.0
    %2082 = vmatpush1.msra.mxu0 0.0
    %2083 = vmatprep.subr.mxu0 0.0
    %2084 = vmatpush1.msra.mxu0 0.0
    %2085 = vmatprep.subr.mxu0 0.0
    %2086 = vmatpush1.msra.mxu0 0.0
    %2087 = vmatprep.subr.mxu0 0.0
    %2088 = vmatpush1.msra.mxu0 0.0
    %2089 = vmatprep.subr.mxu0 0.0
    %2090 = vmatpush1.msra.mxu0 0.0
    %2091 = vmatprep.mubr.f32.mxu0 0.0
    %2092 = vmatmul.mubr.f32.gmra.mrb[0].mxu0 %v1851
    %v2093 = vpop.f32.mrb[0].mxu0
    %v2094 = vadd.f32 0.0, %v2093
    %v2095 = vpop.f32.mrb[0].mxu0
    %2096 = vdwg.mxu0
    %v2097 = vadd.f32 %v2026, %v2094
    %v2098 = vxor.u32 %v2097, 2147483648
    %v2099 = vmul.f32 %v2098, 1.442695
    %v2100 = vpow.pop %v2099
    %v2101 = vadd.f32 %v2100, 1.0
    %v2102 = vrcp.pop %v2101
    %v2103 = vmul.f32 1.0, %v2102
    %v2104 = vadd.f32 %v2094, %v161
    %2106 = vrot.lane.b32.xlu0 %v2104, 64
    %v2107 = vpop.permute.xlu0 %2106
    %v2109 = vmul.f32 %v2103, %v2107
    %2111 = vrot.lane.b32.xlu0 %v2109, 64
    %v2112 = vpop.permute.xlu0 %2111
    %v2114 = vadd.f32 %v2026, %v2112
    %v2115 = vtanh.pop %v2114
    %v2116 = vsub.f32 1.0, %v2103
    %2118 = vrot.lane.b32.xlu0 %v2115, 96
    %v2119 = vpop.permute.xlu0 %2118
    %v2121 = vmul.f32 %v2116, %v2119
    %v2122 = vmul.f32 %v2103, %v1847
    %v2123 = vadd.f32 %v2121, %v2122
    %2125 = vrot.lane.b32.xlu0 %v2123, 96
    %v2126 = vpop.permute.xlu0 %2125
    %v2127 = vsel %vm74, %v2126, 0
    %2129 = vmatprep.subr.mxu0 0.0
    %2130 = vmatpush1.msra.mxu0 %v50
    %2131 = vmatprep.subr.mxu0 0.0
    %2132 = vmatpush1.msra.mxu0 %v51
    %2133 = vmatprep.subr.mxu0 0.0
    %2134 = vmatpush1.msra.mxu0 %v52
    %2135 = vmatprep.subr.mxu0 0.0
    %2136 = vmatpush1.msra.mxu0 %v53
    %2137 = vmatprep.subr.mxu0 0.0
    %2138 = vmatpush1.msra.mxu0 0.0
    %2139 = vmatprep.subr.mxu0 0.0
    %2140 = vmatpush1.msra.mxu0 0.0
    %2141 = vmatprep.subr.mxu0 0.0
    %2142 = vmatpush1.msra.mxu0 0.0
    %2143 = vmatprep.subr.mxu0 0.0
    %2144 = vmatpush1.msra.mxu0 0.0
    %2145 = vmatprep.subr.mxu0 0.0
    %2146 = vmatpush1.msra.mxu0 0.0
    %2147 = vmatprep.subr.mxu0 0.0
    %2148 = vmatpush1.msra.mxu0 0.0
    %2149 = vmatprep.subr.mxu0 0.0
    %2150 = vmatpush1.msra.mxu0 0.0
    %2151 = vmatprep.subr.mxu0 0.0
    %2152 = vmatpush1.msra.mxu0 0.0
    %2153 = vmatprep.subr.mxu0 0.0
    %2154 = vmatpush1.msra.mxu0 0.0
    %2155 = vmatprep.subr.mxu0 0.0
    %2156 = vmatpush1.msra.mxu0 0.0
    %2157 = vmatprep.subr.mxu0 0.0
    %2158 = vmatpush1.msra.mxu0 0.0
    %2159 = vmatprep.subr.mxu0 0.0
    %2160 = vmatpush1.msra.mxu0 0.0
    %2161 = vmatprep.subr.mxu0 0.0
    %2162 = vmatpush1.msra.mxu0 0.0
    %2163 = vmatprep.subr.mxu0 0.0
    %2164 = vmatpush1.msra.mxu0 0.0
    %2165 = vmatprep.subr.mxu0 0.0
    %2166 = vmatpush1.msra.mxu0 0.0
    %2167 = vmatprep.subr.mxu0 0.0
    %2168 = vmatpush1.msra.mxu0 0.0
    %2169 = vmatprep.subr.mxu0 0.0
    %2170 = vmatpush1.msra.mxu0 0.0
    %2171 = vmatprep.subr.mxu0 0.0
    %2172 = vmatpush1.msra.mxu0 0.0
    %2173 = vmatprep.subr.mxu0 0.0
    %2174 = vmatpush1.msra.mxu0 0.0
    %2175 = vmatprep.subr.mxu0 0.0
    %2176 = vmatpush1.msra.mxu0 0.0
    %2177 = vmatprep.subr.mxu0 0.0
    %2178 = vmatpush1.msra.mxu0 0.0
    %2179 = vmatprep.subr.mxu0 0.0
    %2180 = vmatpush1.msra.mxu0 0.0
    %2181 = vmatprep.subr.mxu0 0.0
    %2182 = vmatpush1.msra.mxu0 0.0
    %2183 = vmatprep.subr.mxu0 0.0
    %2184 = vmatpush1.msra.mxu0 0.0
    %2185 = vmatprep.subr.mxu0 0.0
    %2186 = vmatpush1.msra.mxu0 0.0
    %2187 = vmatprep.subr.mxu0 0.0
    %2188 = vmatpush1.msra.mxu0 0.0
    %2189 = vmatprep.subr.mxu0 0.0
    %2190 = vmatpush1.msra.mxu0 0.0
    %2191 = vmatprep.subr.mxu0 0.0
    %2192 = vmatpush1.msra.mxu0 0.0
    %2193 = vmatprep.mubr.f32.mxu0 0.0
    %2194 = vmatmul.mubr.f32.gmra.mrb[0].mxu0 %v2127
    %v2195 = vpop.f32.mrb[0].mxu0
    %v2196 = vadd.f32 %v187, %v2195
    %v2197 = vpop.f32.mrb[0].mxu0
    %2198 = vdwg.mxu0
    %2200 = vrot.lane.b32.xlu0 %v2024, 96
    %v2201 = vpop.permute.xlu0 %2200
    %v2202 = vsel %vm74, %v2201, 0
    %2204 = vmatprep.subr.mxu0 0.0
    %2205 = vmatpush1.msra.mxu0 %v55
    %2206 = vmatprep.subr.mxu0 0.0
    %2207 = vmatpush1.msra.mxu0 %v56
    %2208 = vmatprep.subr.mxu0 0.0
    %2209 = vmatpush1.msra.mxu0 %v57
    %2210 = vmatprep.subr.mxu0 0.0
    %2211 = vmatpush1.msra.mxu0 %v58
    %2212 = vmatprep.subr.mxu0 0.0
    %2213 = vmatpush1.msra.mxu0 0.0
    %2214 = vmatprep.subr.mxu0 0.0
    %2215 = vmatpush1.msra.mxu0 0.0
    %2216 = vmatprep.subr.mxu0 0.0
    %2217 = vmatpush1.msra.mxu0 0.0
    %2218 = vmatprep.subr.mxu0 0.0
    %2219 = vmatpush1.msra.mxu0 0.0
    %2220 = vmatprep.subr.mxu0 0.0
    %2221 = vmatpush1.msra.mxu0 0.0
    %2222 = vmatprep.subr.mxu0 0.0
    %2223 = vmatpush1.msra.mxu0 0.0
    %2224 = vmatprep.subr.mxu0 0.0
    %2225 = vmatpush1.msra.mxu0 0.0
    %2226 = vmatprep.subr.mxu0 0.0
    %2227 = vmatpush1.msra.mxu0 0.0
    %2228 = vmatprep.subr.mxu0 0.0
    %2229 = vmatpush1.msra.mxu0 0.0
    %2230 = vmatprep.subr.mxu0 0.0
    %2231 = vmatpush1.msra.mxu0 0.0
    %2232 = vmatprep.subr.mxu0 0.0
    %2233 = vmatpush1.msra.mxu0 0.0
    %2234 = vmatprep.subr.mxu0 0.0
    %2235 = vmatpush1.msra.mxu0 0.0
    %2236 = vmatprep.subr.mxu0 0.0
    %2237 = vmatpush1.msra.mxu0 0.0
    %2238 = vmatprep.subr.mxu0 0.0
    %2239 = vmatpush1.msra.mxu0 0.0
    %2240 = vmatprep.subr.mxu0 0.0
    %2241 = vmatpush1.msra.mxu0 0.0
    %2242 = vmatprep.subr.mxu0 0.0
    %2243 = vmatpush1.msra.mxu0 0.0
    %2244 = vmatprep.subr.mxu0 0.0
    %2245 = vmatpush1.msra.mxu0 0.0
    %2246 = vmatprep.subr.mxu0 0.0
    %2247 = vmatpush1.msra.mxu0 0.0
    %2248 = vmatprep.subr.mxu0 0.0
    %2249 = vmatpush1.msra.mxu0 0.0
    %2250 = vmatprep.subr.mxu0 0.0
    %2251 = vmatpush1.msra.mxu0 0.0
    %2252 = vmatprep.subr.mxu0 0.0
    %2253 = vmatpush1.msra.mxu0 0.0
    %2254 = vmatprep.subr.mxu0 0.0
    %2255 = vmatpush1.msra.mxu0 0.0
    %2256 = vmatprep.subr.mxu0 0.0
    %2257 = vmatpush1.msra.mxu0 0.0
    %2258 = vmatprep.subr.mxu0 0.0
    %2259 = vmatpush1.msra.mxu0 0.0
    %2260 = vmatprep.subr.mxu0 0.0
    %2261 = vmatpush1.msra.mxu0 0.0
    %2262 = vmatprep.subr.mxu0 0.0
    %2263 = vmatpush1.msra.mxu0 0.0
    %2264 = vmatprep.subr.mxu0 0.0
    %2265 = vmatpush1.msra.mxu0 0.0
    %2266 = vmatprep.subr.mxu0 0.0
    %2267 = vmatpush1.msra.mxu0 0.0
    %2268 = vmatprep.mubr.f32.mxu0 0.0
    %2269 = vmatmul.mubr.f32.gmra.mrb[0].mxu0 %v2202
    %v2270 = vpop.f32.mrb[0].mxu0
    %v2271 = vadd.f32 0.0, %v2270
    %v2272 = vpop.f32.mrb[0].mxu0
    %2273 = vdwg.mxu0
    %v2274 = vadd.f32 %v2196, %v2271
    %v2275 = vxor.u32 %v2274, 2147483648
    %v2276 = vmul.f32 %v2275, 1.442695
    %v2277 = vpow.pop %v2276
    %v2278 = vadd.f32 %v2277, 1.0
    %v2279 = vrcp.pop %v2278
    %v2280 = vmul.f32 1.0, %v2279
    %v2281 = vadd.f32 %v2271, %v347
    %2283 = vrot.lane.b32.xlu0 %v2281, 64
    %v2284 = vpop.permute.xlu0 %2283
    %v2286 = vmul.f32 %v2280, %v2284
    %2288 = vrot.lane.b32.xlu0 %v2286, 64
    %v2289 = vpop.permute.xlu0 %2288
    %v2291 = vadd.f32 %v2196, %v2289
    %v2292 = vtanh.pop %v2291
    %v2293 = vsub.f32 1.0, %v2280
    %2295 = vrot.lane.b32.xlu0 %v2292, 96
    %v2296 = vpop.permute.xlu0 %2295
    %v2298 = vmul.f32 %v2293, %v2296
    %v2299 = vmul.f32 %v2280, %v2024
    %v2300 = vadd.f32 %v2298, %v2299
    %v2302 = vlaneseq
    %v2303 = vshrl.u32 %v2302, 7
    %v2304 = vsub.s32 0, %v2303
    %v2305 = vrot.slane %v64, %v2304
    %2308 = vrot.lane.b32.xlu0 %v2300, 96
    %v2309 = vpop.permute.xlu0 %2308
    %v2310 = vsel %vm74, %v2309, 0
    %2312 = vmatprep.subr.mxu0 0.0
    %2313 = vmatpush1.msra.mxu0 %v60
    %2314 = vmatprep.subr.mxu0 0.0
    %2315 = vmatpush1.msra.mxu0 %v61
    %2316 = vmatprep.subr.mxu0 0.0
    %2317 = vmatpush1.msra.mxu0 %v62
    %2318 = vmatprep.subr.mxu0 0.0
    %2319 = vmatpush1.msra.mxu0 %v63
    %2320 = vmatprep.subr.mxu0 0.0
    %2321 = vmatpush1.msra.mxu0 0.0
    %2322 = vmatprep.subr.mxu0 0.0
    %2323 = vmatpush1.msra.mxu0 0.0
    %2324 = vmatprep.subr.mxu0 0.0
    %2325 = vmatpush1.msra.mxu0 0.0
    %2326 = vmatprep.subr.mxu0 0.0
    %2327 = vmatpush1.msra.mxu0 0.0
    %2328 = vmatprep.subr.mxu0 0.0
    %2329 = vmatpush1.msra.mxu0 0.0
    %2330 = vmatprep.subr.mxu0 0.0
    %2331 = vmatpush1.msra.mxu0 0.0
    %2332 = vmatprep.subr.mxu0 0.0
    %2333 = vmatpush1.msra.mxu0 0.0
    %2334 = vmatprep.subr.mxu0 0.0
    %2335 = vmatpush1.msra.mxu0 0.0
    %2336 = vmatprep.subr.mxu0 0.0
    %2337 = vmatpush1.msra.mxu0 0.0
    %2338 = vmatprep.subr.mxu0 0.0
    %2339 = vmatpush1.msra.mxu0 0.0
    %2340 = vmatprep.subr.mxu0 0.0
    %2341 = vmatpush1.msra.mxu0 0.0
    %2342 = vmatprep.subr.mxu0 0.0
    %2343 = vmatpush1.msra.mxu0 0.0
    %2344 = vmatprep.subr.mxu0 0.0
    %2345 = vmatpush1.msra.mxu0 0.0
    %2346 = vmatprep.subr.mxu0 0.0
    %2347 = vmatpush1.msra.mxu0 0.0
    %2348 = vmatprep.subr.mxu0 0.0
    %2349 = vmatpush1.msra.mxu0 0.0
    %2350 = vmatprep.subr.mxu0 0.0
    %2351 = vmatpush1.msra.mxu0 0.0
    %2352 = vmatprep.subr.mxu0 0.0
    %2353 = vmatpush1.msra.mxu0 0.0
    %2354 = vmatprep.subr.mxu0 0.0
    %2355 = vmatpush1.msra.mxu0 0.0
    %2356 = vmatprep.subr.mxu0 0.0
    %2357 = vmatpush1.msra.mxu0 0.0
    %2358 = vmatprep.subr.mxu0 0.0
    %2359 = vmatpush1.msra.mxu0 0.0
    %2360 = vmatprep.subr.mxu0 0.0
    %2361 = vmatpush1.msra.mxu0 0.0
    %2362 = vmatprep.subr.mxu0 0.0
    %2363 = vmatpush1.msra.mxu0 0.0
    %2364 = vmatprep.subr.mxu0 0.0
    %2365 = vmatpush1.msra.mxu0 0.0
    %2366 = vmatprep.subr.mxu0 0.0
    %2367 = vmatpush1.msra.mxu0 0.0
    %2368 = vmatprep.subr.mxu0 0.0
    %2369 = vmatpush1.msra.mxu0 0.0
    %2370 = vmatprep.subr.mxu0 0.0
    %2371 = vmatpush1.msra.mxu0 0.0
    %2372 = vmatprep.subr.mxu0 0.0
    %2373 = vmatpush1.msra.mxu0 0.0
    %2374 = vmatprep.subr.mxu0 0.0
    %2375 = vmatpush1.msra.mxu0 0.0
    %2376 = vmatprep.mubr.f32.mxu0 0.0
    %2377 = vmatmul.mubr.f32.gmra.mrb[0].mxu0 %v2310
    %v2378 = vpop.f32.mrb[0].mxu0
    %v2379 = vadd.f32 %v2305, %v2378
    %v2380 = vpop.f32.mrb[0].mxu0
    %2381 = vdwg.mxu0
    %v2382 = vmax.f32 %v2379, 0.0
    %v2384 = vlaneseq
    %v2385 = vshrl.u32 %v2384, 7
    %v2386 = vsub.s32 0, %v2385
    %v2387 = vrot.slane %v69, %v2386
    %v2390 = vsel %vm74, %v2382, 0
    %2392 = vmatprep.subr.mxu0 0.0
    %2393 = vmatpush1.msra.mxu0 %v65
    %2394 = vmatprep.subr.mxu0 0.0
    %2395 = vmatpush1.msra.mxu0 %v66
    %2396 = vmatprep.subr.mxu0 0.0
    %2397 = vmatpush1.msra.mxu0 %v67
    %2398 = vmatprep.subr.mxu0 0.0
    %2399 = vmatpush1.msra.mxu0 %v68
    %2400 = vmatprep.subr.mxu0 0.0
    %2401 = vmatpush1.msra.mxu0 0.0
    %2402 = vmatprep.subr.mxu0 0.0
    %2403 = vmatpush1.msra.mxu0 0.0
    %2404 = vmatprep.subr.mxu0 0.0
    %2405 = vmatpush1.msra.mxu0 0.0
    %2406 = vmatprep.subr.mxu0 0.0
    %2407 = vmatpush1.msra.mxu0 0.0
    %2408 = vmatprep.subr.mxu0 0.0
    %2409 = vmatpush1.msra.mxu0 0.0
    %2410 = vmatprep.subr.mxu0 0.0
    %2411 = vmatpush1.msra.mxu0 0.0
    %2412 = vmatprep.subr.mxu0 0.0
    %2413 = vmatpush1.msra.mxu0 0.0
    %2414 = vmatprep.subr.mxu0 0.0
    %2415 = vmatpush1.msra.mxu0 0.0
    %2416 = vmatprep.subr.mxu0 0.0
    %2417 = vmatpush1.msra.mxu0 0.0
    %2418 = vmatprep.subr.mxu0 0.0
    %2419 = vmatpush1.msra.mxu0 0.0
    %2420 = vmatprep.subr.mxu0 0.0
    %2421 = vmatpush1.msra.mxu0 0.0
    %2422 = vmatprep.subr.mxu0 0.0
    %2423 = vmatpush1.msra.mxu0 0.0
    %2424 = vmatprep.subr.mxu0 0.0
    %2425 = vmatpush1.msra.mxu0 0.0
    %2426 = vmatprep.subr.mxu0 0.0
    %2427 = vmatpush1.msra.mxu0 0.0
    %2428 = vmatprep.subr.mxu0 0.0
    %2429 = vmatpush1.msra.mxu0 0.0
    %2430 = vmatprep.subr.mxu0 0.0
    %2431 = vmatpush1.msra.mxu0 0.0
    %2432 = vmatprep.subr.mxu0 0.0
    %2433 = vmatpush1.msra.mxu0 0.0
    %2434 = vmatprep.subr.mxu0 0.0
    %2435 = vmatpush1.msra.mxu0 0.0
    %2436 = vmatprep.subr.mxu0 0.0
    %2437 = vmatpush1.msra.mxu0 0.0
    %2438 = vmatprep.subr.mxu0 0.0
    %2439 = vmatpush1.msra.mxu0 0.0
    %2440 = vmatprep.subr.mxu0 0.0
    %2441 = vmatpush1.msra.mxu0 0.0
    %2442 = vmatprep.subr.mxu0 0.0
    %2443 = vmatpush1.msra.mxu0 0.0
    %2444 = vmatprep.subr.mxu0 0.0
    %2445 = vmatpush1.msra.mxu0 0.0
    %2446 = vmatprep.subr.mxu0 0.0
    %2447 = vmatpush1.msra.mxu0 0.0
    %2448 = vmatprep.subr.mxu0 0.0
    %2449 = vmatpush1.msra.mxu0 0.0
    %2450 = vmatprep.subr.mxu0 0.0
    %2451 = vmatpush1.msra.mxu0 0.0
    %2452 = vmatprep.subr.mxu0 0.0
    %2453 = vmatpush1.msra.mxu0 0.0
    %2454 = vmatprep.subr.mxu0 0.0
    %2455 = vmatpush1.msra.mxu0 0.0
    %2456 = vmatprep.mubr.f32.mxu0 0.0
    %2457 = vmatmul.mubr.f32.gmra.mrb[0].mxu0 %v2390
    %v2458 = vpop.f32.mrb[0].mxu0
    %v2459 = vadd.f32 %v2387, %v2458
    %v2460 = vpop.f32.mrb[0].mxu0
    %2461 = vdwg.mxu0
    %v2462 = vmax.f32 %v2459, 0.0
    %v2464 = vlaneseq
    %v2465 = vshrl.u32 %v2464, 7
    %v2466 = vsub.s32 0, %v2465
    %v2467 = vrot.slane %v72, %v2466
    %vm2469 = vcmask 130048
    %v2471 = vsel %vm2469, %v2462, 0
    %2473 = vmatprep.subr.mxu0 0.0
    %2474 = vmatpush1.msra.mxu0 %v70
    %2475 = vmatprep.subr.mxu0 0.0
    %2476 = vmatpush1.msra.mxu0 %v71
    %2477 = vmatprep.subr.mxu0 0.0
    %2478 = vmatpush1.msra.mxu0 0.0
    %2479 = vmatprep.subr.mxu0 0.0
    %2480 = vmatpush1.msra.mxu0 0.0
    %2481 = vmatprep.subr.mxu0 0.0
    %2482 = vmatpush1.msra.mxu0 0.0
    %2483 = vmatprep.subr.mxu0 0.0
    %2484 = vmatpush1.msra.mxu0 0.0
    %2485 = vmatprep.subr.mxu0 0.0
    %2486 = vmatpush1.msra.mxu0 0.0
    %2487 = vmatprep.subr.mxu0 0.0
    %2488 = vmatpush1.msra.mxu0 0.0
    %2489 = vmatprep.subr.mxu0 0.0
    %2490 = vmatpush1.msra.mxu0 0.0
    %2491 = vmatprep.subr.mxu0 0.0
    %2492 = vmatpush1.msra.mxu0 0.0
    %2493 = vmatprep.subr.mxu0 0.0
    %2494 = vmatpush1.msra.mxu0 0.0
    %2495 = vmatprep.subr.mxu0 0.0
    %2496 = vmatpush1.msra.mxu0 0.0
    %2497 = vmatprep.subr.mxu0 0.0
    %2498 = vmatpush1.msra.mxu0 0.0
    %2499 = vmatprep.subr.mxu0 0.0
    %2500 = vmatpush1.msra.mxu0 0.0
    %2501 = vmatprep.subr.mxu0 0.0
    %2502 = vmatpush1.msra.mxu0 0.0
    %2503 = vmatprep.subr.mxu0 0.0
    %2504 = vmatpush1.msra.mxu0 0.0
    %2505 = vmatprep.subr.mxu0 0.0
    %2506 = vmatpush1.msra.mxu0 0.0
    %2507 = vmatprep.subr.mxu0 0.0
    %2508 = vmatpush1.msra.mxu0 0.0
    %2509 = vmatprep.subr.mxu0 0.0
    %2510 = vmatpush1.msra.mxu0 0.0
    %2511 = vmatprep.subr.mxu0 0.0
    %2512 = vmatpush1.msra.mxu0 0.0
    %2513 = vmatprep.subr.mxu0 0.0
    %2514 = vmatpush1.msra.mxu0 0.0
    %2515 = vmatprep.subr.mxu0 0.0
    %2516 = vmatpush1.msra.mxu0 0.0
    %2517 = vmatprep.subr.mxu0 0.0
    %2518 = vmatpush1.msra.mxu0 0.0
    %2519 = vmatprep.subr.mxu0 0.0
    %2520 = vmatpush1.msra.mxu0 0.0
    %2521 = vmatprep.subr.mxu0 0.0
    %2522 = vmatpush1.msra.mxu0 0.0
    %2523 = vmatprep.subr.mxu0 0.0
    %2524 = vmatpush1.msra.mxu0 0.0
    %2525 = vmatprep.subr.mxu0 0.0
    %2526 = vmatpush1.msra.mxu0 0.0
    %2527 = vmatprep.subr.mxu0 0.0
    %2528 = vmatpush1.msra.mxu0 0.0
    %2529 = vmatprep.subr.mxu0 0.0
    %2530 = vmatpush1.msra.mxu0 0.0
    %2531 = vmatprep.subr.mxu0 0.0
    %2532 = vmatpush1.msra.mxu0 0.0
    %2533 = vmatprep.subr.mxu0 0.0
    %2534 = vmatpush1.msra.mxu0 0.0
    %2535 = vmatprep.subr.mxu0 0.0
    %2536 = vmatpush1.msra.mxu0 0.0
    %2537 = vmatprep.mubr.f32.mxu0 0.0
    %2538 = vmatmul.mubr.f32.gmra.mrb[0].mxu0 %v2471
    %v2539 = vpop.f32.mrb[0].mxu0
    %v2540 = vadd.f32 %v2467, %v2539
    %v2541 = vpop.f32.mrb[0].mxu0
    %2542 = vdwg.mxu0
    %vm2543 = vcmask 33792
    %v2544 = vsel %vm2543, %v2540, -inf
    %2545 = vmax.xlane.f32.xlu0 %v2544
    %v2546 = vpop.xlane.xlu0 %2545
    %v2547 = vsub.f32 %v2540, %v2546
    %v2548 = vmul.f32 %v2547, 1.442695
    %v2549 = vpow.pop %v2548
    %v2550 = vsel %vm2543, %v2549, 0.0
    %2551 = vadd.xlane.f32.xlu0 %v2550
    %v2552 = vpop.xlane.xlu0 %2551
    %v2553 = vrcp.pop %v2552
    %v2554 = vmul.f32 %v2549, %v2553
    %2555 = vst.msk [vmem:[#allocation2] sm:$0x3] %vm2543, %v2554
    // Predicated region
    $region54: #{gru_model_forward.1} parent=1 // pred_check
      _
    $region55: #{gru_model_forward.1} parent=1 // pred_check_branch
      %2557 = sbr.rel (0) target = $region57
    $region56: #{gru_model_forward.1} parent=1 // pred_region
      %s2559 = ssub.s32 32, 32
      %2560 = vsyncadd [#allocation3], %s2559
      %s2562 = sshll.u32 [#allocation2], 4
      %s2563 = int_to_ptr.vmem [resolvable:$true] %s2562
      %2565 = dma.vmem_to_hbm [thread:$0]  %s2563, 32, %s13, [#allocation3]
    $region57: #{gru_model_forward.1} parent=1 // pred_fallthru
      _
    // Predicated region
    $region58: #{gru_model_forward.1} parent=1 // pred_check
      _
    $region59: #{gru_model_forward.1} parent=1 // pred_check_branch
      %2567 = sbr.rel (0) target = $region61
    $region60: #{gru_model_forward.1} parent=1 // pred_region
      %2568 = dma.done [#allocation3], 32
    $region61: #{gru_model_forward.1} parent=1 // pred_fallthru
      _
    %2569 = vsyncpa [#allocation3], 1

</llo_original>
